<compile_context>
chip_gen: v7x
topology: tpu7x:2x2x1
jax: 0.10.0
libtpu: 0.0.40
codegen_flags: <defaults>
</compile_context>

<pallas_src>
import functools

import jax
import jax.numpy as jnp
from jax import lax
from jax.experimental import pallas as pl
from jax.experimental.pallas import tpu as pltpu


# ----------------------------------------------------------------------------
# Wrapper-side (one-time) weight preprocessing.
# ----------------------------------------------------------------------------
def _banded_conv_weights(w, W, stride=1):
    """w: (3,3,Cin,Cout) HWIO.  Returns (3, W*Cin, Wo*Cout): per kernel-row dh,
    a matrix mapping one input row (layout w*Cin+ci) to one output row
    (layout wo*Cout+co) with the width taps and horizontal pad=1 folded in."""
    KH, KW, Cin, Cout = w.shape
    Wo = (W + 2 - KW) // stride + 1
    wi = jnp.arange(W)[:, None, None]
    dw = jnp.arange(KW)[None, :, None]
    wo = jnp.arange(Wo)[None, None, :]
    sel = (wi == wo * stride + dw - 1).astype(w.dtype)           # (W, KW, Wo)
    bands = jnp.einsum("ido,pdcq->picoq", sel, w)                # (KH,W,Cin,Wo,Cout)
    return bands.reshape(KH, W * Cin, Wo * Cout)


def _blockdiag_1x1(ws, W):
    """1x1-conv weights (Cin,Cout) -> block-diagonal (W*Cin, W*Cout)."""
    Cin, Cout = ws.shape
    m = jnp.einsum("io,cq->icoq", jnp.eye(W, dtype=ws.dtype), ws)
    return m.reshape(W * Cin, W * Cout)


def _group_avg_mat(C, W, H, groups):
    """(W*C, W*C) projector: (row-sum of x) @ A == per-column group mean."""
    cg = C // groups
    gidx = (jnp.arange(W * C) % C) // cg
    same = (gidx[:, None] == gidx[None, :]).astype(jnp.float32)
    return same / float(H * W * cg)


def _tile_c(v, W):
    """(C,) per-channel vector -> (1, W*C) matching the (H, W*C) layout."""
    return jnp.tile(v, W).reshape(1, -1)


def _row_select_mats(H):
    """(3, H//2, H) selectors: S[dh, ho, i] = 1 iff i == 2*ho + dh - 1.
    Out-of-range rows (the top halo of a stride-2 pad-1 conv) become zero rows."""
    Ho = H // 2
    ho = jnp.arange(Ho)[:, None]
    i = jnp.arange(H)[None, :]
    return jnp.stack([(i == 2 * ho + dh - 1).astype(jnp.float32)
                      for dh in range(3)], axis=0)


def prepare_params(params, H, W, groups):
    prep = {"resnets": []}
    for rp in params["resnets"]:
        Cin, Cout = rp["conv1_w"].shape[2], rp["conv1_w"].shape[3]
        d = {
            "Cin": Cin, "Cout": Cout,
            "A1": _group_avg_mat(Cin, W, H, groups),
            "g1": _tile_c(rp["norm1_g"], W),
            "b1": _tile_c(rp["norm1_b"], W),
            "w1": _banded_conv_weights(rp["conv1_w"], W, 1),
            "conv1_b": rp["conv1_b"],
            "time_w": rp["time_w"], "time_b": rp["time_b"],
            "A2": _group_avg_mat(Cout, W, H, groups),
            "g2": _tile_c(rp["norm2_g"], W),
            "b2": _tile_c(rp["norm2_b"], W),
            "w2": _banded_conv_weights(rp["conv2_w"], W, 1),
            "bias2": _tile_c(rp["conv2_b"], W),
        }
        if "skip_w" in rp:
            d["skipw"] = _blockdiag_1x1(rp["skip_w"], W)
            d["skipb"] = _tile_c(rp["skip_b"], W)
        prep["resnets"].append(d)

    if "down_w" in params:
        Cd = params["down_w"].shape[3]
        prep["down"] = {
            "Cd": Cd,
            "wd": _banded_conv_weights(params["down_w"], W, stride=2),  # (3,W*Cd,Wo*Cd)
            "sel": _row_select_mats(H),                                  # (3,H/2,H)
            "bias": _tile_c(params["down_b"], W // 2),
        }
    return prep


# ----------------------------------------------------------------------------
# Fused ResnetBlock (+ optional stride-2 downsample) kernel, one batch image
# per grid step.
# ----------------------------------------------------------------------------
def _resnet_kernel(*refs, H, eps, has_skip, fuse_down):
    refs = list(refs)
    hp2_ref = refs.pop()            # scratch (H+2, W*Cout)
    hp1_ref = refs.pop()            # scratch (H+2, W*Cin)
    o_down_ref = refs.pop() if fuse_down else None
    o_res_ref = refs.pop()
    # remaining refs are inputs, in call order
    x_ref = refs[0]
    a1_ref, g1_ref, b1_ref, w1_ref, bias1_ref = refs[1:6]
    a2_ref, g2_ref, b2_ref, w2_ref, bias2_ref = refs[6:11]
    pos = 11
    skw_ref = skb_ref = None
    if has_skip:
        skw_ref, skb_ref = refs[pos], refs[pos + 1]
        pos += 2
    sel_ref = wd_ref = biasd_ref = None
    if fuse_down:
        sel_ref, wd_ref, biasd_ref = refs[pos], refs[pos + 1], refs[pos + 2]

    x = x_ref[0].astype(jnp.float32)                        # (H, W*Cin)

    def gn_silu(v, a_ref, g_ref, bt_ref):
        # per-group stats: sublane reduce then group-average projector matmul
        colsum = jnp.sum(v, axis=0, keepdims=True)          # (1, WC)
        mean = jnp.dot(colsum, a_ref[...], preferred_element_type=jnp.float32)
        d = v - mean                                        # two-pass: no cancellation
        var = jnp.dot(jnp.sum(d * d, axis=0, keepdims=True), a_ref[...],
                      preferred_element_type=jnp.float32)
        y = d * lax.rsqrt(var + eps) * g_ref[...] + bt_ref[...]
        return y * jax.nn.sigmoid(y)                        # SiLU

    def conv3x3(v, hp_ref, w_ref, bias):
        # zero-pad halo rows in VMEM, then 3 banded matmuls (K = W*Cin)
        WC = v.shape[1]
        hp_ref[pl.ds(0, 1), :] = jnp.zeros((1, WC), jnp.float32)
        hp_ref[pl.ds(H + 1, 1), :] = jnp.zeros((1, WC), jnp.float32)
        hp_ref[pl.ds(1, H), :] = v
        acc = bias                                          # (1, WCo) broadcasts
        for dh in range(3):
            acc = acc + jnp.dot(hp_ref[pl.ds(dh, H), :], w_ref[dh],
                                preferred_element_type=jnp.float32)
        return acc                                          # (H, WCo)

    h = gn_silu(x, a1_ref, g1_ref, b1_ref)
    h = conv3x3(h, hp1_ref, w1_ref, bias1_ref[0].astype(jnp.float32))  # temb in bias
    h = gn_silu(h, a2_ref, g2_ref, b2_ref)
    h = conv3x3(h, hp2_ref, w2_ref, bias2_ref[...].astype(jnp.float32))

    if has_skip:
        skip = jnp.dot(x, skw_ref[...], preferred_element_type=jnp.float32) + skb_ref[...]
    else:
        skip = x
    res = h + skip                                          # (H, W*Cout)
    o_res_ref[0] = res.astype(o_res_ref.dtype)

    if fuse_down:
        # stride-2 3x3 conv: row gather via tiny selection matmuls, then the
        # stride-2 banded column matmuls -- all MXU, no strided loads.
        acc = biasd_ref[...]                                # (1, Wo*Cd)
        for dh in range(3):
            rows = jnp.dot(sel_ref[dh], res,                # (H/2, W*Cd)
                           preferred_element_type=jnp.float32)
            acc = acc + jnp.dot(rows, wd_ref[dh],
                                preferred_element_type=jnp.float32)
        o_down_ref[0] = acc.astype(o_down_ref.dtype)


def _resnet_block_call(x2d, d, bias1, H, W, eps, down=None):
    B, _, WCin = x2d.shape
    Cout = d["Cout"]
    WCo = W * Cout
    has_skip = "skipw" in d
    fuse_down = down is not None

    def full(a):
        return pl.BlockSpec(a.shape, lambda b: (0,) * a.ndim)

    inputs = [x2d, d["A1"], d["g1"], d["b1"], d["w1"], bias1,
              d["A2"], d["g2"], d["b2"], d["w2"], d["bias2"]]
    in_specs = [pl.BlockSpec((1, H, WCin), lambda b: (b, 0, 0)),
                full(d["A1"]), full(d["g1"]), full(d["b1"]), full(d["w1"]),
                pl.BlockSpec((1, 1, WCo), lambda b: (b, 0, 0)),
                full(d["A2"]), full(d["g2"]), full(d["b2"]), full(d["w2"]),
                full(d["bias2"])]
    if has_skip:
        inputs += [d["skipw"], d["skipb"]]
        in_specs += [full(d["skipw"]), full(d["skipb"])]

    if fuse_down:
        Ho, Wo = H // 2, W // 2
        WoC = Wo * down["Cd"]
        inputs += [down["sel"], down["wd"], down["bias"]]
        in_specs += [full(down["sel"]), full(down["wd"]), full(down["bias"])]
        out_shape = (jax.ShapeDtypeStruct((B, H, WCo), jnp.float32),
                     jax.ShapeDtypeStruct((B, Ho, WoC), jnp.float32))
        out_specs = (pl.BlockSpec((1, H, WCo), lambda b: (b, 0, 0)),
                     pl.BlockSpec((1, Ho, WoC), lambda b: (b, 0, 0)))
    else:
        out_shape = jax.ShapeDtypeStruct((B, H, WCo), jnp.float32)
        out_specs = pl.BlockSpec((1, H, WCo), lambda b: (b, 0, 0))

    return pl.pallas_call(
        functools.partial(_resnet_kernel, H=H, eps=eps,
                          has_skip=has_skip, fuse_down=fuse_down),
        out_shape=out_shape,
        grid=(B,),
        in_specs=in_specs,
        out_specs=out_specs,
        scratch_shapes=[pltpu.VMEM((H + 2, WCin), jnp.float32),
                        pltpu.VMEM((H + 2, WCo), jnp.float32)],
        compiler_params=pltpu.CompilerParams(dimension_semantics=("parallel",)),
    )(*inputs)


# ----------------------------------------------------------------------------
# DownBlockGandlf forward.
# ----------------------------------------------------------------------------
def down_block_forward(hidden_nchw, temb, prep, H, W, eps):
    B = hidden_nchw.shape[0]
    x = jnp.transpose(hidden_nchw, (0, 2, 3, 1)).reshape(B, H, -1)  # (B,H,W*Cin)
    output_states = []
    n = len(prep["resnets"])
    # tiny time-embedding nonlinearity hoisted out of the resnet loop
    e = temb * jax.nn.sigmoid(temb)
    y = None
    for i, d in enumerate(prep["resnets"]):
        Cout = d["Cout"]
        tproj = e @ d["time_w"] + d["time_b"]                       # (B, Cout)
        bias1 = jnp.tile(d["conv1_b"][None, :] + tproj, (1, W)).reshape(B, 1, W * Cout)
        down = prep.get("down") if i == n - 1 else None
        if down is not None:
            x, y = _resnet_block_call(x, d, bias1, H, W, eps, down=down)
        else:
            x = _resnet_block_call(x, d, bias1, H, W, eps)          # (B,H,W*Cout)
        output_states.append(jnp.transpose(x.reshape(B, H, W, Cout), (0, 3, 1, 2)))

    if prep.get("down") is None:
        return output_states[-1], output_states

    Cd = prep["down"]["Cd"]
    Ho, Wo = H // 2, W // 2
    y_nchw = jnp.transpose(y.reshape(B, Ho, Wo, Cd), (0, 3, 1, 2))
    output_states.append(y_nchw)
    return y_nchw, output_states


# ----------------------------------------------------------------------------
# Deterministic synthetic parameters (shapes follow the module's __init__).
# ----------------------------------------------------------------------------
def init_params(key, c_in, c_out, t_emb, num_res_blocks=1):
    keys = iter(jax.random.split(key, 16 * num_res_blocks + 4))

    def nrm(shape, scale=0.1):
        return jax.random.normal(next(keys), shape, jnp.float32) * scale

    resnets = []
    cin = c_in
    for _ in range(num_res_blocks):
        rp = {
            "norm1_g": 1.0 + nrm((cin,)),
            "norm1_b": nrm((cin,)),
            "conv1_w": nrm((3, 3, cin, c_out)),
            "conv1_b": nrm((c_out,)),
            "time_w": nrm((t_emb, c_out)),
            "time_b": nrm((c_out,)),
            "norm2_g": 1.0 + nrm((c_out,)),
            "norm2_b": nrm((c_out,)),
            "conv2_w": nrm((3, 3, c_out, c_out)),
            "conv2_b": nrm((c_out,)),
        }
        if cin != c_out:
            rp["skip_w"] = nrm((cin, c_out))
            rp["skip_b"] = nrm((c_out,))
        resnets.append(rp)
        cin = c_out
    return {
        "resnets": resnets,
        "down_w": nrm((3, 3, c_out, c_out)),
        "down_b": nrm((c_out,)),
    }


# ----------------------------------------------------------------------------
# Pure-JAX reference (correctness check only).
# ----------------------------------------------------------------------------
def ref_forward(x_nchw, temb, params, groups, eps):
    x = jnp.transpose(x_nchw, (0, 2, 3, 1))

    def gn_silu(x, g, b):
        B, H, W, C = x.shape
        cg = C // groups
        xr = x.reshape(B, H, W, groups, cg)
        mean = xr.mean(axis=(1, 2, 4), keepdims=True)
        var = ((xr - mean) ** 2).mean(axis=(1, 2, 4), keepdims=True)
        y = ((xr - mean) / jnp.sqrt(var + eps)).reshape(B, H, W, C) * g + b
        return y * jax.nn.sigmoid(y)

    def conv(x, w, b, stride=1):
        out = lax.conv_general_dilated(
            x, w, (stride, stride), ((1, 1), (1, 1)),
            dimension_numbers=("NHWC", "HWIO", "NHWC"))
        return out + b

    outs = []
    for rp in params["resnets"]:
        h = gn_silu(x, rp["norm1_g"], rp["norm1_b"])
        h = conv(h, rp["conv1_w"], rp["conv1_b"])
        e = temb * jax.nn.sigmoid(temb)
        tproj = e @ rp["time_w"] + rp["time_b"]
        h = h + tproj[:, None, None, :]
        h = gn_silu(h, rp["norm2_g"], rp["norm2_b"])
        h = conv(h, rp["conv2_w"], rp["conv2_b"])
        if "skip_w" in rp:
            skip = jnp.einsum("bhwc,co->bhwo", x, rp["skip_w"]) + rp["skip_b"]
        else:
            skip = x
        x = skip + h
        outs.append(jnp.transpose(x, (0, 3, 1, 2)))
    x = conv(x, params["down_w"], params["down_b"], stride=2)
    outs.append(jnp.transpose(x, (0, 3, 1, 2)))
    return jnp.transpose(x, (0, 3, 1, 2)), outs


if __name__ == "__main__":
    B, Cin, Cout, T, H, W = 2, 8, 16, 32, 16, 16
    groups, eps = 4, 1e-6  # norm_num_groups chosen to divide both channel counts

    key = jax.random.PRNGKey(0)
    kx, ke, kp = jax.random.split(key, 3)
    hidden = jax.random.normal(kx, (B, Cin, H, W), jnp.float32)   # NCHW, like PyTorch
    temb = jax.random.normal(ke, (B, T), jnp.float32)
    params = init_params(kp, Cin, Cout, T, num_res_blocks=1)

    prep = prepare_params(params, H, W, groups)                    # one-time weight prep
    out, states = down_block_forward(hidden, temb, prep, H, W, eps)
    out = jax.block_until_ready(out)
    states = [jax.block_until_ready(s) for s in states]

    ref_out, ref_states = ref_forward(hidden, temb, params, groups, eps)
    assert out.shape == ref_out.shape == (B, Cout, H // 2, W // 2)
    assert jnp.allclose(out, ref_out, atol=1e-3, rtol=1e-3)
    assert len(states) == len(ref_states) == 2
    for a, b in zip(states, ref_states):
        assert a.shape == b.shape
        assert jnp.allclose(a, b, atol=1e-3, rtol=1e-3)

    print("KERNEL_OK")
</pallas_src>

<mosaic_0001>
module attributes {stable_mosaic.version = 11 : i64} {
  func.func @_resnet_kernel(%arg0: i32, %arg1: memref<1x16x128xf32, #tpu.memory_space<vmem>>, %arg2: memref<128x128xf32, #tpu.memory_space<vmem>>, %arg3: memref<1x128xf32, #tpu.memory_space<vmem>>, %arg4: memref<1x128xf32, #tpu.memory_space<vmem>>, %arg5: memref<3x128x256xf32, #tpu.memory_space<vmem>>, %arg6: memref<1x1x256xf32, #tpu.memory_space<vmem>>, %arg7: memref<256x256xf32, #tpu.memory_space<vmem>>, %arg8: memref<1x256xf32, #tpu.memory_space<vmem>>, %arg9: memref<1x256xf32, #tpu.memory_space<vmem>>, %arg10: memref<3x256x256xf32, #tpu.memory_space<vmem>>, %arg11: memref<1x256xf32, #tpu.memory_space<vmem>>, %arg12: memref<128x256xf32, #tpu.memory_space<vmem>>, %arg13: memref<1x256xf32, #tpu.memory_space<vmem>>, %arg14: memref<3x8x16xf32, #tpu.memory_space<vmem>>, %arg15: memref<3x256x128xf32, #tpu.memory_space<vmem>>, %arg16: memref<1x128xf32, #tpu.memory_space<vmem>>, %arg17: memref<1x16x256xf32, #tpu.memory_space<vmem>>, %arg18: memref<1x8x128xf32, #tpu.memory_space<vmem>>, %arg19: memref<18x128xf32, #tpu.memory_space<vmem>>, %arg20: memref<18x256xf32, #tpu.memory_space<vmem>>) attributes {dimension_semantics = [#tpu.dimension_semantics<parallel>], iteration_bounds = array<i64: 2>, scalar_prefetch = 0 : i64, scratch_operands = 2 : i64, tpu.core_type = #tpu.core_type<tc>, window_params = [{transform_indices = @transform_0, window_bounds = array<i64: 1, 16, 128>}, {pipeline_mode = #tpu.pipeline_mode<synchronous>, transform_indices = @transform_1, window_bounds = array<i64: 128, 128>}, {pipeline_mode = #tpu.pipeline_mode<synchronous>, transform_indices = @transform_2, window_bounds = array<i64: 1, 128>}, {pipeline_mode = #tpu.pipeline_mode<synchronous>, transform_indices = @transform_3, window_bounds = array<i64: 1, 128>}, {pipeline_mode = #tpu.pipeline_mode<synchronous>, transform_indices = @transform_4, window_bounds = array<i64: 3, 128, 256>}, {transform_indices = @transform_5, window_bounds = array<i64: 1, 1, 256>}, {pipeline_mode = #tpu.pipeline_mode<synchronous>, transform_indices = @transform_6, window_bounds = array<i64: 256, 256>}, {pipeline_mode = #tpu.pipeline_mode<synchronous>, transform_indices = @transform_7, window_bounds = array<i64: 1, 256>}, {pipeline_mode = #tpu.pipeline_mode<synchronous>, transform_indices = @transform_8, window_bounds = array<i64: 1, 256>}, {pipeline_mode = #tpu.pipeline_mode<synchronous>, transform_indices = @transform_9, window_bounds = array<i64: 3, 256, 256>}, {pipeline_mode = #tpu.pipeline_mode<synchronous>, transform_indices = @transform_10, window_bounds = array<i64: 1, 256>}, {pipeline_mode = #tpu.pipeline_mode<synchronous>, transform_indices = @transform_11, window_bounds = array<i64: 128, 256>}, {pipeline_mode = #tpu.pipeline_mode<synchronous>, transform_indices = @transform_12, window_bounds = array<i64: 1, 256>}, {pipeline_mode = #tpu.pipeline_mode<synchronous>, transform_indices = @transform_13, window_bounds = array<i64: 3, 8, 16>}, {pipeline_mode = #tpu.pipeline_mode<synchronous>, transform_indices = @transform_14, window_bounds = array<i64: 3, 256, 128>}, {pipeline_mode = #tpu.pipeline_mode<synchronous>, transform_indices = @transform_15, window_bounds = array<i64: 1, 128>}, {transform_indices = @transform_16, window_bounds = array<i64: 1, 16, 256>}, {transform_indices = @transform_17, window_bounds = array<i64: 1, 8, 128>}]} {
    %c0 = arith.constant 0 : index
    %c0_0 = arith.constant 0 : index
    %c0_1 = arith.constant 0 : index
    %0 = vector.load %arg1[%c0, %c0_0, %c0_1] : memref<1x16x128xf32, #tpu.memory_space<vmem>>, vector<1x16x128xf32>
    %1 = vector.shape_cast %0 : vector<1x16x128xf32> to vector<16x128xf32>
    %cst = arith.constant dense<0.000000e+00> : vector<128xf32>
    %2 = vector.multi_reduction <add>, %1, %cst [0] : vector<16x128xf32> to vector<128xf32>
    %3 = vector.shape_cast %2 : vector<128xf32> to vector<1x128xf32>
    %c0_2 = arith.constant 0 : index
    %c0_3 = arith.constant 0 : index
    %4 = vector.load %arg2[%c0_2, %c0_3] : memref<128x128xf32, #tpu.memory_space<vmem>>, vector<128x128xf32>
    %cst_4 = arith.constant dense<0.000000e+00> : vector<1x128xf32>
    %5 = tpu.matmul %3, %4, %cst_4 {dimension_numbers = #tpu.dot_dimension_numbers<[1], [0], [0], [1], [0, 0, 1, 1], [], []>} : vector<1x128xf32>, vector<128x128xf32>, vector<1x128xf32> -> vector<1x128xf32>
    %6 = vector.broadcast %5 : vector<1x128xf32> to vector<16x128xf32>
    %7 = arith.subf %1, %6 : vector<16x128xf32>
    %8 = arith.mulf %7, %7 : vector<16x128xf32>
    %cst_5 = arith.constant dense<0.000000e+00> : vector<128xf32>
    %9 = vector.multi_reduction <add>, %8, %cst_5 [0] : vector<16x128xf32> to vector<128xf32>
    %10 = vector.shape_cast %9 : vector<128xf32> to vector<1x128xf32>
    %c0_6 = arith.constant 0 : index
    %c0_7 = arith.constant 0 : index
    %11 = vector.load %arg2[%c0_6, %c0_7] : memref<128x128xf32, #tpu.memory_space<vmem>>, vector<128x128xf32>
    %cst_8 = arith.constant dense<0.000000e+00> : vector<1x128xf32>
    %12 = tpu.matmul %10, %11, %cst_8 {dimension_numbers = #tpu.dot_dimension_numbers<[1], [0], [0], [1], [0, 0, 1, 1], [], []>} : vector<1x128xf32>, vector<128x128xf32>, vector<1x128xf32> -> vector<1x128xf32>
    %cst_9 = arith.constant 9.99999997E-7 : f32
    %13 = vector.broadcast %cst_9 : f32 to vector<1x128xf32>
    %14 = arith.addf %12, %13 : vector<1x128xf32>
    %15 = math.rsqrt %14 : vector<1x128xf32>
    %16 = vector.broadcast %15 : vector<1x128xf32> to vector<16x128xf32>
    %17 = arith.mulf %7, %16 : vector<16x128xf32>
    %c0_10 = arith.constant 0 : index
    %c0_11 = arith.constant 0 : index
    %18 = vector.load %arg3[%c0_10, %c0_11] : memref<1x128xf32, #tpu.memory_space<vmem>>, vector<1x128xf32>
    %19 = vector.broadcast %18 : vector<1x128xf32> to vector<16x128xf32>
    %20 = arith.mulf %17, %19 : vector<16x128xf32>
    %c0_12 = arith.constant 0 : index
    %c0_13 = arith.constant 0 : index
    %21 = vector.load %arg4[%c0_12, %c0_13] : memref<1x128xf32, #tpu.memory_space<vmem>>, vector<1x128xf32>
    %22 = vector.broadcast %21 : vector<1x128xf32> to vector<16x128xf32>
    %23 = arith.addf %20, %22 : vector<16x128xf32>
    %24 = arith.negf %23 : vector<16x128xf32>
    %25 = math.exp %24 : vector<16x128xf32>
    %cst_14 = arith.constant 1.000000e+00 : f32
    %26 = vector.broadcast %cst_14 : f32 to vector<16x128xf32>
    %27 = arith.addf %26, %25 : vector<16x128xf32>
    %28 = arith.divf %26, %27 : vector<16x128xf32>
    %29 = arith.mulf %23, %28 : vector<16x128xf32>
    %c0_15 = arith.constant 0 : index
    %c0_16 = arith.constant 0 : index
    %c0_17 = arith.constant 0 : index
    %30 = vector.load %arg6[%c0_15, %c0_16, %c0_17] : memref<1x1x256xf32, #tpu.memory_space<vmem>>, vector<1x1x256xf32>
    %31 = vector.shape_cast %30 : vector<1x1x256xf32> to vector<1x256xf32>
    %cst_18 = arith.constant 0.000000e+00 : f32
    %32 = vector.broadcast %cst_18 : f32 to vector<1x128xf32>
    %c0_19 = arith.constant 0 : index
    %c0_20 = arith.constant 0 : index
    %33 = vector.load %arg19[%c0_19, %c0_20] : memref<18x128xf32, #tpu.memory_space<vmem>>, vector<1x128xf32>
    tpu.vector_store %arg19[%c0_19, %c0_20], %32 {strides = array<i32>} : memref<18x128xf32, #tpu.memory_space<vmem>>, vector<1x128xf32>,
    %cst_21 = arith.constant 0.000000e+00 : f32
    %34 = vector.broadcast %cst_21 : f32 to vector<1x128xf32>
    %c17 = arith.constant 17 : index
    %c0_22 = arith.constant 0 : index
    %35 = vector.load %arg19[%c17, %c0_22] : memref<18x128xf32, #tpu.memory_space<vmem>>, vector<1x128xf32>
    tpu.vector_store %arg19[%c17, %c0_22], %34 {strides = array<i32>} : memref<18x128xf32, #tpu.memory_space<vmem>>, vector<1x128xf32>,
    %c1 = arith.constant 1 : index
    %c0_23 = arith.constant 0 : index
    %36 = vector.load %arg19[%c1, %c0_23] : memref<18x128xf32, #tpu.memory_space<vmem>>, vector<16x128xf32>
    tpu.vector_store %arg19[%c1, %c0_23], %29 {strides = array<i32>} : memref<18x128xf32, #tpu.memory_space<vmem>>, vector<16x128xf32>,
    %c0_24 = arith.constant 0 : index
    %c0_25 = arith.constant 0 : index
    %37 = vector.load %arg19[%c0_24, %c0_25] : memref<18x128xf32, #tpu.memory_space<vmem>>, vector<16x128xf32>
    %c0_26 = arith.constant 0 : index
    %c0_27 = arith.constant 0 : index
    %c0_28 = arith.constant 0 : index
    %38 = vector.load %arg5[%c0_26, %c0_27, %c0_28] : memref<3x128x256xf32, #tpu.memory_space<vmem>>, vector<1x128x256xf32>
    %39 = vector.shape_cast %38 : vector<1x128x256xf32> to vector<128x256xf32>
    %cst_29 = arith.constant dense<0.000000e+00> : vector<16x256xf32>
    %40 = tpu.matmul %37, %39, %cst_29 {dimension_numbers = #tpu.dot_dimension_numbers<[1], [0], [0], [1], [0, 0, 1, 1], [], []>} : vector<16x128xf32>, vector<128x256xf32>, vector<16x256xf32> -> vector<16x256xf32>
    %41 = vector.broadcast %31 : vector<1x256xf32> to vector<16x256xf32>
    %42 = arith.addf %41, %40 : vector<16x256xf32>
    %c1_30 = arith.constant 1 : index
    %c0_31 = arith.constant 0 : index
    %43 = vector.load %arg19[%c1_30, %c0_31] : memref<18x128xf32, #tpu.memory_space<vmem>>, vector<16x128xf32>
    %c1_32 = arith.constant 1 : index
    %c0_33 = arith.constant 0 : index
    %c0_34 = arith.constant 0 : index
    %44 = vector.load %arg5[%c1_32, %c0_33, %c0_34] : memref<3x128x256xf32, #tpu.memory_space<vmem>>, vector<1x128x256xf32>
    %45 = vector.shape_cast %44 : vector<1x128x256xf32> to vector<128x256xf32>
    %cst_35 = arith.constant dense<0.000000e+00> : vector<16x256xf32>
    %46 = tpu.matmul %43, %45, %cst_35 {dimension_numbers = #tpu.dot_dimension_numbers<[1], [0], [0], [1], [0, 0, 1, 1], [], []>} : vector<16x128xf32>, vector<128x256xf32>, vector<16x256xf32> -> vector<16x256xf32>
    %47 = arith.addf %42, %46 : vector<16x256xf32>
    %c2 = arith.constant 2 : index
    %c0_36 = arith.constant 0 : index
    %48 = vector.load %arg19[%c2, %c0_36] : memref<18x128xf32, #tpu.memory_space<vmem>>, vector<16x128xf32>
    %c2_37 = arith.constant 2 : index
    %c0_38 = arith.constant 0 : index
    %c0_39 = arith.constant 0 : index
    %49 = vector.load %arg5[%c2_37, %c0_38, %c0_39] : memref<3x128x256xf32, #tpu.memory_space<vmem>>, vector<1x128x256xf32>
    %50 = vector.shape_cast %49 : vector<1x128x256xf32> to vector<128x256xf32>
    %cst_40 = arith.constant dense<0.000000e+00> : vector<16x256xf32>
    %51 = tpu.matmul %48, %50, %cst_40 {dimension_numbers = #tpu.dot_dimension_numbers<[1], [0], [0], [1], [0, 0, 1, 1], [], []>} : vector<16x128xf32>, vector<128x256xf32>, vector<16x256xf32> -> vector<16x256xf32>
    %52 = arith.addf %47, %51 : vector<16x256xf32>
    %cst_41 = arith.constant dense<0.000000e+00> : vector<256xf32>
    %53 = vector.multi_reduction <add>, %52, %cst_41 [0] : vector<16x256xf32> to vector<256xf32>
    %54 = vector.shape_cast %53 : vector<256xf32> to vector<1x256xf32>
    %c0_42 = arith.constant 0 : index
    %c0_43 = arith.constant 0 : index
    %55 = vector.load %arg7[%c0_42, %c0_43] : memref<256x256xf32, #tpu.memory_space<vmem>>, vector<256x256xf32>
    %cst_44 = arith.constant dense<0.000000e+00> : vector<1x256xf32>
    %56 = tpu.matmul %54, %55, %cst_44 {dimension_numbers = #tpu.dot_dimension_numbers<[1], [0], [0], [1], [0, 0, 1, 1], [], []>} : vector<1x256xf32>, vector<256x256xf32>, vector<1x256xf32> -> vector<1x256xf32>
    %57 = vector.broadcast %56 : vector<1x256xf32> to vector<16x256xf32>
    %58 = arith.subf %52, %57 : vector<16x256xf32>
    %59 = arith.mulf %58, %58 : vector<16x256xf32>
    %cst_45 = arith.constant dense<0.000000e+00> : vector<256xf32>
    %60 = vector.multi_reduction <add>, %59, %cst_45 [0] : vector<16x256xf32> to vector<256xf32>
    %61 = vector.shape_cast %60 : vector<256xf32> to vector<1x256xf32>
    %c0_46 = arith.constant 0 : index
    %c0_47 = arith.constant 0 : index
    %62 = vector.load %arg7[%c0_46, %c0_47] : memref<256x256xf32, #tpu.memory_space<vmem>>, vector<256x256xf32>
    %cst_48 = arith.constant dense<0.000000e+00> : vector<1x256xf32>
    %63 = tpu.matmul %61, %62, %cst_48 {dimension_numbers = #tpu.dot_dimension_numbers<[1], [0], [0], [1], [0, 0, 1, 1], [], []>} : vector<1x256xf32>, vector<256x256xf32>, vector<1x256xf32> -> vector<1x256xf32>
    %cst_49 = arith.constant 9.99999997E-7 : f32
    %64 = vector.broadcast %cst_49 : f32 to vector<1x256xf32>
    %65 = arith.addf %63, %64 : vector<1x256xf32>
    %66 = math.rsqrt %65 : vector<1x256xf32>
    %67 = vector.broadcast %66 : vector<1x256xf32> to vector<16x256xf32>
    %68 = arith.mulf %58, %67 : vector<16x256xf32>
    %c0_50 = arith.constant 0 : index
    %c0_51 = arith.constant 0 : index
    %69 = vector.load %arg8[%c0_50, %c0_51] : memref<1x256xf32, #tpu.memory_space<vmem>>, vector<1x256xf32>
    %70 = vector.broadcast %69 : vector<1x256xf32> to vector<16x256xf32>
    %71 = arith.mulf %68, %70 : vector<16x256xf32>
    %c0_52 = arith.constant 0 : index
    %c0_53 = arith.constant 0 : index
    %72 = vector.load %arg9[%c0_52, %c0_53] : memref<1x256xf32, #tpu.memory_space<vmem>>, vector<1x256xf32>
    %73 = vector.broadcast %72 : vector<1x256xf32> to vector<16x256xf32>
    %74 = arith.addf %71, %73 : vector<16x256xf32>
    %75 = arith.negf %74 : vector<16x256xf32>
    %76 = math.exp %75 : vector<16x256xf32>
    %cst_54 = arith.constant 1.000000e+00 : f32
    %77 = vector.broadcast %cst_54 : f32 to vector<16x256xf32>
    %78 = arith.addf %77, %76 : vector<16x256xf32>
    %79 = arith.divf %77, %78 : vector<16x256xf32>
    %80 = arith.mulf %74, %79 : vector<16x256xf32>
    %c0_55 = arith.constant 0 : index
    %c0_56 = arith.constant 0 : index
    %81 = vector.load %arg11[%c0_55, %c0_56] : memref<1x256xf32, #tpu.memory_space<vmem>>, vector<1x256xf32>
    %cst_57 = arith.constant 0.000000e+00 : f32
    %82 = vector.broadcast %cst_57 : f32 to vector<1x256xf32>
    %c0_58 = arith.constant 0 : index
    %c0_59 = arith.constant 0 : index
    %83 = vector.load %arg20[%c0_58, %c0_59] : memref<18x256xf32, #tpu.memory_space<vmem>>, vector<1x256xf32>
    tpu.vector_store %arg20[%c0_58, %c0_59], %82 {strides = array<i32>} : memref<18x256xf32, #tpu.memory_space<vmem>>, vector<1x256xf32>,
    %cst_60 = arith.constant 0.000000e+00 : f32
    %84 = vector.broadcast %cst_60 : f32 to vector<1x256xf32>
    %c17_61 = arith.constant 17 : index
    %c0_62 = arith.constant 0 : index
    %85 = vector.load %arg20[%c17_61, %c0_62] : memref<18x256xf32, #tpu.memory_space<vmem>>, vector<1x256xf32>
    tpu.vector_store %arg20[%c17_61, %c0_62], %84 {strides = array<i32>} : memref<18x256xf32, #tpu.memory_space<vmem>>, vector<1x256xf32>,
    %c1_63 = arith.constant 1 : index
    %c0_64 = arith.constant 0 : index
    %86 = vector.load %arg20[%c1_63, %c0_64] : memref<18x256xf32, #tpu.memory_space<vmem>>, vector<16x256xf32>
    tpu.vector_store %arg20[%c1_63, %c0_64], %80 {strides = array<i32>} : memref<18x256xf32, #tpu.memory_space<vmem>>, vector<16x256xf32>,
    %c0_65 = arith.constant 0 : index
    %c0_66 = arith.constant 0 : index
    %87 = vector.load %arg20[%c0_65, %c0_66] : memref<18x256xf32, #tpu.memory_space<vmem>>, vector<16x256xf32>
    %c0_67 = arith.constant 0 : index
    %c0_68 = arith.constant 0 : index
    %c0_69 = arith.constant 0 : index
    %88 = vector.load %arg10[%c0_67, %c0_68, %c0_69] : memref<3x256x256xf32, #tpu.memory_space<vmem>>, vector<1x256x256xf32>
    %89 = vector.shape_cast %88 : vector<1x256x256xf32> to vector<256x256xf32>
    %cst_70 = arith.constant dense<0.000000e+00> : vector<16x256xf32>
    %90 = tpu.matmul %87, %89, %cst_70 {dimension_numbers = #tpu.dot_dimension_numbers<[1], [0], [0], [1], [0, 0, 1, 1], [], []>} : vector<16x256xf32>, vector<256x256xf32>, vector<16x256xf32> -> vector<16x256xf32>
    %91 = vector.broadcast %81 : vector<1x256xf32> to vector<16x256xf32>
    %92 = arith.addf %91, %90 : vector<16x256xf32>
    %c1_71 = arith.constant 1 : index
    %c0_72 = arith.constant 0 : index
    %93 = vector.load %arg20[%c1_71, %c0_72] : memref<18x256xf32, #tpu.memory_space<vmem>>, vector<16x256xf32>
    %c1_73 = arith.constant 1 : index
    %c0_74 = arith.constant 0 : index
    %c0_75 = arith.constant 0 : index
    %94 = vector.load %arg10[%c1_73, %c0_74, %c0_75] : memref<3x256x256xf32, #tpu.memory_space<vmem>>, vector<1x256x256xf32>
    %95 = vector.shape_cast %94 : vector<1x256x256xf32> to vector<256x256xf32>
    %cst_76 = arith.constant dense<0.000000e+00> : vector<16x256xf32>
    %96 = tpu.matmul %93, %95, %cst_76 {dimension_numbers = #tpu.dot_dimension_numbers<[1], [0], [0], [1], [0, 0, 1, 1], [], []>} : vector<16x256xf32>, vector<256x256xf32>, vector<16x256xf32> -> vector<16x256xf32>
    %97 = arith.addf %92, %96 : vector<16x256xf32>
    %c2_77 = arith.constant 2 : index
    %c0_78 = arith.constant 0 : index
    %98 = vector.load %arg20[%c2_77, %c0_78] : memref<18x256xf32, #tpu.memory_space<vmem>>, vector<16x256xf32>
    %c2_79 = arith.constant 2 : index
    %c0_80 = arith.constant 0 : index
    %c0_81 = arith.constant 0 : index
    %99 = vector.load %arg10[%c2_79, %c0_80, %c0_81] : memref<3x256x256xf32, #tpu.memory_space<vmem>>, vector<1x256x256xf32>
    %100 = vector.shape_cast %99 : vector<1x256x256xf32> to vector<256x256xf32>
    %cst_82 = arith.constant dense<0.000000e+00> : vector<16x256xf32>
    %101 = tpu.matmul %98, %100, %cst_82 {dimension_numbers = #tpu.dot_dimension_numbers<[1], [0], [0], [1], [0, 0, 1, 1], [], []>} : vector<16x256xf32>, vector<256x256xf32>, vector<16x256xf32> -> vector<16x256xf32>
    %102 = arith.addf %97, %101 : vector<16x256xf32>
    %c0_83 = arith.constant 0 : index
    %c0_84 = arith.constant 0 : index
    %103 = vector.load %arg12[%c0_83, %c0_84] : memref<128x256xf32, #tpu.memory_space<vmem>>, vector<128x256xf32>
    %cst_85 = arith.constant dense<0.000000e+00> : vector<16x256xf32>
    %104 = tpu.matmul %1, %103, %cst_85 {dimension_numbers = #tpu.dot_dimension_numbers<[1], [0], [0], [1], [0, 0, 1, 1], [], []>} : vector<16x128xf32>, vector<128x256xf32>, vector<16x256xf32> -> vector<16x256xf32>
    %c0_86 = arith.constant 0 : index
    %c0_87 = arith.constant 0 : index
    %105 = vector.load %arg13[%c0_86, %c0_87] : memref<1x256xf32, #tpu.memory_space<vmem>>, vector<1x256xf32>
    %106 = vector.broadcast %105 : vector<1x256xf32> to vector<16x256xf32>
    %107 = arith.addf %104, %106 : vector<16x256xf32>
    %108 = arith.addf %102, %107 : vector<16x256xf32>
    %c0_88 = arith.constant 0 : index
    %c0_89 = arith.constant 0 : index
    %c0_90 = arith.constant 0 : index
    %109 = vector.load %arg17[%c0_88, %c0_89, %c0_90] : memref<1x16x256xf32, #tpu.memory_space<vmem>>, vector<1x16x256xf32>
    %110 = vector.shape_cast %109 : vector<1x16x256xf32> to vector<16x256xf32>
    %111 = vector.shape_cast %108 : vector<16x256xf32> to vector<1x16x256xf32>
    tpu.vector_store %arg17[%c0_88, %c0_89, %c0_90], %111 {strides = array<i32>} : memref<1x16x256xf32, #tpu.memory_space<vmem>>, vector<1x16x256xf32>,
    %c0_91 = arith.constant 0 : index
    %c0_92 = arith.constant 0 : index
    %112 = vector.load %arg16[%c0_91, %c0_92] : memref<1x128xf32, #tpu.memory_space<vmem>>, vector<1x128xf32>
    %c0_93 = arith.constant 0 : index
    %c0_94 = arith.constant 0 : index
    %c0_95 = arith.constant 0 : index
    %113 = vector.load %arg14[%c0_93, %c0_94, %c0_95] : memref<3x8x16xf32, #tpu.memory_space<vmem>>, vector<1x8x16xf32>
    %114 = vector.shape_cast %113 : vector<1x8x16xf32> to vector<8x16xf32>
    %cst_96 = arith.constant dense<0.000000e+00> : vector<8x256xf32>
    %115 = tpu.matmul %114, %108, %cst_96 {dimension_numbers = #tpu.dot_dimension_numbers<[1], [0], [0], [1], [0, 0, 1, 1], [], []>} : vector<8x16xf32>, vector<16x256xf32>, vector<8x256xf32> -> vector<8x256xf32>
    %c0_97 = arith.constant 0 : index
    %c0_98 = arith.constant 0 : index
    %c0_99 = arith.constant 0 : index
    %116 = vector.load %arg15[%c0_97, %c0_98, %c0_99] : memref<3x256x128xf32, #tpu.memory_space<vmem>>, vector<1x256x128xf32>
    %117 = vector.shape_cast %116 : vector<1x256x128xf32> to vector<256x128xf32>
    %cst_100 = arith.constant dense<0.000000e+00> : vector<8x128xf32>
    %118 = tpu.matmul %115, %117, %cst_100 {dimension_numbers = #tpu.dot_dimension_numbers<[1], [0], [0], [1], [0, 0, 1, 1], [], []>} : vector<8x256xf32>, vector<256x128xf32>, vector<8x128xf32> -> vector<8x128xf32>
    %119 = vector.broadcast %112 : vector<1x128xf32> to vector<8x128xf32>
    %120 = arith.addf %119, %118 : vector<8x128xf32>
    %c1_101 = arith.constant 1 : index
    %c0_102 = arith.constant 0 : index
    %c0_103 = arith.constant 0 : index
    %121 = vector.load %arg14[%c1_101, %c0_102, %c0_103] : memref<3x8x16xf32, #tpu.memory_space<vmem>>, vector<1x8x16xf32>
    %122 = vector.shape_cast %121 : vector<1x8x16xf32> to vector<8x16xf32>
    %cst_104 = arith.constant dense<0.000000e+00> : vector<8x256xf32>
    %123 = tpu.matmul %122, %108, %cst_104 {dimension_numbers = #tpu.dot_dimension_numbers<[1], [0], [0], [1], [0, 0, 1, 1], [], []>} : vector<8x16xf32>, vector<16x256xf32>, vector<8x256xf32> -> vector<8x256xf32>
    %c1_105 = arith.constant 1 : index
    %c0_106 = arith.constant 0 : index
    %c0_107 = arith.constant 0 : index
    %124 = vector.load %arg15[%c1_105, %c0_106, %c0_107] : memref<3x256x128xf32, #tpu.memory_space<vmem>>, vector<1x256x128xf32>
    %125 = vector.shape_cast %124 : vector<1x256x128xf32> to vector<256x128xf32>
    %cst_108 = arith.constant dense<0.000000e+00> : vector<8x128xf32>
    %126 = tpu.matmul %123, %125, %cst_108 {dimension_numbers = #tpu.dot_dimension_numbers<[1], [0], [0], [1], [0, 0, 1, 1], [], []>} : vector<8x256xf32>, vector<256x128xf32>, vector<8x128xf32> -> vector<8x128xf32>
    %127 = arith.addf %120, %126 : vector<8x128xf32>
    %c2_109 = arith.constant 2 : index
    %c0_110 = arith.constant 0 : index
    %c0_111 = arith.constant 0 : index
    %128 = vector.load %arg14[%c2_109, %c0_110, %c0_111] : memref<3x8x16xf32, #tpu.memory_space<vmem>>, vector<1x8x16xf32>
    %129 = vector.shape_cast %128 : vector<1x8x16xf32> to vector<8x16xf32>
    %cst_112 = arith.constant dense<0.000000e+00> : vector<8x256xf32>
    %130 = tpu.matmul %129, %108, %cst_112 {dimension_numbers = #tpu.dot_dimension_numbers<[1], [0], [0], [1], [0, 0, 1, 1], [], []>} : vector<8x16xf32>, vector<16x256xf32>, vector<8x256xf32> -> vector<8x256xf32>
    %c2_113 = arith.constant 2 : index
    %c0_114 = arith.constant 0 : index
    %c0_115 = arith.constant 0 : index
    %131 = vector.load %arg15[%c2_113, %c0_114, %c0_115] : memref<3x256x128xf32, #tpu.memory_space<vmem>>, vector<1x256x128xf32>
    %132 = vector.shape_cast %131 : vector<1x256x128xf32> to vector<256x128xf32>
    %cst_116 = arith.constant dense<0.000000e+00> : vector<8x128xf32>
    %133 = tpu.matmul %130, %132, %cst_116 {dimension_numbers = #tpu.dot_dimension_numbers<[1], [0], [0], [1], [0, 0, 1, 1], [], []>} : vector<8x256xf32>, vector<256x128xf32>, vector<8x128xf32> -> vector<8x128xf32>
    %134 = arith.addf %127, %133 : vector<8x128xf32>
    %c0_117 = arith.constant 0 : index
    %c0_118 = arith.constant 0 : index
    %c0_119 = arith.constant 0 : index
    %135 = vector.load %arg18[%c0_117, %c0_118, %c0_119] : memref<1x8x128xf32, #tpu.memory_space<vmem>>, vector<1x8x128xf32>
    %136 = vector.shape_cast %135 : vector<1x8x128xf32> to vector<8x128xf32>
    %137 = vector.shape_cast %134 : vector<8x128xf32> to vector<1x8x128xf32>
    tpu.vector_store %arg18[%c0_117, %c0_118, %c0_119], %137 {strides = array<i32>} : memref<1x8x128xf32, #tpu.memory_space<vmem>>, vector<1x8x128xf32>,
    return
  }
  func.func @transform_0(%arg0: i32) -> (i32, i32, i32) {
    %c0_i32 = arith.constant 0 : i32
    %c0_i32_0 = arith.constant 0 : i32
    %c0_i32_1 = arith.constant 0 : i32
    return %arg0, %c0_i32, %c0_i32_0 : i32, i32, i32
  }
  func.func @transform_1(%arg0: i32) -> (i32, i32) {
    %c0_i32 = arith.constant 0 : i32
    %c0_i32_0 = arith.constant 0 : i32
    %c0_i32_1 = arith.constant 0 : i32
    return %c0_i32, %c0_i32_0 : i32, i32
  }
  func.func @transform_2(%arg0: i32) -> (i32, i32) {
    %c0_i32 = arith.constant 0 : i32
    %c0_i32_0 = arith.constant 0 : i32
    %c0_i32_1 = arith.constant 0 : i32
    return %c0_i32, %c0_i32_0 : i32, i32
  }
  func.func @transform_3(%arg0: i32) -> (i32, i32) {
    %c0_i32 = arith.constant 0 : i32
    %c0_i32_0 = arith.constant 0 : i32
    %c0_i32_1 = arith.constant 0 : i32
    return %c0_i32, %c0_i32_0 : i32, i32
  }
  func.func @transform_4(%arg0: i32) -> (i32, i32, i32) {
    %c0_i32 = arith.constant 0 : i32
    %c0_i32_0 = arith.constant 0 : i32
    %c0_i32_1 = arith.constant 0 : i32
    %c0_i32_2 = arith.constant 0 : i32
    return %c0_i32, %c0_i32_0, %c0_i32_1 : i32, i32, i32
  }
  func.func @transform_5(%arg0: i32) -> (i32, i32, i32) {
    %c0_i32 = arith.constant 0 : i32
    %c0_i32_0 = arith.constant 0 : i32
    %c0_i32_1 = arith.constant 0 : i32
    return %arg0, %c0_i32, %c0_i32_0 : i32, i32, i32
  }
  func.func @transform_6(%arg0: i32) -> (i32, i32) {
    %c0_i32 = arith.constant 0 : i32
    %c0_i32_0 = arith.constant 0 : i32
    %c0_i32_1 = arith.constant 0 : i32
    return %c0_i32, %c0_i32_0 : i32, i32
  }
  func.func @transform_7(%arg0: i32) -> (i32, i32) {
    %c0_i32 = arith.constant 0 : i32
    %c0_i32_0 = arith.constant 0 : i32
    %c0_i32_1 = arith.constant 0 : i32
    return %c0_i32, %c0_i32_0 : i32, i32
  }
  func.func @transform_8(%arg0: i32) -> (i32, i32) {
    %c0_i32 = arith.constant 0 : i32
    %c0_i32_0 = arith.constant 0 : i32
    %c0_i32_1 = arith.constant 0 : i32
    return %c0_i32, %c0_i32_0 : i32, i32
  }
  func.func @transform_9(%arg0: i32) -> (i32, i32, i32) {
    %c0_i32 = arith.constant 0 : i32
    %c0_i32_0 = arith.constant 0 : i32
    %c0_i32_1 = arith.constant 0 : i32
    %c0_i32_2 = arith.constant 0 : i32
    return %c0_i32, %c0_i32_0, %c0_i32_1 : i32, i32, i32
  }
  func.func @transform_10(%arg0: i32) -> (i32, i32) {
    %c0_i32 = arith.constant 0 : i32
    %c0_i32_0 = arith.constant 0 : i32
    %c0_i32_1 = arith.constant 0 : i32
    return %c0_i32, %c0_i32_0 : i32, i32
  }
  func.func @transform_11(%arg0: i32) -> (i32, i32) {
    %c0_i32 = arith.constant 0 : i32
    %c0_i32_0 = arith.constant 0 : i32
    %c0_i32_1 = arith.constant 0 : i32
    return %c0_i32, %c0_i32_0 : i32, i32
  }
  func.func @transform_12(%arg0: i32) -> (i32, i32) {
    %c0_i32 = arith.constant 0 : i32
    %c0_i32_0 = arith.constant 0 : i32
    %c0_i32_1 = arith.constant 0 : i32
    return %c0_i32, %c0_i32_0 : i32, i32
  }
  func.func @transform_13(%arg0: i32) -> (i32, i32, i32) {
    %c0_i32 = arith.constant 0 : i32
    %c0_i32_0 = arith.constant 0 : i32
    %c0_i32_1 = arith.constant 0 : i32
    %c0_i32_2 = arith.constant 0 : i32
    return %c0_i32, %c0_i32_0, %c0_i32_1 : i32, i32, i32
  }
  func.func @transform_14(%arg0: i32) -> (i32, i32, i32) {
    %c0_i32 = arith.constant 0 : i32
    %c0_i32_0 = arith.constant 0 : i32
    %c0_i32_1 = arith.constant 0 : i32
    %c0_i32_2 = arith.constant 0 : i32
    return %c0_i32, %c0_i32_0, %c0_i32_1 : i32, i32, i32
  }
  func.func @transform_15(%arg0: i32) -> (i32, i32) {
    %c0_i32 = arith.constant 0 : i32
    %c0_i32_0 = arith.constant 0 : i32
    %c0_i32_1 = arith.constant 0 : i32
    return %c0_i32, %c0_i32_0 : i32, i32
  }
  func.func @transform_16(%arg0: i32) -> (i32, i32, i32) {
    %c0_i32 = arith.constant 0 : i32
    %c0_i32_0 = arith.constant 0 : i32
    %c0_i32_1 = arith.constant 0 : i32
    return %arg0, %c0_i32, %c0_i32_0 : i32, i32, i32
  }
  func.func @transform_17(%arg0: i32) -> (i32, i32, i32) {
    %c0_i32 = arith.constant 0 : i32
    %c0_i32_0 = arith.constant 0 : i32
    %c0_i32_1 = arith.constant 0 : i32
    return %arg0, %c0_i32, %c0_i32_0 : i32, i32, i32
  }
}

</mosaic_0001>

<llo_original>
// kernel: tpu_custom_call.1
$region0: #{tpu_custom_call.1}
  #allocation0 [shape = 'u32[]', space=smem, size = 0x4, offset = 0x4, fixed_abs, tag = 'smem constant byte address 0x4 - core index']
  #allocation1 [shape = 'u32[144,128]{1,0:T(1,128)}', space=vmem, size = 0x12000, scoped, tag = 'internal scratch']
  #allocation2 [shape = 'f32[18,128]{1,0:T(8,128)}', space=vmem, size = 0x3000, scoped, tag = 'scratch operand']
  #allocation3 [shape = 'f32[18,256]{1,0:T(8,128)}', space=vmem, size = 0x6000, scoped, tag = 'scratch operand']
  %s0 = inlined_call_operand.hbm [shape: f32[2,16,128], index: 0, kind: input, shape index: {}]
  %s1 = inlined_call_operand.hbm [shape: f32[128,128], index: 1, kind: input, shape index: {}]
  %s2 = inlined_call_operand.vmem [shape: f32[1,128], index: 2, kind: input, shape index: {}]
  %s3 = inlined_call_operand.hbm [shape: f32[1,128], index: 3, kind: input, shape index: {}]
  %s4 = inlined_call_operand.hbm [shape: f32[3,128,256], index: 4, kind: input, shape index: {}]
  %s5 = inlined_call_operand.vmem [shape: f32[2,1,256], index: 5, kind: input, shape index: {}]
  %s6 = inlined_call_operand.hbm [shape: f32[256,256], index: 6, kind: input, shape index: {}]
  %s7 = inlined_call_operand.vmem [shape: f32[1,256], index: 7, kind: input, shape index: {}]
  %s8 = inlined_call_operand.vmem [shape: f32[1,256], index: 8, kind: input, shape index: {}]
  %s9 = inlined_call_operand.hbm [shape: f32[3,256,256], index: 9, kind: input, shape index: {}]
  %s10 = inlined_call_operand.vmem [shape: f32[1,256], index: 10, kind: input, shape index: {}]
  %s11 = inlined_call_operand.hbm [shape: f32[128,256], index: 11, kind: input, shape index: {}]
  %s12 = inlined_call_operand.vmem [shape: f32[1,256], index: 12, kind: input, shape index: {}]
  %s13 = inlined_call_operand.vmem [shape: f32[3,8,16], index: 13, kind: input, shape index: {}]
  %s14 = inlined_call_operand.hbm [shape: f32[3,256,128], index: 14, kind: input, shape index: {}]
  %s15 = inlined_call_operand.vmem [shape: f32[1,128], index: 15, kind: input, shape index: {}]
  %s16 = inlined_call_operand.hbm [shape: f32[2,16,256], index: 16, kind: output, shape index: {0}]
  %s17 = inlined_call_operand.hbm [shape: f32[2,8,128], index: 17, kind: output, shape index: {1}]
  %18 = xla_tuple %s16, %s17
  %s19 = sld [smem:[#allocation0]]
  $region137: #{tpu_custom_call.1} parent=0
    _
  %s21 = ssub.s32 1, %s19
  %s22 = scalar_select 0, %s21, %s19
  $region1: #{tpu_custom_call.1} parent=0
    #allocation4 [shape = 'u8[16384]{0}', space=vmem, size = 0x4000, scoped, tag = 'input window, operand 0']
    #allocation5 [shape = 's32[2]{0}', space=sflag, size = 0x8, scoped, tag = 'scoped memory for tpu_custom_call.1']
    #allocation6 [shape = 's32[2]{0}', space=sflag, size = 0x8, scoped, tag = 'scoped memory for tpu_custom_call.1']
    #allocation7 [shape = 'u8[65536]{0}', space=vmem, size = 0x10000, scoped, tag = 'input window, operand 1, single buffered']
    #allocation8 [shape = 's32[1]{0}', space=sflag, size = 0x4, scoped, tag = 'scoped memory for tpu_custom_call.1']
    #allocation9 [shape = 'u8[512]{0}', space=vmem, size = 0x400, scoped, tag = 'input window, operand 3, single buffered']
    #allocation10 [shape = 'u8[393216]{0}', space=vmem, size = 0x60000, scoped, tag = 'input window, operand 4, single buffered']
    #allocation11 [shape = 's32[1]{0}', space=sflag, size = 0x4, scoped, tag = 'scoped memory for tpu_custom_call.1']
    #allocation12 [shape = 'u8[262144]{0}', space=vmem, size = 0x40000, scoped, tag = 'input window, operand 6, single buffered']
    #allocation13 [shape = 'u8[786432]{0}', space=vmem, size = 0xc0000, scoped, tag = 'input window, operand 9, single buffered']
    #allocation14 [shape = 's32[1]{0}', space=sflag, size = 0x4, scoped, tag = 'scoped memory for tpu_custom_call.1']
    #allocation15 [shape = 'u8[131072]{0}', space=vmem, size = 0x20000, scoped, tag = 'input window, operand 11, single buffered']
    #allocation16 [shape = 'u8[393216]{0}', space=vmem, size = 0x60000, scoped, tag = 'input window, operand 14, single buffered']
    #allocation17 [shape = 's32[1]{0}', space=sflag, size = 0x4, scoped, tag = 'scoped memory for tpu_custom_call.1']
    #allocation18 [shape = 'u8[32768]{0}', space=vmem, size = 0x8000, scoped, tag = 'output window, operand 0']
    #allocation19 [shape = 'u8[8192]{0}', space=vmem, size = 0x2000, scoped, tag = 'output window, operand 1']
    #allocation20 [shape = 's32[2]{0}', space=sflag, size = 0x8, scoped, tag = 'scoped memory for tpu_custom_call.1']
    %23 = vsyncpa [#allocation5], 0
    %s24 = scalar_lea.sflag [#allocation5], 1
    %25 = vsyncpa %s24, 0
    %26 = vsyncpa [#allocation8], 0
    %27 = vsyncpa [#allocation11], 0
    %28 = vsyncpa [#allocation14], 0
    %29 = vsyncpa [#allocation17], 0
    %30 = vsyncpa [#allocation6], 0
    %s31 = scalar_lea.sflag [#allocation6], 1
    %32 = vsyncpa %s31, 0
    %33 = vsyncpa [#allocation20], 0
    %s34 = scalar_lea.sflag [#allocation20], 1
    %35 = vsyncpa %s34, 0
    loop: start=0, step=1, limit=4
    $region2: #{tpu_custom_call.1} parent=1 // loop_pre_header
      _
    $region3: #{tpu_custom_call.1} parent=1 // loop_header
      %s37 = sphi 0, %s41
      %p38 = scmp.ge.s32.totalorder %s37, 4
      %s47 = sphi 0, %s49
      %s50 = sphi 0, %s47
      %s51 = sphi 0, %s50
      %s67 = sphi 0, %s51
      %s71 = sphi 0, %s71
      %s73 = sphi 0, %s71
      %s74 = sphi 0, %s73
      %s88 = sphi 0, %s74
      %s92 = sphi 0, %s92
      %s94 = sphi 0, %s92
      %s95 = sphi 0, %s94
      %s109 = sphi 0, %s95
      %s113 = sphi 0, %s113
      %s115 = sphi 0, %s113
      %s116 = sphi 0, %s115
      %s130 = sphi 0, %s116
      %s134 = sphi 0, %s134
      %s136 = sphi 0, %s134
      %s137 = sphi 0, %s136
      %s151 = sphi 0, %s137
      %s157 = sphi 0, %s159
      %s160 = sphi 0, %s157
      %s161 = sphi 0, %s160
      %s177 = sphi 0, %s161
      %s181 = sphi 0, %s181
      %s183 = sphi 0, %s181
      %s184 = sphi 0, %s183
      %s198 = sphi 0, %s184
      %s202 = sphi 0, %s202
      %s204 = sphi 0, %s202
      %s205 = sphi 0, %s204
      %s219 = sphi 0, %s205
      %s223 = sphi 0, %s223
      %s225 = sphi 0, %s223
      %s226 = sphi 0, %s225
      %s240 = sphi 0, %s226
      %s244 = sphi 0, %s244
      %s246 = sphi 0, %s244
      %s247 = sphi 0, %s246
      %s261 = sphi 0, %s247
      %s265 = sphi 0, %s265
      %s267 = sphi 0, %s265
      %s268 = sphi 0, %s267
      %s282 = sphi 0, %s268
      %s286 = sphi 0, %s286
      %s288 = sphi 0, %s286
      %s289 = sphi 0, %s288
      %s303 = sphi 0, %s289
      %s307 = sphi 0, %s307
      %s309 = sphi 0, %s307
      %s310 = sphi 0, %s309
      %s324 = sphi 0, %s310
      %s328 = sphi 0, %s328
      %s330 = sphi 0, %s328
      %s331 = sphi 0, %s330
      %s345 = sphi 0, %s331
      %s349 = sphi 0, %s349
      %s351 = sphi 0, %s349
      %s352 = sphi 0, %s351
      %s366 = sphi 0, %s352
      %s370 = sphi 0, %s370
      %s372 = sphi 0, %s370
      %s373 = sphi 0, %s372
      %s387 = sphi 0, %s373
      %s393 = sphi 0, %s395
      %s396 = sphi 0, %s393
      %s397 = sphi 0, %s396
      %s413 = sphi 0, %s397
      %s419 = sphi 0, %s421
      %s422 = sphi 0, %s419
      %s423 = sphi 0, %s422
      %s439 = sphi 0, %s423
    $region4: #{tpu_custom_call.1} parent=1 // loop_header_branch
      %40 = sbr.rel (%p38) target = $region8
    $region5: #{tpu_custom_call.1} parent=1 // loop_body
      %s42 = ssub.s32 %s37, 1
      %s43 = ssub.s32 %s37, 2
      %s44 = sadd.s32 %s37, 1
      %s45 = ssub.s32 %s37, %s44
      %p46 = scmp.eq.s32.totalorder %s45, 0
      %s48 = sadd.s32 %s47, 1
      %s49 = scalar_select %p46, %s47, %s48
      %p52 = pneg %p46
      %p53 = scmp.eq.s32.totalorder %s37, 1
      %p54 = por %p52, %p53
      %p55 = scmp.ne.s32.totalorder %s47, %s50
      %p56 = scmp.eq.s32.totalorder %s37, 0
      %p57 = por %p55, %p56
      %p58 = scmp.ne.s32.totalorder %s47, %s50
      %p59 = scmp.eq.s32.totalorder %s42, 1
      %p60 = por %p58, %p59
      %p61 = scmp.ne.s32.totalorder %s50, %s51
      %p62 = scmp.eq.s32.totalorder %s42, 0
      %p63 = por %p61, %p62
      %p64 = scmp.ne.s32.totalorder %s50, %s51
      %p65 = scmp.eq.s32.totalorder %s43, 1
      %p66 = por %p64, %p65
      %p68 = scmp.ne.s32.totalorder %s51, %s67
      %p69 = scmp.eq.s32.totalorder %s43, 0
      %p70 = por %p68, %p69
      %s72 = sadd.s32 %s71, 1
      %p75 = scmp.eq.s32.totalorder %s37, 1
      %p76 = scmp.ne.s32.totalorder %s71, %s73
      %p77 = scmp.eq.s32.totalorder %s37, 0
      %p78 = por %p76, %p77
      %p79 = scmp.ne.s32.totalorder %s71, %s73
      %p80 = scmp.eq.s32.totalorder %s42, 1
      %p81 = por %p79, %p80
      %p82 = scmp.ne.s32.totalorder %s73, %s74
      %p83 = scmp.eq.s32.totalorder %s42, 0
      %p84 = por %p82, %p83
      %p85 = scmp.ne.s32.totalorder %s73, %s74
      %p86 = scmp.eq.s32.totalorder %s43, 1
      %p87 = por %p85, %p86
      %p89 = scmp.ne.s32.totalorder %s74, %s88
      %p90 = scmp.eq.s32.totalorder %s43, 0
      %p91 = por %p89, %p90
      %s93 = sadd.s32 %s92, 1
      %p96 = scmp.eq.s32.totalorder %s37, 1
      %p97 = scmp.ne.s32.totalorder %s92, %s94
      %p98 = scmp.eq.s32.totalorder %s37, 0
      %p99 = por %p97, %p98
      %p100 = scmp.ne.s32.totalorder %s92, %s94
      %p101 = scmp.eq.s32.totalorder %s42, 1
      %p102 = por %p100, %p101
      %p103 = scmp.ne.s32.totalorder %s94, %s95
      %p104 = scmp.eq.s32.totalorder %s42, 0
      %p105 = por %p103, %p104
      %p106 = scmp.ne.s32.totalorder %s94, %s95
      %p107 = scmp.eq.s32.totalorder %s43, 1
      %p108 = por %p106, %p107
      %p110 = scmp.ne.s32.totalorder %s95, %s109
      %p111 = scmp.eq.s32.totalorder %s43, 0
      %p112 = por %p110, %p111
      %s114 = sadd.s32 %s113, 1
      %p117 = scmp.eq.s32.totalorder %s37, 1
      %p118 = scmp.ne.s32.totalorder %s113, %s115
      %p119 = scmp.eq.s32.totalorder %s37, 0
      %p120 = por %p118, %p119
      %p121 = scmp.ne.s32.totalorder %s113, %s115
      %p122 = scmp.eq.s32.totalorder %s42, 1
      %p123 = por %p121, %p122
      %p124 = scmp.ne.s32.totalorder %s115, %s116
      %p125 = scmp.eq.s32.totalorder %s42, 0
      %p126 = por %p124, %p125
      %p127 = scmp.ne.s32.totalorder %s115, %s116
      %p128 = scmp.eq.s32.totalorder %s43, 1
      %p129 = por %p127, %p128
      %p131 = scmp.ne.s32.totalorder %s116, %s130
      %p132 = scmp.eq.s32.totalorder %s43, 0
      %p133 = por %p131, %p132
      %s135 = sadd.s32 %s134, 1
      %p138 = scmp.eq.s32.totalorder %s37, 1
      %p139 = scmp.ne.s32.totalorder %s134, %s136
      %p140 = scmp.eq.s32.totalorder %s37, 0
      %p141 = por %p139, %p140
      %p142 = scmp.ne.s32.totalorder %s134, %s136
      %p143 = scmp.eq.s32.totalorder %s42, 1
      %p144 = por %p142, %p143
      %p145 = scmp.ne.s32.totalorder %s136, %s137
      %p146 = scmp.eq.s32.totalorder %s42, 0
      %p147 = por %p145, %p146
      %p148 = scmp.ne.s32.totalorder %s136, %s137
      %p149 = scmp.eq.s32.totalorder %s43, 1
      %p150 = por %p148, %p149
      %p152 = scmp.ne.s32.totalorder %s137, %s151
      %p153 = scmp.eq.s32.totalorder %s43, 0
      %p154 = por %p152, %p153
      %s155 = ssub.s32 %s37, %s44
      %p156 = scmp.eq.s32.totalorder %s155, 0
      %s158 = sadd.s32 %s157, 1
      %s159 = scalar_select %p156, %s157, %s158
      %p162 = pneg %p156
      %p163 = scmp.eq.s32.totalorder %s37, 1
      %p164 = por %p162, %p163
      %p165 = scmp.ne.s32.totalorder %s157, %s160
      %p166 = scmp.eq.s32.totalorder %s37, 0
      %p167 = por %p165, %p166
      %p168 = scmp.ne.s32.totalorder %s157, %s160
      %p169 = scmp.eq.s32.totalorder %s42, 1
      %p170 = por %p168, %p169
      %p171 = scmp.ne.s32.totalorder %s160, %s161
      %p172 = scmp.eq.s32.totalorder %s42, 0
      %p173 = por %p171, %p172
      %p174 = scmp.ne.s32.totalorder %s160, %s161
      %p175 = scmp.eq.s32.totalorder %s43, 1
      %p176 = por %p174, %p175
      %p178 = scmp.ne.s32.totalorder %s161, %s177
      %p179 = scmp.eq.s32.totalorder %s43, 0
      %p180 = por %p178, %p179
      %s182 = sadd.s32 %s181, 1
      %p185 = scmp.eq.s32.totalorder %s37, 1
      %p186 = scmp.ne.s32.totalorder %s181, %s183
      %p187 = scmp.eq.s32.totalorder %s37, 0
      %p188 = por %p186, %p187
      %p189 = scmp.ne.s32.totalorder %s181, %s183
      %p190 = scmp.eq.s32.totalorder %s42, 1
      %p191 = por %p189, %p190
      %p192 = scmp.ne.s32.totalorder %s183, %s184
      %p193 = scmp.eq.s32.totalorder %s42, 0
      %p194 = por %p192, %p193
      %p195 = scmp.ne.s32.totalorder %s183, %s184
      %p196 = scmp.eq.s32.totalorder %s43, 1
      %p197 = por %p195, %p196
      %p199 = scmp.ne.s32.totalorder %s184, %s198
      %p200 = scmp.eq.s32.totalorder %s43, 0
      %p201 = por %p199, %p200
      %s203 = sadd.s32 %s202, 1
      %p206 = scmp.eq.s32.totalorder %s37, 1
      %p207 = scmp.ne.s32.totalorder %s202, %s204
      %p208 = scmp.eq.s32.totalorder %s37, 0
      %p209 = por %p207, %p208
      %p210 = scmp.ne.s32.totalorder %s202, %s204
      %p211 = scmp.eq.s32.totalorder %s42, 1
      %p212 = por %p210, %p211
      %p213 = scmp.ne.s32.totalorder %s204, %s205
      %p214 = scmp.eq.s32.totalorder %s42, 0
      %p215 = por %p213, %p214
      %p216 = scmp.ne.s32.totalorder %s204, %s205
      %p217 = scmp.eq.s32.totalorder %s43, 1
      %p218 = por %p216, %p217
      %p220 = scmp.ne.s32.totalorder %s205, %s219
      %p221 = scmp.eq.s32.totalorder %s43, 0
      %p222 = por %p220, %p221
      %s224 = sadd.s32 %s223, 1
      %p227 = scmp.eq.s32.totalorder %s37, 1
      %p228 = scmp.ne.s32.totalorder %s223, %s225
      %p229 = scmp.eq.s32.totalorder %s37, 0
      %p230 = por %p228, %p229
      %p231 = scmp.ne.s32.totalorder %s223, %s225
      %p232 = scmp.eq.s32.totalorder %s42, 1
      %p233 = por %p231, %p232
      %p234 = scmp.ne.s32.totalorder %s225, %s226
      %p235 = scmp.eq.s32.totalorder %s42, 0
      %p236 = por %p234, %p235
      %p237 = scmp.ne.s32.totalorder %s225, %s226
      %p238 = scmp.eq.s32.totalorder %s43, 1
      %p239 = por %p237, %p238
      %p241 = scmp.ne.s32.totalorder %s226, %s240
      %p242 = scmp.eq.s32.totalorder %s43, 0
      %p243 = por %p241, %p242
      %s245 = sadd.s32 %s244, 1
      %p248 = scmp.eq.s32.totalorder %s37, 1
      %p249 = scmp.ne.s32.totalorder %s244, %s246
      %p250 = scmp.eq.s32.totalorder %s37, 0
      %p251 = por %p249, %p250
      %p252 = scmp.ne.s32.totalorder %s244, %s246
      %p253 = scmp.eq.s32.totalorder %s42, 1
      %p254 = por %p252, %p253
      %p255 = scmp.ne.s32.totalorder %s246, %s247
      %p256 = scmp.eq.s32.totalorder %s42, 0
      %p257 = por %p255, %p256
      %p258 = scmp.ne.s32.totalorder %s246, %s247
      %p259 = scmp.eq.s32.totalorder %s43, 1
      %p260 = por %p258, %p259
      %p262 = scmp.ne.s32.totalorder %s247, %s261
      %p263 = scmp.eq.s32.totalorder %s43, 0
      %p264 = por %p262, %p263
      %s266 = sadd.s32 %s265, 1
      %p269 = scmp.eq.s32.totalorder %s37, 1
      %p270 = scmp.ne.s32.totalorder %s265, %s267
      %p271 = scmp.eq.s32.totalorder %s37, 0
      %p272 = por %p270, %p271
      %p273 = scmp.ne.s32.totalorder %s265, %s267
      %p274 = scmp.eq.s32.totalorder %s42, 1
      %p275 = por %p273, %p274
      %p276 = scmp.ne.s32.totalorder %s267, %s268
      %p277 = scmp.eq.s32.totalorder %s42, 0
      %p278 = por %p276, %p277
      %p279 = scmp.ne.s32.totalorder %s267, %s268
      %p280 = scmp.eq.s32.totalorder %s43, 1
      %p281 = por %p279, %p280
      %p283 = scmp.ne.s32.totalorder %s268, %s282
      %p284 = scmp.eq.s32.totalorder %s43, 0
      %p285 = por %p283, %p284
      %s287 = sadd.s32 %s286, 1
      %p290 = scmp.eq.s32.totalorder %s37, 1
      %p291 = scmp.ne.s32.totalorder %s286, %s288
      %p292 = scmp.eq.s32.totalorder %s37, 0
      %p293 = por %p291, %p292
      %p294 = scmp.ne.s32.totalorder %s286, %s288
      %p295 = scmp.eq.s32.totalorder %s42, 1
      %p296 = por %p294, %p295
      %p297 = scmp.ne.s32.totalorder %s288, %s289
      %p298 = scmp.eq.s32.totalorder %s42, 0
      %p299 = por %p297, %p298
      %p300 = scmp.ne.s32.totalorder %s288, %s289
      %p301 = scmp.eq.s32.totalorder %s43, 1
      %p302 = por %p300, %p301
      %p304 = scmp.ne.s32.totalorder %s289, %s303
      %p305 = scmp.eq.s32.totalorder %s43, 0
      %p306 = por %p304, %p305
      %s308 = sadd.s32 %s307, 1
      %p311 = scmp.eq.s32.totalorder %s37, 1
      %p312 = scmp.ne.s32.totalorder %s307, %s309
      %p313 = scmp.eq.s32.totalorder %s37, 0
      %p314 = por %p312, %p313
      %p315 = scmp.ne.s32.totalorder %s307, %s309
      %p316 = scmp.eq.s32.totalorder %s42, 1
      %p317 = por %p315, %p316
      %p318 = scmp.ne.s32.totalorder %s309, %s310
      %p319 = scmp.eq.s32.totalorder %s42, 0
      %p320 = por %p318, %p319
      %p321 = scmp.ne.s32.totalorder %s309, %s310
      %p322 = scmp.eq.s32.totalorder %s43, 1
      %p323 = por %p321, %p322
      %p325 = scmp.ne.s32.totalorder %s310, %s324
      %p326 = scmp.eq.s32.totalorder %s43, 0
      %p327 = por %p325, %p326
      %s329 = sadd.s32 %s328, 1
      %p332 = scmp.eq.s32.totalorder %s37, 1
      %p333 = scmp.ne.s32.totalorder %s328, %s330
      %p334 = scmp.eq.s32.totalorder %s37, 0
      %p335 = por %p333, %p334
      %p336 = scmp.ne.s32.totalorder %s328, %s330
      %p337 = scmp.eq.s32.totalorder %s42, 1
      %p338 = por %p336, %p337
      %p339 = scmp.ne.s32.totalorder %s330, %s331
      %p340 = scmp.eq.s32.totalorder %s42, 0
      %p341 = por %p339, %p340
      %p342 = scmp.ne.s32.totalorder %s330, %s331
      %p343 = scmp.eq.s32.totalorder %s43, 1
      %p344 = por %p342, %p343
      %p346 = scmp.ne.s32.totalorder %s331, %s345
      %p347 = scmp.eq.s32.totalorder %s43, 0
      %p348 = por %p346, %p347
      %s350 = sadd.s32 %s349, 1
      %p353 = scmp.eq.s32.totalorder %s37, 1
      %p354 = scmp.ne.s32.totalorder %s349, %s351
      %p355 = scmp.eq.s32.totalorder %s37, 0
      %p356 = por %p354, %p355
      %p357 = scmp.ne.s32.totalorder %s349, %s351
      %p358 = scmp.eq.s32.totalorder %s42, 1
      %p359 = por %p357, %p358
      %p360 = scmp.ne.s32.totalorder %s351, %s352
      %p361 = scmp.eq.s32.totalorder %s42, 0
      %p362 = por %p360, %p361
      %p363 = scmp.ne.s32.totalorder %s351, %s352
      %p364 = scmp.eq.s32.totalorder %s43, 1
      %p365 = por %p363, %p364
      %p367 = scmp.ne.s32.totalorder %s352, %s366
      %p368 = scmp.eq.s32.totalorder %s43, 0
      %p369 = por %p367, %p368
      %s371 = sadd.s32 %s370, 1
      %p374 = scmp.eq.s32.totalorder %s37, 1
      %p375 = scmp.ne.s32.totalorder %s370, %s372
      %p376 = scmp.eq.s32.totalorder %s37, 0
      %p377 = por %p375, %p376
      %p378 = scmp.ne.s32.totalorder %s370, %s372
      %p379 = scmp.eq.s32.totalorder %s42, 1
      %p380 = por %p378, %p379
      %p381 = scmp.ne.s32.totalorder %s372, %s373
      %p382 = scmp.eq.s32.totalorder %s42, 0
      %p383 = por %p381, %p382
      %p384 = scmp.ne.s32.totalorder %s372, %s373
      %p385 = scmp.eq.s32.totalorder %s43, 1
      %p386 = por %p384, %p385
      %p388 = scmp.ne.s32.totalorder %s373, %s387
      %p389 = scmp.eq.s32.totalorder %s43, 0
      %p390 = por %p388, %p389
      %s391 = ssub.s32 %s37, %s44
      %p392 = scmp.eq.s32.totalorder %s391, 0
      %s394 = sadd.s32 %s393, 1
      %s395 = scalar_select %p392, %s393, %s394
      %p398 = pneg %p392
      %p399 = scmp.eq.s32.totalorder %s37, 1
      %p400 = por %p398, %p399
      %p401 = scmp.ne.s32.totalorder %s393, %s396
      %p402 = scmp.eq.s32.totalorder %s37, 0
      %p403 = por %p401, %p402
      %p404 = scmp.ne.s32.totalorder %s393, %s396
      %p405 = scmp.eq.s32.totalorder %s42, 1
      %p406 = por %p404, %p405
      %p407 = scmp.ne.s32.totalorder %s396, %s397
      %p408 = scmp.eq.s32.totalorder %s42, 0
      %p409 = por %p407, %p408
      %p410 = scmp.ne.s32.totalorder %s396, %s397
      %p411 = scmp.eq.s32.totalorder %s43, 1
      %p412 = por %p410, %p411
      %p414 = scmp.ne.s32.totalorder %s397, %s413
      %p415 = scmp.eq.s32.totalorder %s43, 0
      %p416 = por %p414, %p415
      %s417 = ssub.s32 %s37, %s44
      %p418 = scmp.eq.s32.totalorder %s417, 0
      %s420 = sadd.s32 %s419, 1
      %s421 = scalar_select %p418, %s419, %s420
      %p424 = pneg %p418
      %p425 = scmp.eq.s32.totalorder %s37, 1
      %p426 = por %p424, %p425
      %p427 = scmp.ne.s32.totalorder %s419, %s422
      %p428 = scmp.eq.s32.totalorder %s37, 0
      %p429 = por %p427, %p428
      %p430 = scmp.ne.s32.totalorder %s419, %s422
      %p431 = scmp.eq.s32.totalorder %s42, 1
      %p432 = por %p430, %p431
      %p433 = scmp.ne.s32.totalorder %s422, %s423
      %p434 = scmp.eq.s32.totalorder %s42, 0
      %p435 = por %p433, %p434
      %p436 = scmp.ne.s32.totalorder %s422, %s423
      %p437 = scmp.eq.s32.totalorder %s43, 1
      %p438 = por %p436, %p437
      %p440 = scmp.ne.s32.totalorder %s423, %s439
      %p441 = scmp.eq.s32.totalorder %s43, 0
      %p442 = por %p440, %p441
      %p443 = scmp.le.s32.totalorder 1, %s37
      %p444 = scmp.lt.s32.totalorder %s37, 3
      %p445 = pnand %p443, %p444
      %p446 = pneg %p445
      // Predicated region
      $region9: #{tpu_custom_call.1} parent=5 // pred_check
        _
      $region10: #{tpu_custom_call.1} parent=5 // pred_check_branch
        %448 = sbr.rel (%p445) target = $region12
      $region11: #{tpu_custom_call.1} parent=5 // pred_region
        %s449 = ssub.s32 %s37, 1
        // Predicated region
        $region13: #{tpu_custom_call.1} parent=11 // pred_check
          %p450 = pneg %p84
        $region14: #{tpu_custom_call.1} parent=11 // pred_check_branch
          %452 = sbr.rel (%p450) target = $region16
        $region15: #{tpu_custom_call.1} parent=11 // pred_region
          %s454 = ssub.s32 2048, 2048
          %455 = vsyncadd [#allocation8], %s454
          %s456 = sshll.u32 [#allocation7], 4
          %s457 = int_to_ptr.vmem [resolvable:$true] %s456
          %462 = dma.hbm_to_vmem [thread:$0]  %s1, 2048, %s457, [#allocation8], 128, 128, 8
        $region16: #{tpu_custom_call.1} parent=11 // pred_fallthru
          _
        // Predicated region
        $region17: #{tpu_custom_call.1} parent=11 // pred_check
          %p463 = pneg %p105
        $region18: #{tpu_custom_call.1} parent=11 // pred_check_branch
          %465 = sbr.rel (%p463) target = $region20
        $region19: #{tpu_custom_call.1} parent=11 // pred_region
          _
        $region20: #{tpu_custom_call.1} parent=11 // pred_fallthru
          _
        // Predicated region
        $region21: #{tpu_custom_call.1} parent=11 // pred_check
          %p466 = pneg %p126
        $region22: #{tpu_custom_call.1} parent=11 // pred_check_branch
          %468 = sbr.rel (%p466) target = $region24
        $region23: #{tpu_custom_call.1} parent=11 // pred_region
          %s470 = ssub.s32 16, 16
          %471 = vsyncadd [#allocation8], %s470
          %s473 = sshll.u32 [#allocation9], 4
          %s474 = int_to_ptr.vmem [resolvable:$true] %s473
          %476 = dma.hbm_to_vmem [thread:$0]  %s3, 16, %s474, [#allocation8]
        $region24: #{tpu_custom_call.1} parent=11 // pred_fallthru
          _
        // Predicated region
        $region25: #{tpu_custom_call.1} parent=11 // pred_check
          %p477 = pneg %p147
        $region26: #{tpu_custom_call.1} parent=11 // pred_check_branch
          %479 = sbr.rel (%p477) target = $region28
        $region27: #{tpu_custom_call.1} parent=11 // pred_region
          %s481 = ssub.s32 12288, 12288
          %482 = vsyncadd [#allocation11], %s481
          %s483 = sshll.u32 [#allocation10], 4
          %s484 = int_to_ptr.vmem [resolvable:$true] %s483
          %489 = dma.hbm_to_vmem [thread:$0]  %s4, 12288, %s484, [#allocation11], 256, 256, 16
        $region28: #{tpu_custom_call.1} parent=11 // pred_fallthru
          _
        // Predicated region
        $region29: #{tpu_custom_call.1} parent=11 // pred_check
          %p490 = pneg %p194
        $region30: #{tpu_custom_call.1} parent=11 // pred_check_branch
          %492 = sbr.rel (%p490) target = $region32
        $region31: #{tpu_custom_call.1} parent=11 // pred_region
          %s494 = ssub.s32 8192, 8192
          %495 = vsyncadd [#allocation11], %s494
          %s496 = sshll.u32 [#allocation12], 4
          %s497 = int_to_ptr.vmem [resolvable:$true] %s496
          %502 = dma.hbm_to_vmem [thread:$0]  %s6, 8192, %s497, [#allocation11], 256, 256, 16
        $region32: #{tpu_custom_call.1} parent=11 // pred_fallthru
          _
        // Predicated region
        $region33: #{tpu_custom_call.1} parent=11 // pred_check
          %p503 = pneg %p215
        $region34: #{tpu_custom_call.1} parent=11 // pred_check_branch
          %505 = sbr.rel (%p503) target = $region36
        $region35: #{tpu_custom_call.1} parent=11 // pred_region
          _
        $region36: #{tpu_custom_call.1} parent=11 // pred_fallthru
          _
        // Predicated region
        $region37: #{tpu_custom_call.1} parent=11 // pred_check
          %p506 = pneg %p236
        $region38: #{tpu_custom_call.1} parent=11 // pred_check_branch
          %508 = sbr.rel (%p506) target = $region40
        $region39: #{tpu_custom_call.1} parent=11 // pred_region
          _
        $region40: #{tpu_custom_call.1} parent=11 // pred_fallthru
          _
        // Predicated region
        $region41: #{tpu_custom_call.1} parent=11 // pred_check
          %p509 = pneg %p257
        $region42: #{tpu_custom_call.1} parent=11 // pred_check_branch
          %511 = sbr.rel (%p509) target = $region44
        $region43: #{tpu_custom_call.1} parent=11 // pred_region
          %s513 = ssub.s32 24576, 24576
          %514 = vsyncadd [#allocation14], %s513
          %s515 = sshll.u32 [#allocation13], 4
          %s516 = int_to_ptr.vmem [resolvable:$true] %s515
          %521 = dma.hbm_to_vmem [thread:$0]  %s9, 24576, %s516, [#allocation14], 256, 256, 16
        $region44: #{tpu_custom_call.1} parent=11 // pred_fallthru
          _
        // Predicated region
        $region45: #{tpu_custom_call.1} parent=11 // pred_check
          %p522 = pneg %p278
        $region46: #{tpu_custom_call.1} parent=11 // pred_check_branch
          %524 = sbr.rel (%p522) target = $region48
        $region47: #{tpu_custom_call.1} parent=11 // pred_region
          _
        $region48: #{tpu_custom_call.1} parent=11 // pred_fallthru
          _
        // Predicated region
        $region49: #{tpu_custom_call.1} parent=11 // pred_check
          %p525 = pneg %p299
        $region50: #{tpu_custom_call.1} parent=11 // pred_check_branch
          %527 = sbr.rel (%p525) target = $region52
        $region51: #{tpu_custom_call.1} parent=11 // pred_region
          %s529 = ssub.s32 4096, 4096
          %530 = vsyncadd [#allocation14], %s529
          %s531 = sshll.u32 [#allocation15], 4
          %s532 = int_to_ptr.vmem [resolvable:$true] %s531
          %537 = dma.hbm_to_vmem [thread:$0]  %s11, 4096, %s532, [#allocation14], 256, 256, 16
        $region52: #{tpu_custom_call.1} parent=11 // pred_fallthru
          _
        // Predicated region
        $region53: #{tpu_custom_call.1} parent=11 // pred_check
          %p538 = pneg %p320
        $region54: #{tpu_custom_call.1} parent=11 // pred_check_branch
          %540 = sbr.rel (%p538) target = $region56
        $region55: #{tpu_custom_call.1} parent=11 // pred_region
          _
        $region56: #{tpu_custom_call.1} parent=11 // pred_fallthru
          _
        // Predicated region
        $region57: #{tpu_custom_call.1} parent=11 // pred_check
          %p541 = pneg %p341
        $region58: #{tpu_custom_call.1} parent=11 // pred_check_branch
          %543 = sbr.rel (%p541) target = $region60
        $region59: #{tpu_custom_call.1} parent=11 // pred_region
          _
        $region60: #{tpu_custom_call.1} parent=11 // pred_fallthru
          _
        // Predicated region
        $region61: #{tpu_custom_call.1} parent=11 // pred_check
          %p544 = pneg %p362
        $region62: #{tpu_custom_call.1} parent=11 // pred_check_branch
          %546 = sbr.rel (%p544) target = $region64
        $region63: #{tpu_custom_call.1} parent=11 // pred_region
          %s548 = ssub.s32 12288, 12288
          %549 = vsyncadd [#allocation17], %s548
          %s550 = sshll.u32 [#allocation16], 4
          %s551 = int_to_ptr.vmem [resolvable:$true] %s550
          %556 = dma.hbm_to_vmem [thread:$0]  %s14, 12288, %s551, [#allocation17], 128, 128, 8
        $region64: #{tpu_custom_call.1} parent=11 // pred_fallthru
          _
        // Predicated region
        $region65: #{tpu_custom_call.1} parent=11 // pred_check
          %p557 = pneg %p383
        $region66: #{tpu_custom_call.1} parent=11 // pred_check_branch
          %559 = sbr.rel (%p557) target = $region68
        $region67: #{tpu_custom_call.1} parent=11 // pred_region
          _
        $region68: #{tpu_custom_call.1} parent=11 // pred_fallthru
          _
      $region12: #{tpu_custom_call.1} parent=5 // pred_fallthru
        _
      %p560 = scmp.lt.s32.totalorder %s37, 2
      // Predicated region
      $region69: #{tpu_custom_call.1} parent=5 // pred_check
        %p561 = pneg %p560
      $region70: #{tpu_custom_call.1} parent=5 // pred_check_branch
        %563 = sbr.rel (%p561) target = $region72
      $region71: #{tpu_custom_call.1} parent=5 // pred_region
        // Predicated region
        $region73: #{tpu_custom_call.1} parent=71 // pred_check
          %p564 = pneg %p57
        $region74: #{tpu_custom_call.1} parent=71 // pred_check_branch
          %566 = sbr.rel (%p564) target = $region76
        $region75: #{tpu_custom_call.1} parent=71 // pred_region
          %s567 = sand.u32 %s47, 1
          %s568 = scalar_lea.sflag [#allocation5], %s567
          %s569 = sand.u32 %s47, 1
          %s570 = smul.addr %s569, 16
          %s571 = scalar_lea.vmem [#allocation4], %s570
          %s573 = ssub.s32 256, 256
          %574 = vsyncadd %s568, %s573
          %s575 = smul.addr %s37, 2
          %s576 = smul.addr %s575, 128
          %s577 = scalar_lea.hbm %s0, %s576
          %s578 = sshll.u32 %s571, 4
          %s579 = int_to_ptr.vmem [resolvable:$true] %s578
          %584 = dma.hbm_to_vmem [thread:$0]  %s577, 256, %s579, %s568, 128, 128, 8
        $region76: #{tpu_custom_call.1} parent=71 // pred_fallthru
          _
        // Predicated region
        $region77: #{tpu_custom_call.1} parent=71 // pred_check
          %p585 = pneg %p167
        $region78: #{tpu_custom_call.1} parent=71 // pred_check_branch
          %587 = sbr.rel (%p585) target = $region80
        $region79: #{tpu_custom_call.1} parent=71 // pred_region
          %p588 = scmp.lt.s32.totalorder %s37, 1
          %s589 = scalar_select %p588, %s37, 1
          %s590 = smul.addr %s589, 2
          %s591 = scalar_lea.vmem %s5, %s590
        $region80: #{tpu_custom_call.1} parent=71 // pred_fallthru
          _
      $region72: #{tpu_custom_call.1} parent=5 // pred_fallthru
        _
      %p592 = scmp.le.s32.totalorder 1, %s37
      %p593 = scmp.lt.s32.totalorder %s37, 3
      %p594 = pnand %p592, %p593
      %p595 = pneg %p594
      // Predicated region
      $region81: #{tpu_custom_call.1} parent=5 // pred_check
        _
      $region82: #{tpu_custom_call.1} parent=5 // pred_check_branch
        %597 = sbr.rel (%p594) target = $region84
      $region83: #{tpu_custom_call.1} parent=5 // pred_region
        %s598 = ssub.s32 %s37, 1
        %s599 = sand.u32 %s50, 1
        %s600 = scalar_lea.sflag [#allocation5], %s599
        %s601 = sand.u32 %s50, 1
        %s602 = smul.addr %s601, 16
        %s603 = scalar_lea.vmem [#allocation4], %s602
        // Predicated region
        $region85: #{tpu_custom_call.1} parent=83 // pred_check
          %p604 = pneg %p63
        $region86: #{tpu_custom_call.1} parent=83 // pred_check_branch
          %606 = sbr.rel (%p604) target = $region88
        $region87: #{tpu_custom_call.1} parent=83 // pred_region
          %607 = dma.done %s600, 256
        $region88: #{tpu_custom_call.1} parent=83 // pred_fallthru
          _
        // Predicated region
        $region89: #{tpu_custom_call.1} parent=83 // pred_check
          %p608 = pneg %p84
        $region90: #{tpu_custom_call.1} parent=83 // pred_check_branch
          %610 = sbr.rel (%p608) target = $region92
        $region91: #{tpu_custom_call.1} parent=83 // pred_region
          %611 = dma.done [#allocation8], 2048
        $region92: #{tpu_custom_call.1} parent=83 // pred_fallthru
          _
        // Predicated region
        $region93: #{tpu_custom_call.1} parent=83 // pred_check
          %p612 = pneg %p126
        $region94: #{tpu_custom_call.1} parent=83 // pred_check_branch
          %614 = sbr.rel (%p612) target = $region96
        $region95: #{tpu_custom_call.1} parent=83 // pred_region
          %615 = dma.done [#allocation8], 16
        $region96: #{tpu_custom_call.1} parent=83 // pred_fallthru
          _
        // Predicated region
        $region97: #{tpu_custom_call.1} parent=83 // pred_check
          %p616 = pneg %p147
        $region98: #{tpu_custom_call.1} parent=83 // pred_check_branch
          %618 = sbr.rel (%p616) target = $region100
        $region99: #{tpu_custom_call.1} parent=83 // pred_region
          %619 = dma.done [#allocation11], 12288
        $region100: #{tpu_custom_call.1} parent=83 // pred_fallthru
          _
        // Predicated region
        $region101: #{tpu_custom_call.1} parent=83 // pred_check
          %p620 = pneg %p194
        $region102: #{tpu_custom_call.1} parent=83 // pred_check_branch
          %622 = sbr.rel (%p620) target = $region104
        $region103: #{tpu_custom_call.1} parent=83 // pred_region
          %623 = dma.done [#allocation11], 8192
        $region104: #{tpu_custom_call.1} parent=83 // pred_fallthru
          _
        // Predicated region
        $region105: #{tpu_custom_call.1} parent=83 // pred_check
          %p624 = pneg %p257
        $region106: #{tpu_custom_call.1} parent=83 // pred_check_branch
          %626 = sbr.rel (%p624) target = $region108
        $region107: #{tpu_custom_call.1} parent=83 // pred_region
          %627 = dma.done [#allocation14], 24576
        $region108: #{tpu_custom_call.1} parent=83 // pred_fallthru
          _
        // Predicated region
        $region109: #{tpu_custom_call.1} parent=83 // pred_check
          %p628 = pneg %p299
        $region110: #{tpu_custom_call.1} parent=83 // pred_check_branch
          %630 = sbr.rel (%p628) target = $region112
        $region111: #{tpu_custom_call.1} parent=83 // pred_region
          %631 = dma.done [#allocation14], 4096
        $region112: #{tpu_custom_call.1} parent=83 // pred_fallthru
          _
        // Predicated region
        $region113: #{tpu_custom_call.1} parent=83 // pred_check
          %p632 = pneg %p362
        $region114: #{tpu_custom_call.1} parent=83 // pred_check_branch
          %634 = sbr.rel (%p632) target = $region116
        $region115: #{tpu_custom_call.1} parent=83 // pred_region
          %635 = dma.done [#allocation17], 12288
        $region116: #{tpu_custom_call.1} parent=83 // pred_fallthru
          _
        %s636 = sand.u32 %s50, 1
        %s637 = scalar_lea.sflag [#allocation5], %s636
        %s638 = sand.u32 %s50, 1
        %s639 = smul.addr %s638, 16
        %s640 = scalar_lea.vmem [#allocation4], %s639
        %p641 = pneg %p63
        %p642 = pneg %p60
        %p643 = pneg %p84
        %p644 = pneg %p81
        %p645 = pneg %p105
        %p646 = pneg %p102
        %p647 = pneg %p126
        %p648 = pneg %p123
        %p649 = pneg %p147
        %p650 = pneg %p144
        %p651 = scmp.lt.s32.totalorder %s42, 1
        %s652 = scalar_select %p651, %s42, 1
        %s653 = smul.addr %s652, 2
        %s654 = scalar_lea.vmem %s5, %s653
        %p655 = pneg %p173
        %p656 = pneg %p170
        %p657 = pneg %p194
        %p658 = pneg %p191
        %p659 = pneg %p215
        %p660 = pneg %p212
        %p661 = pneg %p236
        %p662 = pneg %p233
        %p663 = pneg %p257
        %p664 = pneg %p254
        %p665 = pneg %p278
        %p666 = pneg %p275
        %p667 = pneg %p299
        %p668 = pneg %p296
        %p669 = pneg %p320
        %p670 = pneg %p317
        %p671 = pneg %p341
        %p672 = pneg %p338
        %p673 = pneg %p362
        %p674 = pneg %p359
        %p675 = pneg %p383
        %p676 = pneg %p380
        %p677 = pneg %p409
        %p678 = pneg %p406
        %s679 = sand.u32 %s396, 1
        %s680 = scalar_lea.sflag [#allocation6], %s679
        %s681 = sand.u32 %s396, 1
        %s682 = smul.addr %s681, 32
        %s683 = scalar_lea.vmem [#allocation18], %s682
        %p684 = pneg %p435
        %p685 = pneg %p432
        %s686 = sand.u32 %s422, 1
        %s687 = scalar_lea.sflag [#allocation20], %s686
        %s688 = sand.u32 %s422, 1
        %s689 = smul.addr %s688, 8
        %s690 = scalar_lea.vmem [#allocation19], %s689
        %p691 = scmp.lt.s32.totalorder %s42, 1
        %s692 = scalar_select %p691, %s42, 1
        %s693 = smul.addr %s692, 2
        %s694 = scalar_lea.vmem %s5, %s693
        %v695 = vld [vmem:[%s603] sm:$0xff]
        %v696 = vld [vmem:[%s603 + $0x8] sm:$0xff]
        %v697 = vadd.f32 %v695, %v696
        %v698 = vrot.slane %v697, 4
        %v699 = vadd.f32 %v697, %v698
        %v700 = vrot.slane %v699, 2
        %v701 = vadd.f32 %v699, %v700
        %v702 = vrot.slane %v701, 1
        %v703 = vadd.f32 %v701, %v702
        %v704 = vld [vmem:[#allocation7] sm:$0xff]
        %v705 = vld [vmem:[#allocation7 + $0x8] sm:$0xff]
        %v706 = vld [vmem:[#allocation7 + $0x10] sm:$0xff]
        %v707 = vld [vmem:[#allocation7 + $0x18] sm:$0xff]
        %v708 = vld [vmem:[#allocation7 + $0x20] sm:$0xff]
        %v709 = vld [vmem:[#allocation7 + $0x28] sm:$0xff]
        %v710 = vld [vmem:[#allocation7 + $0x30] sm:$0xff]
        %v711 = vld [vmem:[#allocation7 + $0x38] sm:$0xff]
        %v712 = vld [vmem:[#allocation7 + $0x40] sm:$0xff]
        %v713 = vld [vmem:[#allocation7 + $0x48] sm:$0xff]
        %v714 = vld [vmem:[#allocation7 + $0x50] sm:$0xff]
        %v715 = vld [vmem:[#allocation7 + $0x58] sm:$0xff]
        %v716 = vld [vmem:[#allocation7 + $0x60] sm:$0xff]
        %v717 = vld [vmem:[#allocation7 + $0x68] sm:$0xff]
        %v718 = vld [vmem:[#allocation7 + $0x70] sm:$0xff]
        %v719 = vld [vmem:[#allocation7 + $0x78] sm:$0xff]
        %720 = vmatprep.subr.mxu0 0.0
        %721 = vmatpush1.msra.mxu0 %v704
        %722 = vmatprep.subr.mxu0 0.0
        %723 = vmatpush1.msra.mxu0 %v705
        %724 = vmatprep.subr.mxu0 0.0
        %725 = vmatpush1.msra.mxu0 %v706
        %726 = vmatprep.subr.mxu0 0.0
        %727 = vmatpush1.msra.mxu0 %v707
        %728 = vmatprep.subr.mxu0 0.0
        %729 = vmatpush1.msra.mxu0 %v708
        %730 = vmatprep.subr.mxu0 0.0
        %731 = vmatpush1.msra.mxu0 %v709
        %732 = vmatprep.subr.mxu0 0.0
        %733 = vmatpush1.msra.mxu0 %v710
        %734 = vmatprep.subr.mxu0 0.0
        %735 = vmatpush1.msra.mxu0 %v711
        %736 = vmatprep.subr.mxu0 0.0
        %737 = vmatpush1.msra.mxu0 %v712
        %738 = vmatprep.subr.mxu0 0.0
        %739 = vmatpush1.msra.mxu0 %v713
        %740 = vmatprep.subr.mxu0 0.0
        %741 = vmatpush1.msra.mxu0 %v714
        %742 = vmatprep.subr.mxu0 0.0
        %743 = vmatpush1.msra.mxu0 %v715
        %744 = vmatprep.subr.mxu0 0.0
        %745 = vmatpush1.msra.mxu0 %v716
        %746 = vmatprep.subr.mxu0 0.0
        %747 = vmatpush1.msra.mxu0 %v717
        %748 = vmatprep.subr.mxu0 0.0
        %749 = vmatpush1.msra.mxu0 %v718
        %750 = vmatprep.subr.mxu0 0.0
        %751 = vmatpush1.msra.mxu0 %v719
        %752 = vmatprep.subr.mxu0 0.0
        %753 = vmatpush1.msra.mxu0 0.0
        %754 = vmatprep.subr.mxu0 0.0
        %755 = vmatpush1.msra.mxu0 0.0
        %756 = vmatprep.subr.mxu0 0.0
        %757 = vmatpush1.msra.mxu0 0.0
        %758 = vmatprep.subr.mxu0 0.0
        %759 = vmatpush1.msra.mxu0 0.0
        %760 = vmatprep.subr.mxu0 0.0
        %761 = vmatpush1.msra.mxu0 0.0
        %762 = vmatprep.subr.mxu0 0.0
        %763 = vmatpush1.msra.mxu0 0.0
        %764 = vmatprep.subr.mxu0 0.0
        %765 = vmatpush1.msra.mxu0 0.0
        %766 = vmatprep.subr.mxu0 0.0
        %767 = vmatpush1.msra.mxu0 0.0
        %768 = vmatprep.subr.mxu0 0.0
        %769 = vmatpush1.msra.mxu0 0.0
        %770 = vmatprep.subr.mxu0 0.0
        %771 = vmatpush1.msra.mxu0 0.0
        %772 = vmatprep.subr.mxu0 0.0
        %773 = vmatpush1.msra.mxu0 0.0
        %774 = vmatprep.subr.mxu0 0.0
        %775 = vmatpush1.msra.mxu0 0.0
        %776 = vmatprep.subr.mxu0 0.0
        %777 = vmatpush1.msra.mxu0 0.0
        %778 = vmatprep.subr.mxu0 0.0
        %779 = vmatpush1.msra.mxu0 0.0
        %780 = vmatprep.subr.mxu0 0.0
        %781 = vmatpush1.msra.mxu0 0.0
        %782 = vmatprep.subr.mxu0 0.0
        %783 = vmatpush1.msra.mxu0 0.0
        %784 = vmatprep.mubr.f32.mxu0 0.0
        %785 = vmatmul.mubr.f32.gmra.mrb[0].mxu0 %v703
        %v786 = vpop.f32.mrb[0].mxu0
        %v787 = vadd.f32 0.0, %v786
        %v788 = vpop.f32.mrb[0].mxu0
        %789 = vdwg.mxu0
        %v790 = vlaneseq
        %v791 = vshrl.u32 %v790, 7
        %v792 = vsub.s32 0, %v791
        %v793 = vrot.slane %v787, %v792
        %v794 = vsub.f32 %v695, %v793
        %v795 = vsub.f32 %v696, %v793
        %v796 = vmul.f32 %v794, %v794
        %v797 = vmul.f32 %v795, %v795
        %v798 = vadd.f32 %v796, %v797
        %v799 = vrot.slane %v798, 4
        %v800 = vadd.f32 %v798, %v799
        %v801 = vrot.slane %v800, 2
        %v802 = vadd.f32 %v800, %v801
        %v803 = vrot.slane %v802, 1
        %v804 = vadd.f32 %v802, %v803
        %805 = vmatprep.subr.mxu0 0.0
        %806 = vmatpush1.msra.mxu0 %v704
        %807 = vmatprep.subr.mxu0 0.0
        %808 = vmatpush1.msra.mxu0 %v705
        %809 = vmatprep.subr.mxu0 0.0
        %810 = vmatpush1.msra.mxu0 %v706
        %811 = vmatprep.subr.mxu0 0.0
        %812 = vmatpush1.msra.mxu0 %v707
        %813 = vmatprep.subr.mxu0 0.0
        %814 = vmatpush1.msra.mxu0 %v708
        %815 = vmatprep.subr.mxu0 0.0
        %816 = vmatpush1.msra.mxu0 %v709
        %817 = vmatprep.subr.mxu0 0.0
        %818 = vmatpush1.msra.mxu0 %v710
        %819 = vmatprep.subr.mxu0 0.0
        %820 = vmatpush1.msra.mxu0 %v711
        %821 = vmatprep.subr.mxu0 0.0
        %822 = vmatpush1.msra.mxu0 %v712
        %823 = vmatprep.subr.mxu0 0.0
        %824 = vmatpush1.msra.mxu0 %v713
        %825 = vmatprep.subr.mxu0 0.0
        %826 = vmatpush1.msra.mxu0 %v714
        %827 = vmatprep.subr.mxu0 0.0
        %828 = vmatpush1.msra.mxu0 %v715
        %829 = vmatprep.subr.mxu0 0.0
        %830 = vmatpush1.msra.mxu0 %v716
        %831 = vmatprep.subr.mxu0 0.0
        %832 = vmatpush1.msra.mxu0 %v717
        %833 = vmatprep.subr.mxu0 0.0
        %834 = vmatpush1.msra.mxu0 %v718
        %835 = vmatprep.subr.mxu0 0.0
        %836 = vmatpush1.msra.mxu0 %v719
        %837 = vmatprep.subr.mxu0 0.0
        %838 = vmatpush1.msra.mxu0 0.0
        %839 = vmatprep.subr.mxu0 0.0
        %840 = vmatpush1.msra.mxu0 0.0
        %841 = vmatprep.subr.mxu0 0.0
        %842 = vmatpush1.msra.mxu0 0.0
        %843 = vmatprep.subr.mxu0 0.0
        %844 = vmatpush1.msra.mxu0 0.0
        %845 = vmatprep.subr.mxu0 0.0
        %846 = vmatpush1.msra.mxu0 0.0
        %847 = vmatprep.subr.mxu0 0.0
        %848 = vmatpush1.msra.mxu0 0.0
        %849 = vmatprep.subr.mxu0 0.0
        %850 = vmatpush1.msra.mxu0 0.0
        %851 = vmatprep.subr.mxu0 0.0
        %852 = vmatpush1.msra.mxu0 0.0
        %853 = vmatprep.subr.mxu0 0.0
        %854 = vmatpush1.msra.mxu0 0.0
        %855 = vmatprep.subr.mxu0 0.0
        %856 = vmatpush1.msra.mxu0 0.0
        %857 = vmatprep.subr.mxu0 0.0
        %858 = vmatpush1.msra.mxu0 0.0
        %859 = vmatprep.subr.mxu0 0.0
        %860 = vmatpush1.msra.mxu0 0.0
        %861 = vmatprep.subr.mxu0 0.0
        %862 = vmatpush1.msra.mxu0 0.0
        %863 = vmatprep.subr.mxu0 0.0
        %864 = vmatpush1.msra.mxu0 0.0
        %865 = vmatprep.subr.mxu0 0.0
        %866 = vmatpush1.msra.mxu0 0.0
        %867 = vmatprep.subr.mxu0 0.0
        %868 = vmatpush1.msra.mxu0 0.0
        %869 = vmatprep.mubr.f32.mxu0 0.0
        %870 = vmatmul.mubr.f32.gmra.mrb[0].mxu0 %v804
        %v871 = vpop.f32.mrb[0].mxu0
        %v872 = vadd.f32 1e-06, %v871
        %v873 = vpop.f32.mrb[0].mxu0
        %874 = vdwg.mxu0
        %v875 = vrsqrt.pop %v872
        %v876 = vlaneseq
        %v877 = vshrl.u32 %v876, 7
        %v878 = vsub.s32 0, %v877
        %v879 = vrot.slane %v875, %v878
        %v880 = vmul.f32 %v794, %v879
        %v881 = vmul.f32 %v795, %v879
        %v882 = vld [vmem:[%s2] sm:$0x1]
        %v884 = vlaneseq
        %v885 = vshrl.u32 %v884, 7
        %v886 = vsub.s32 0, %v885
        %v887 = vrot.slane %v882, %v886
        %v889 = vmul.f32 %v880, %v887
        %v890 = vmul.f32 %v881, %v887
        %v891 = vld [vmem:[#allocation9] sm:$0x1]
        %v893 = vlaneseq
        %v894 = vshrl.u32 %v893, 7
        %v895 = vsub.s32 0, %v894
        %v896 = vrot.slane %v891, %v895
        %v898 = vadd.f32 %v889, %v896
        %v899 = vadd.f32 %v890, %v896
        %v900 = vxor.u32 %v898, 2147483648
        %v901 = vxor.u32 %v899, 2147483648
        %v902 = vmul.f32 %v900, 1.442695
        %v903 = vpow.pop %v902
        %v904 = vmul.f32 %v901, 1.442695
        %v905 = vpow.pop %v904
        %v906 = vadd.f32 %v903, 1.0
        %v907 = vadd.f32 %v905, 1.0
        %v908 = vrcp.pop %v906
        %v909 = vmul.f32 1.0, %v908
        %v910 = vrcp.pop %v907
        %v911 = vmul.f32 1.0, %v910
        %v912 = vmul.f32 %v898, %v909
        %v913 = vmul.f32 %v899, %v911
        %v914 = vld [vmem:[%s694] sm:$0x3]
        %915 = vst [vmem:[#allocation2] sm:$0x1] 0.0
        %916 = vst [vmem:[#allocation2 + $0x11] sm:$0x1] 0.0
        %917 = vst [vmem:[#allocation2 + $0x1] sm:$0xff] %v912
        %918 = vst [vmem:[#allocation2 + $0x9] sm:$0xff] %v913
        %v919 = vld [vmem:[#allocation2] sm:$0xff]
        %v920 = vld [vmem:[#allocation2 + $0x8] sm:$0xff]
        %v921 = vld [vmem:[#allocation10] sm:$0xff]
        %v922 = vld [vmem:[#allocation10 + $0x8] sm:$0xff]
        %v923 = vld [vmem:[#allocation10 + $0x10] sm:$0xff]
        %v924 = vld [vmem:[#allocation10 + $0x18] sm:$0xff]
        %v925 = vld [vmem:[#allocation10 + $0x20] sm:$0xff]
        %v926 = vld [vmem:[#allocation10 + $0x28] sm:$0xff]
        %v927 = vld [vmem:[#allocation10 + $0x30] sm:$0xff]
        %v928 = vld [vmem:[#allocation10 + $0x38] sm:$0xff]
        %v929 = vld [vmem:[#allocation10 + $0x40] sm:$0xff]
        %v930 = vld [vmem:[#allocation10 + $0x48] sm:$0xff]
        %v931 = vld [vmem:[#allocation10 + $0x50] sm:$0xff]
        %v932 = vld [vmem:[#allocation10 + $0x58] sm:$0xff]
        %v933 = vld [vmem:[#allocation10 + $0x60] sm:$0xff]
        %v934 = vld [vmem:[#allocation10 + $0x68] sm:$0xff]
        %v935 = vld [vmem:[#allocation10 + $0x70] sm:$0xff]
        %v936 = vld [vmem:[#allocation10 + $0x78] sm:$0xff]
        %v937 = vld [vmem:[#allocation10 + $0x80] sm:$0xff]
        %v938 = vld [vmem:[#allocation10 + $0x88] sm:$0xff]
        %v939 = vld [vmem:[#allocation10 + $0x90] sm:$0xff]
        %v940 = vld [vmem:[#allocation10 + $0x98] sm:$0xff]
        %v941 = vld [vmem:[#allocation10 + $0xa0] sm:$0xff]
        %v942 = vld [vmem:[#allocation10 + $0xa8] sm:$0xff]
        %v943 = vld [vmem:[#allocation10 + $0xb0] sm:$0xff]
        %v944 = vld [vmem:[#allocation10 + $0xb8] sm:$0xff]
        %v945 = vld [vmem:[#allocation10 + $0xc0] sm:$0xff]
        %v946 = vld [vmem:[#allocation10 + $0xc8] sm:$0xff]
        %v947 = vld [vmem:[#allocation10 + $0xd0] sm:$0xff]
        %v948 = vld [vmem:[#allocation10 + $0xd8] sm:$0xff]
        %v949 = vld [vmem:[#allocation10 + $0xe0] sm:$0xff]
        %v950 = vld [vmem:[#allocation10 + $0xe8] sm:$0xff]
        %v951 = vld [vmem:[#allocation10 + $0xf0] sm:$0xff]
        %v952 = vld [vmem:[#allocation10 + $0xf8] sm:$0xff]
        %953 = vmatprep.subr.mxu0 %v922
        %954 = vmatpush1.msra.mxu0 %v921
        %955 = vmatprep.subr.mxu0 %v924
        %956 = vmatpush1.msra.mxu0 %v923
        %957 = vmatprep.subr.mxu0 %v926
        %958 = vmatpush1.msra.mxu0 %v925
        %959 = vmatprep.subr.mxu0 %v928
        %960 = vmatpush1.msra.mxu0 %v927
        %961 = vmatprep.subr.mxu0 %v930
        %962 = vmatpush1.msra.mxu0 %v929
        %963 = vmatprep.subr.mxu0 %v932
        %964 = vmatpush1.msra.mxu0 %v931
        %965 = vmatprep.subr.mxu0 %v934
        %966 = vmatpush1.msra.mxu0 %v933
        %967 = vmatprep.subr.mxu0 %v936
        %968 = vmatpush1.msra.mxu0 %v935
        %969 = vmatprep.subr.mxu0 %v938
        %970 = vmatpush1.msra.mxu0 %v937
        %971 = vmatprep.subr.mxu0 %v940
        %972 = vmatpush1.msra.mxu0 %v939
        %973 = vmatprep.subr.mxu0 %v942
        %974 = vmatpush1.msra.mxu0 %v941
        %975 = vmatprep.subr.mxu0 %v944
        %976 = vmatpush1.msra.mxu0 %v943
        %977 = vmatprep.subr.mxu0 %v946
        %978 = vmatpush1.msra.mxu0 %v945
        %979 = vmatprep.subr.mxu0 %v948
        %980 = vmatpush1.msra.mxu0 %v947
        %981 = vmatprep.subr.mxu0 %v950
        %982 = vmatpush1.msra.mxu0 %v949
        %983 = vmatprep.subr.mxu0 %v952
        %984 = vmatpush1.msra.mxu0 %v951
        %985 = vmatprep.subr.mxu0 0.0
        %986 = vmatpush1.msra.mxu0 0.0
        %987 = vmatprep.subr.mxu0 0.0
        %988 = vmatpush1.msra.mxu0 0.0
        %989 = vmatprep.subr.mxu0 0.0
        %990 = vmatpush1.msra.mxu0 0.0
        %991 = vmatprep.subr.mxu0 0.0
        %992 = vmatpush1.msra.mxu0 0.0
        %993 = vmatprep.subr.mxu0 0.0
        %994 = vmatpush1.msra.mxu0 0.0
        %995 = vmatprep.subr.mxu0 0.0
        %996 = vmatpush1.msra.mxu0 0.0
        %997 = vmatprep.subr.mxu0 0.0
        %998 = vmatpush1.msra.mxu0 0.0
        %999 = vmatprep.subr.mxu0 0.0
        %1000 = vmatpush1.msra.mxu0 0.0
        %1001 = vmatprep.subr.mxu0 0.0
        %1002 = vmatpush1.msra.mxu0 0.0
        %1003 = vmatprep.subr.mxu0 0.0
        %1004 = vmatpush1.msra.mxu0 0.0
        %1005 = vmatprep.subr.mxu0 0.0
        %1006 = vmatpush1.msra.mxu0 0.0
        %1007 = vmatprep.subr.mxu0 0.0
        %1008 = vmatpush1.msra.mxu0 0.0
        %1009 = vmatprep.subr.mxu0 0.0
        %1010 = vmatpush1.msra.mxu0 0.0
        %1011 = vmatprep.subr.mxu0 0.0
        %1012 = vmatpush1.msra.mxu0 0.0
        %1013 = vmatprep.subr.mxu0 0.0
        %1014 = vmatpush1.msra.mxu0 0.0
        %1015 = vmatprep.subr.mxu0 0.0
        %1016 = vmatpush1.msra.mxu0 0.0
        %1017 = vmatprep.mubr.f32.mxu0 0.0
        %1018 = vmatmul.mubr.f32.gmra.mrb[0].mxu0 %v919
        %v1019 = vpop.f32.mrb[0].mxu0
        %v1020 = vadd.f32 0.0, %v1019
        %v1021 = vpop.f32.mrb[0].mxu0
        %v1022 = vadd.f32 0.0, %v1021
        %1023 = vmatprep.mubr.f32.mxu0 0.0
        %1024 = vmatmul.mubr.f32.gmra.mrb[0].mxu0 %v920
        %v1025 = vpop.f32.mrb[0].mxu0
        %v1026 = vadd.f32 0.0, %v1025
        %v1027 = vpop.f32.mrb[0].mxu0
        %v1028 = vadd.f32 0.0, %v1027
        %1029 = vdwg.mxu0
        %v1031 = vlaneseq
        %v1032 = vshrl.u32 %v1031, 7
        %v1033 = vsub.s32 0, %v1032
        %v1034 = vrot.slane %v914, %v1033
        %v1035 = vlaneseq
        %v1036 = vshrl.u32 %v1035, 7
        %v1037 = vsub.s32 1, %v1036
        %v1038 = vrot.slane %v914, %v1037
        %v1041 = vadd.f32 %v1034, %v1020
        %v1042 = vadd.f32 %v1038, %v1022
        %v1043 = vadd.f32 %v1034, %v1026
        %v1044 = vadd.f32 %v1038, %v1028
        %v1045 = vld [vmem:[#allocation2 + $0x1] sm:$0xff]
        %v1046 = vld [vmem:[#allocation2 + $0x9] sm:$0xff]
        %s1047 = scalar_lea.vmem [#allocation10], 256
        %v1048 = vld [vmem:[%s1047] sm:$0xff]
        %v1049 = vld [vmem:[%s1047 + $0x8] sm:$0xff]
        %v1050 = vld [vmem:[%s1047 + $0x10] sm:$0xff]
        %v1051 = vld [vmem:[%s1047 + $0x18] sm:$0xff]
        %v1052 = vld [vmem:[%s1047 + $0x20] sm:$0xff]
        %v1053 = vld [vmem:[%s1047 + $0x28] sm:$0xff]
        %v1054 = vld [vmem:[%s1047 + $0x30] sm:$0xff]
        %v1055 = vld [vmem:[%s1047 + $0x38] sm:$0xff]
        %v1056 = vld [vmem:[%s1047 + $0x40] sm:$0xff]
        %v1057 = vld [vmem:[%s1047 + $0x48] sm:$0xff]
        %v1058 = vld [vmem:[%s1047 + $0x50] sm:$0xff]
        %v1059 = vld [vmem:[%s1047 + $0x58] sm:$0xff]
        %v1060 = vld [vmem:[%s1047 + $0x60] sm:$0xff]
        %v1061 = vld [vmem:[%s1047 + $0x68] sm:$0xff]
        %v1062 = vld [vmem:[%s1047 + $0x70] sm:$0xff]
        %v1063 = vld [vmem:[%s1047 + $0x78] sm:$0xff]
        %v1064 = vld [vmem:[%s1047 + $0x80] sm:$0xff]
        %v1065 = vld [vmem:[%s1047 + $0x88] sm:$0xff]
        %v1066 = vld [vmem:[%s1047 + $0x90] sm:$0xff]
        %v1067 = vld [vmem:[%s1047 + $0x98] sm:$0xff]
        %v1068 = vld [vmem:[%s1047 + $0xa0] sm:$0xff]
        %v1069 = vld [vmem:[%s1047 + $0xa8] sm:$0xff]
        %v1070 = vld [vmem:[%s1047 + $0xb0] sm:$0xff]
        %v1071 = vld [vmem:[%s1047 + $0xb8] sm:$0xff]
        %v1072 = vld [vmem:[%s1047 + $0xc0] sm:$0xff]
        %v1073 = vld [vmem:[%s1047 + $0xc8] sm:$0xff]
        %v1074 = vld [vmem:[%s1047 + $0xd0] sm:$0xff]
        %v1075 = vld [vmem:[%s1047 + $0xd8] sm:$0xff]
        %v1076 = vld [vmem:[%s1047 + $0xe0] sm:$0xff]
        %v1077 = vld [vmem:[%s1047 + $0xe8] sm:$0xff]
        %v1078 = vld [vmem:[%s1047 + $0xf0] sm:$0xff]
        %v1079 = vld [vmem:[%s1047 + $0xf8] sm:$0xff]
        %1080 = vmatprep.subr.mxu0 %v1049
        %1081 = vmatpush1.msra.mxu0 %v1048
        %1082 = vmatprep.subr.mxu0 %v1051
        %1083 = vmatpush1.msra.mxu0 %v1050
        %1084 = vmatprep.subr.mxu0 %v1053
        %1085 = vmatpush1.msra.mxu0 %v1052
        %1086 = vmatprep.subr.mxu0 %v1055
        %1087 = vmatpush1.msra.mxu0 %v1054
        %1088 = vmatprep.subr.mxu0 %v1057
        %1089 = vmatpush1.msra.mxu0 %v1056
        %1090 = vmatprep.subr.mxu0 %v1059
        %1091 = vmatpush1.msra.mxu0 %v1058
        %1092 = vmatprep.subr.mxu0 %v1061
        %1093 = vmatpush1.msra.mxu0 %v1060
        %1094 = vmatprep.subr.mxu0 %v1063
        %1095 = vmatpush1.msra.mxu0 %v1062
        %1096 = vmatprep.subr.mxu0 %v1065
        %1097 = vmatpush1.msra.mxu0 %v1064
        %1098 = vmatprep.subr.mxu0 %v1067
        %1099 = vmatpush1.msra.mxu0 %v1066
        %1100 = vmatprep.subr.mxu0 %v1069
        %1101 = vmatpush1.msra.mxu0 %v1068
        %1102 = vmatprep.subr.mxu0 %v1071
        %1103 = vmatpush1.msra.mxu0 %v1070
        %1104 = vmatprep.subr.mxu0 %v1073
        %1105 = vmatpush1.msra.mxu0 %v1072
        %1106 = vmatprep.subr.mxu0 %v1075
        %1107 = vmatpush1.msra.mxu0 %v1074
        %1108 = vmatprep.subr.mxu0 %v1077
        %1109 = vmatpush1.msra.mxu0 %v1076
        %1110 = vmatprep.subr.mxu0 %v1079
        %1111 = vmatpush1.msra.mxu0 %v1078
        %1112 = vmatprep.subr.mxu0 0.0
        %1113 = vmatpush1.msra.mxu0 0.0
        %1114 = vmatprep.subr.mxu0 0.0
        %1115 = vmatpush1.msra.mxu0 0.0
        %1116 = vmatprep.subr.mxu0 0.0
        %1117 = vmatpush1.msra.mxu0 0.0
        %1118 = vmatprep.subr.mxu0 0.0
        %1119 = vmatpush1.msra.mxu0 0.0
        %1120 = vmatprep.subr.mxu0 0.0
        %1121 = vmatpush1.msra.mxu0 0.0
        %1122 = vmatprep.subr.mxu0 0.0
        %1123 = vmatpush1.msra.mxu0 0.0
        %1124 = vmatprep.subr.mxu0 0.0
        %1125 = vmatpush1.msra.mxu0 0.0
        %1126 = vmatprep.subr.mxu0 0.0
        %1127 = vmatpush1.msra.mxu0 0.0
        %1128 = vmatprep.subr.mxu0 0.0
        %1129 = vmatpush1.msra.mxu0 0.0
        %1130 = vmatprep.subr.mxu0 0.0
        %1131 = vmatpush1.msra.mxu0 0.0
        %1132 = vmatprep.subr.mxu0 0.0
        %1133 = vmatpush1.msra.mxu0 0.0
        %1134 = vmatprep.subr.mxu0 0.0
        %1135 = vmatpush1.msra.mxu0 0.0
        %1136 = vmatprep.subr.mxu0 0.0
        %1137 = vmatpush1.msra.mxu0 0.0
        %1138 = vmatprep.subr.mxu0 0.0
        %1139 = vmatpush1.msra.mxu0 0.0
        %1140 = vmatprep.subr.mxu0 0.0
        %1141 = vmatpush1.msra.mxu0 0.0
        %1142 = vmatprep.subr.mxu0 0.0
        %1143 = vmatpush1.msra.mxu0 0.0
        %1144 = vmatprep.mubr.f32.mxu0 0.0
        %1145 = vmatmul.mubr.f32.gmra.mrb[0].mxu0 %v1045
        %v1146 = vpop.f32.mrb[0].mxu0
        %v1147 = vadd.f32 0.0, %v1146
        %v1148 = vpop.f32.mrb[0].mxu0
        %v1149 = vadd.f32 0.0, %v1148
        %1150 = vmatprep.mubr.f32.mxu0 0.0
        %1151 = vmatmul.mubr.f32.gmra.mrb[0].mxu0 %v1046
        %v1152 = vpop.f32.mrb[0].mxu0
        %v1153 = vadd.f32 0.0, %v1152
        %v1154 = vpop.f32.mrb[0].mxu0
        %v1155 = vadd.f32 0.0, %v1154
        %1156 = vdwg.mxu0
        %v1157 = vadd.f32 %v1041, %v1147
        %v1158 = vadd.f32 %v1042, %v1149
        %v1159 = vadd.f32 %v1043, %v1153
        %v1160 = vadd.f32 %v1044, %v1155
        %v1161 = vld [vmem:[#allocation2 + $0x2] sm:$0xff]
        %v1162 = vld [vmem:[#allocation2 + $0xa] sm:$0xff]
        %s1163 = scalar_lea.vmem [#allocation10], 512
        %v1164 = vld [vmem:[%s1163] sm:$0xff]
        %v1165 = vld [vmem:[%s1163 + $0x8] sm:$0xff]
        %v1166 = vld [vmem:[%s1163 + $0x10] sm:$0xff]
        %v1167 = vld [vmem:[%s1163 + $0x18] sm:$0xff]
        %v1168 = vld [vmem:[%s1163 + $0x20] sm:$0xff]
        %v1169 = vld [vmem:[%s1163 + $0x28] sm:$0xff]
        %v1170 = vld [vmem:[%s1163 + $0x30] sm:$0xff]
        %v1171 = vld [vmem:[%s1163 + $0x38] sm:$0xff]
        %v1172 = vld [vmem:[%s1163 + $0x40] sm:$0xff]
        %v1173 = vld [vmem:[%s1163 + $0x48] sm:$0xff]
        %v1174 = vld [vmem:[%s1163 + $0x50] sm:$0xff]
        %v1175 = vld [vmem:[%s1163 + $0x58] sm:$0xff]
        %v1176 = vld [vmem:[%s1163 + $0x60] sm:$0xff]
        %v1177 = vld [vmem:[%s1163 + $0x68] sm:$0xff]
        %v1178 = vld [vmem:[%s1163 + $0x70] sm:$0xff]
        %v1179 = vld [vmem:[%s1163 + $0x78] sm:$0xff]
        %v1180 = vld [vmem:[%s1163 + $0x80] sm:$0xff]
        %v1181 = vld [vmem:[%s1163 + $0x88] sm:$0xff]
        %v1182 = vld [vmem:[%s1163 + $0x90] sm:$0xff]
        %v1183 = vld [vmem:[%s1163 + $0x98] sm:$0xff]
        %v1184 = vld [vmem:[%s1163 + $0xa0] sm:$0xff]
        %v1185 = vld [vmem:[%s1163 + $0xa8] sm:$0xff]
        %v1186 = vld [vmem:[%s1163 + $0xb0] sm:$0xff]
        %v1187 = vld [vmem:[%s1163 + $0xb8] sm:$0xff]
        %v1188 = vld [vmem:[%s1163 + $0xc0] sm:$0xff]
        %v1189 = vld [vmem:[%s1163 + $0xc8] sm:$0xff]
        %v1190 = vld [vmem:[%s1163 + $0xd0] sm:$0xff]
        %v1191 = vld [vmem:[%s1163 + $0xd8] sm:$0xff]
        %v1192 = vld [vmem:[%s1163 + $0xe0] sm:$0xff]
        %v1193 = vld [vmem:[%s1163 + $0xe8] sm:$0xff]
        %v1194 = vld [vmem:[%s1163 + $0xf0] sm:$0xff]
        %v1195 = vld [vmem:[%s1163 + $0xf8] sm:$0xff]
        %1196 = vmatprep.subr.mxu0 %v1165
        %1197 = vmatpush1.msra.mxu0 %v1164
        %1198 = vmatprep.subr.mxu0 %v1167
        %1199 = vmatpush1.msra.mxu0 %v1166
        %1200 = vmatprep.subr.mxu0 %v1169
        %1201 = vmatpush1.msra.mxu0 %v1168
        %1202 = vmatprep.subr.mxu0 %v1171
        %1203 = vmatpush1.msra.mxu0 %v1170
        %1204 = vmatprep.subr.mxu0 %v1173
        %1205 = vmatpush1.msra.mxu0 %v1172
        %1206 = vmatprep.subr.mxu0 %v1175
        %1207 = vmatpush1.msra.mxu0 %v1174
        %1208 = vmatprep.subr.mxu0 %v1177
        %1209 = vmatpush1.msra.mxu0 %v1176
        %1210 = vmatprep.subr.mxu0 %v1179
        %1211 = vmatpush1.msra.mxu0 %v1178
        %1212 = vmatprep.subr.mxu0 %v1181
        %1213 = vmatpush1.msra.mxu0 %v1180
        %1214 = vmatprep.subr.mxu0 %v1183
        %1215 = vmatpush1.msra.mxu0 %v1182
        %1216 = vmatprep.subr.mxu0 %v1185
        %1217 = vmatpush1.msra.mxu0 %v1184
        %1218 = vmatprep.subr.mxu0 %v1187
        %1219 = vmatpush1.msra.mxu0 %v1186
        %1220 = vmatprep.subr.mxu0 %v1189
        %1221 = vmatpush1.msra.mxu0 %v1188
        %1222 = vmatprep.subr.mxu0 %v1191
        %1223 = vmatpush1.msra.mxu0 %v1190
        %1224 = vmatprep.subr.mxu0 %v1193
        %1225 = vmatpush1.msra.mxu0 %v1192
        %1226 = vmatprep.subr.mxu0 %v1195
        %1227 = vmatpush1.msra.mxu0 %v1194
        %1228 = vmatprep.subr.mxu0 0.0
        %1229 = vmatpush1.msra.mxu0 0.0
        %1230 = vmatprep.subr.mxu0 0.0
        %1231 = vmatpush1.msra.mxu0 0.0
        %1232 = vmatprep.subr.mxu0 0.0
        %1233 = vmatpush1.msra.mxu0 0.0
        %1234 = vmatprep.subr.mxu0 0.0
        %1235 = vmatpush1.msra.mxu0 0.0
        %1236 = vmatprep.subr.mxu0 0.0
        %1237 = vmatpush1.msra.mxu0 0.0
        %1238 = vmatprep.subr.mxu0 0.0
        %1239 = vmatpush1.msra.mxu0 0.0
        %1240 = vmatprep.subr.mxu0 0.0
        %1241 = vmatpush1.msra.mxu0 0.0
        %1242 = vmatprep.subr.mxu0 0.0
        %1243 = vmatpush1.msra.mxu0 0.0
        %1244 = vmatprep.subr.mxu0 0.0
        %1245 = vmatpush1.msra.mxu0 0.0
        %1246 = vmatprep.subr.mxu0 0.0
        %1247 = vmatpush1.msra.mxu0 0.0
        %1248 = vmatprep.subr.mxu0 0.0
        %1249 = vmatpush1.msra.mxu0 0.0
        %1250 = vmatprep.subr.mxu0 0.0
        %1251 = vmatpush1.msra.mxu0 0.0
        %1252 = vmatprep.subr.mxu0 0.0
        %1253 = vmatpush1.msra.mxu0 0.0
        %1254 = vmatprep.subr.mxu0 0.0
        %1255 = vmatpush1.msra.mxu0 0.0
        %1256 = vmatprep.subr.mxu0 0.0
        %1257 = vmatpush1.msra.mxu0 0.0
        %1258 = vmatprep.subr.mxu0 0.0
        %1259 = vmatpush1.msra.mxu0 0.0
        %1260 = vmatprep.mubr.f32.mxu0 0.0
        %1261 = vmatmul.mubr.f32.gmra.mrb[0].mxu0 %v1161
        %v1262 = vpop.f32.mrb[0].mxu0
        %v1263 = vadd.f32 0.0, %v1262
        %v1264 = vpop.f32.mrb[0].mxu0
        %v1265 = vadd.f32 0.0, %v1264
        %1266 = vmatprep.mubr.f32.mxu0 0.0
        %1267 = vmatmul.mubr.f32.gmra.mrb[0].mxu0 %v1162
        %v1268 = vpop.f32.mrb[0].mxu0
        %v1269 = vadd.f32 0.0, %v1268
        %v1270 = vpop.f32.mrb[0].mxu0
        %v1271 = vadd.f32 0.0, %v1270
        %1272 = vdwg.mxu0
        %v1273 = vadd.f32 %v1157, %v1263
        %v1274 = vadd.f32 %v1158, %v1265
        %v1275 = vadd.f32 %v1159, %v1269
        %v1276 = vadd.f32 %v1160, %v1271
        %v1277 = vadd.f32 %v1273, %v1275
        %v1278 = vrot.slane %v1277, 4
        %v1279 = vadd.f32 %v1277, %v1278
        %v1280 = vrot.slane %v1279, 2
        %v1281 = vadd.f32 %v1279, %v1280
        %v1282 = vrot.slane %v1281, 1
        %v1283 = vadd.f32 %v1281, %v1282
        %v1284 = vadd.f32 %v1274, %v1276
        %v1285 = vrot.slane %v1284, 4
        %v1286 = vadd.f32 %v1284, %v1285
        %v1287 = vrot.slane %v1286, 2
        %v1288 = vadd.f32 %v1286, %v1287
        %v1289 = vrot.slane %v1288, 1
        %v1290 = vadd.f32 %v1288, %v1289
        %v1291 = vld [vmem:[#allocation12] sm:$0xff]
        %v1292 = vld [vmem:[#allocation12 + $0x8] sm:$0xff]
        %v1293 = vld [vmem:[#allocation12 + $0x10] sm:$0xff]
        %v1294 = vld [vmem:[#allocation12 + $0x18] sm:$0xff]
        %v1295 = vld [vmem:[#allocation12 + $0x20] sm:$0xff]
        %v1296 = vld [vmem:[#allocation12 + $0x28] sm:$0xff]
        %v1297 = vld [vmem:[#allocation12 + $0x30] sm:$0xff]
        %v1298 = vld [vmem:[#allocation12 + $0x38] sm:$0xff]
        %v1299 = vld [vmem:[#allocation12 + $0x40] sm:$0xff]
        %v1300 = vld [vmem:[#allocation12 + $0x48] sm:$0xff]
        %v1301 = vld [vmem:[#allocation12 + $0x50] sm:$0xff]
        %v1302 = vld [vmem:[#allocation12 + $0x58] sm:$0xff]
        %v1303 = vld [vmem:[#allocation12 + $0x60] sm:$0xff]
        %v1304 = vld [vmem:[#allocation12 + $0x68] sm:$0xff]
        %v1305 = vld [vmem:[#allocation12 + $0x70] sm:$0xff]
        %v1306 = vld [vmem:[#allocation12 + $0x78] sm:$0xff]
        %v1307 = vld [vmem:[#allocation12 + $0x80] sm:$0xff]
        %v1308 = vld [vmem:[#allocation12 + $0x88] sm:$0xff]
        %v1309 = vld [vmem:[#allocation12 + $0x90] sm:$0xff]
        %v1310 = vld [vmem:[#allocation12 + $0x98] sm:$0xff]
        %v1311 = vld [vmem:[#allocation12 + $0xa0] sm:$0xff]
        %v1312 = vld [vmem:[#allocation12 + $0xa8] sm:$0xff]
        %v1313 = vld [vmem:[#allocation12 + $0xb0] sm:$0xff]
        %v1314 = vld [vmem:[#allocation12 + $0xb8] sm:$0xff]
        %v1315 = vld [vmem:[#allocation12 + $0xc0] sm:$0xff]
        %v1316 = vld [vmem:[#allocation12 + $0xc8] sm:$0xff]
        %v1317 = vld [vmem:[#allocation12 + $0xd0] sm:$0xff]
        %v1318 = vld [vmem:[#allocation12 + $0xd8] sm:$0xff]
        %v1319 = vld [vmem:[#allocation12 + $0xe0] sm:$0xff]
        %v1320 = vld [vmem:[#allocation12 + $0xe8] sm:$0xff]
        %v1321 = vld [vmem:[#allocation12 + $0xf0] sm:$0xff]
        %v1322 = vld [vmem:[#allocation12 + $0xf8] sm:$0xff]
        %v1323 = vld [vmem:[#allocation12 + $0x100] sm:$0xff]
        %v1324 = vld [vmem:[#allocation12 + $0x108] sm:$0xff]
        %v1325 = vld [vmem:[#allocation12 + $0x110] sm:$0xff]
        %v1326 = vld [vmem:[#allocation12 + $0x118] sm:$0xff]
        %v1327 = vld [vmem:[#allocation12 + $0x120] sm:$0xff]
        %v1328 = vld [vmem:[#allocation12 + $0x128] sm:$0xff]
        %v1329 = vld [vmem:[#allocation12 + $0x130] sm:$0xff]
        %v1330 = vld [vmem:[#allocation12 + $0x138] sm:$0xff]
        %v1331 = vld [vmem:[#allocation12 + $0x140] sm:$0xff]
        %v1332 = vld [vmem:[#allocation12 + $0x148] sm:$0xff]
        %v1333 = vld [vmem:[#allocation12 + $0x150] sm:$0xff]
        %v1334 = vld [vmem:[#allocation12 + $0x158] sm:$0xff]
        %v1335 = vld [vmem:[#allocation12 + $0x160] sm:$0xff]
        %v1336 = vld [vmem:[#allocation12 + $0x168] sm:$0xff]
        %v1337 = vld [vmem:[#allocation12 + $0x170] sm:$0xff]
        %v1338 = vld [vmem:[#allocation12 + $0x178] sm:$0xff]
        %v1339 = vld [vmem:[#allocation12 + $0x180] sm:$0xff]
        %v1340 = vld [vmem:[#allocation12 + $0x188] sm:$0xff]
        %v1341 = vld [vmem:[#allocation12 + $0x190] sm:$0xff]
        %v1342 = vld [vmem:[#allocation12 + $0x198] sm:$0xff]
        %v1343 = vld [vmem:[#allocation12 + $0x1a0] sm:$0xff]
        %v1344 = vld [vmem:[#allocation12 + $0x1a8] sm:$0xff]
        %v1345 = vld [vmem:[#allocation12 + $0x1b0] sm:$0xff]
        %v1346 = vld [vmem:[#allocation12 + $0x1b8] sm:$0xff]
        %v1347 = vld [vmem:[#allocation12 + $0x1c0] sm:$0xff]
        %v1348 = vld [vmem:[#allocation12 + $0x1c8] sm:$0xff]
        %v1349 = vld [vmem:[#allocation12 + $0x1d0] sm:$0xff]
        %v1350 = vld [vmem:[#allocation12 + $0x1d8] sm:$0xff]
        %v1351 = vld [vmem:[#allocation12 + $0x1e0] sm:$0xff]
        %v1352 = vld [vmem:[#allocation12 + $0x1e8] sm:$0xff]
        %v1353 = vld [vmem:[#allocation12 + $0x1f0] sm:$0xff]
        %v1354 = vld [vmem:[#allocation12 + $0x1f8] sm:$0xff]
        %1355 = vmatprep.subr.mxu0 %v1292
        %1356 = vmatpush1.msra.mxu0 %v1291
        %1357 = vmatprep.subr.mxu0 %v1294
        %1358 = vmatpush1.msra.mxu0 %v1293
        %1359 = vmatprep.subr.mxu0 %v1296
        %1360 = vmatpush1.msra.mxu0 %v1295
        %1361 = vmatprep.subr.mxu0 %v1298
        %1362 = vmatpush1.msra.mxu0 %v1297
        %1363 = vmatprep.subr.mxu0 %v1300
        %1364 = vmatpush1.msra.mxu0 %v1299
        %1365 = vmatprep.subr.mxu0 %v1302
        %1366 = vmatpush1.msra.mxu0 %v1301
        %1367 = vmatprep.subr.mxu0 %v1304
        %1368 = vmatpush1.msra.mxu0 %v1303
        %1369 = vmatprep.subr.mxu0 %v1306
        %1370 = vmatpush1.msra.mxu0 %v1305
        %1371 = vmatprep.subr.mxu0 %v1308
        %1372 = vmatpush1.msra.mxu0 %v1307
        %1373 = vmatprep.subr.mxu0 %v1310
        %1374 = vmatpush1.msra.mxu0 %v1309
        %1375 = vmatprep.subr.mxu0 %v1312
        %1376 = vmatpush1.msra.mxu0 %v1311
        %1377 = vmatprep.subr.mxu0 %v1314
        %1378 = vmatpush1.msra.mxu0 %v1313
        %1379 = vmatprep.subr.mxu0 %v1316
        %1380 = vmatpush1.msra.mxu0 %v1315
        %1381 = vmatprep.subr.mxu0 %v1318
        %1382 = vmatpush1.msra.mxu0 %v1317
        %1383 = vmatprep.subr.mxu0 %v1320
        %1384 = vmatpush1.msra.mxu0 %v1319
        %1385 = vmatprep.subr.mxu0 %v1322
        %1386 = vmatpush1.msra.mxu0 %v1321
        %1387 = vmatprep.subr.mxu0 %v1324
        %1388 = vmatpush1.msra.mxu0 %v1323
        %1389 = vmatprep.subr.mxu0 %v1326
        %1390 = vmatpush1.msra.mxu0 %v1325
        %1391 = vmatprep.subr.mxu0 %v1328
        %1392 = vmatpush1.msra.mxu0 %v1327
        %1393 = vmatprep.subr.mxu0 %v1330
        %1394 = vmatpush1.msra.mxu0 %v1329
        %1395 = vmatprep.subr.mxu0 %v1332
        %1396 = vmatpush1.msra.mxu0 %v1331
        %1397 = vmatprep.subr.mxu0 %v1334
        %1398 = vmatpush1.msra.mxu0 %v1333
        %1399 = vmatprep.subr.mxu0 %v1336
        %1400 = vmatpush1.msra.mxu0 %v1335
        %1401 = vmatprep.subr.mxu0 %v1338
        %1402 = vmatpush1.msra.mxu0 %v1337
        %1403 = vmatprep.subr.mxu0 %v1340
        %1404 = vmatpush1.msra.mxu0 %v1339
        %1405 = vmatprep.subr.mxu0 %v1342
        %1406 = vmatpush1.msra.mxu0 %v1341
        %1407 = vmatprep.subr.mxu0 %v1344
        %1408 = vmatpush1.msra.mxu0 %v1343
        %1409 = vmatprep.subr.mxu0 %v1346
        %1410 = vmatpush1.msra.mxu0 %v1345
        %1411 = vmatprep.subr.mxu0 %v1348
        %1412 = vmatpush1.msra.mxu0 %v1347
        %1413 = vmatprep.subr.mxu0 %v1350
        %1414 = vmatpush1.msra.mxu0 %v1349
        %1415 = vmatprep.subr.mxu0 %v1352
        %1416 = vmatpush1.msra.mxu0 %v1351
        %1417 = vmatprep.subr.mxu0 %v1354
        %1418 = vmatpush1.msra.mxu0 %v1353
        %1419 = vmatprep.mubr.f32.mxu0 %v1290
        %1420 = vmatmul.mubr.f32.gmra.mrb[0].mxu0 %v1283
        %v1421 = vpop.f32.mrb[0].mxu0
        %v1422 = vadd.f32 0.0, %v1421
        %v1423 = vpop.f32.mrb[0].mxu0
        %v1424 = vadd.f32 0.0, %v1423
        %1425 = vdwg.mxu0
        %v1426 = vlaneseq
        %v1427 = vshrl.u32 %v1426, 7
        %v1428 = vsub.s32 0, %v1427
        %v1429 = vrot.slane %v1422, %v1428
        %v1430 = vlaneseq
        %v1431 = vshrl.u32 %v1430, 7
        %v1432 = vsub.s32 0, %v1431
        %v1433 = vrot.slane %v1424, %v1432
        %v1434 = vsub.f32 %v1273, %v1429
        %v1435 = vsub.f32 %v1274, %v1433
        %v1436 = vsub.f32 %v1275, %v1429
        %v1437 = vsub.f32 %v1276, %v1433
        %v1438 = vmul.f32 %v1434, %v1434
        %v1439 = vmul.f32 %v1435, %v1435
        %v1440 = vmul.f32 %v1436, %v1436
        %v1441 = vmul.f32 %v1437, %v1437
        %v1442 = vadd.f32 %v1438, %v1440
        %v1443 = vrot.slane %v1442, 4
        %v1444 = vadd.f32 %v1442, %v1443
        %v1445 = vrot.slane %v1444, 2
        %v1446 = vadd.f32 %v1444, %v1445
        %v1447 = vrot.slane %v1446, 1
        %v1448 = vadd.f32 %v1446, %v1447
        %v1449 = vadd.f32 %v1439, %v1441
        %v1450 = vrot.slane %v1449, 4
        %v1451 = vadd.f32 %v1449, %v1450
        %v1452 = vrot.slane %v1451, 2
        %v1453 = vadd.f32 %v1451, %v1452
        %v1454 = vrot.slane %v1453, 1
        %v1455 = vadd.f32 %v1453, %v1454
        %1456 = vmatprep.subr.mxu0 %v1292
        %1457 = vmatpush1.msra.mxu0 %v1291
        %1458 = vmatprep.subr.mxu0 %v1294
        %1459 = vmatpush1.msra.mxu0 %v1293
        %1460 = vmatprep.subr.mxu0 %v1296
        %1461 = vmatpush1.msra.mxu0 %v1295
        %1462 = vmatprep.subr.mxu0 %v1298
        %1463 = vmatpush1.msra.mxu0 %v1297
        %1464 = vmatprep.subr.mxu0 %v1300
        %1465 = vmatpush1.msra.mxu0 %v1299
        %1466 = vmatprep.subr.mxu0 %v1302
        %1467 = vmatpush1.msra.mxu0 %v1301
        %1468 = vmatprep.subr.mxu0 %v1304
        %1469 = vmatpush1.msra.mxu0 %v1303
        %1470 = vmatprep.subr.mxu0 %v1306
        %1471 = vmatpush1.msra.mxu0 %v1305
        %1472 = vmatprep.subr.mxu0 %v1308
        %1473 = vmatpush1.msra.mxu0 %v1307
        %1474 = vmatprep.subr.mxu0 %v1310
        %1475 = vmatpush1.msra.mxu0 %v1309
        %1476 = vmatprep.subr.mxu0 %v1312
        %1477 = vmatpush1.msra.mxu0 %v1311
        %1478 = vmatprep.subr.mxu0 %v1314
        %1479 = vmatpush1.msra.mxu0 %v1313
        %1480 = vmatprep.subr.mxu0 %v1316
        %1481 = vmatpush1.msra.mxu0 %v1315
        %1482 = vmatprep.subr.mxu0 %v1318
        %1483 = vmatpush1.msra.mxu0 %v1317
        %1484 = vmatprep.subr.mxu0 %v1320
        %1485 = vmatpush1.msra.mxu0 %v1319
        %1486 = vmatprep.subr.mxu0 %v1322
        %1487 = vmatpush1.msra.mxu0 %v1321
        %1488 = vmatprep.subr.mxu0 %v1324
        %1489 = vmatpush1.msra.mxu0 %v1323
        %1490 = vmatprep.subr.mxu0 %v1326
        %1491 = vmatpush1.msra.mxu0 %v1325
        %1492 = vmatprep.subr.mxu0 %v1328
        %1493 = vmatpush1.msra.mxu0 %v1327
        %1494 = vmatprep.subr.mxu0 %v1330
        %1495 = vmatpush1.msra.mxu0 %v1329
        %1496 = vmatprep.subr.mxu0 %v1332
        %1497 = vmatpush1.msra.mxu0 %v1331
        %1498 = vmatprep.subr.mxu0 %v1334
        %1499 = vmatpush1.msra.mxu0 %v1333
        %1500 = vmatprep.subr.mxu0 %v1336
        %1501 = vmatpush1.msra.mxu0 %v1335
        %1502 = vmatprep.subr.mxu0 %v1338
        %1503 = vmatpush1.msra.mxu0 %v1337
        %1504 = vmatprep.subr.mxu0 %v1340
        %1505 = vmatpush1.msra.mxu0 %v1339
        %1506 = vmatprep.subr.mxu0 %v1342
        %1507 = vmatpush1.msra.mxu0 %v1341
        %1508 = vmatprep.subr.mxu0 %v1344
        %1509 = vmatpush1.msra.mxu0 %v1343
        %1510 = vmatprep.subr.mxu0 %v1346
        %1511 = vmatpush1.msra.mxu0 %v1345
        %1512 = vmatprep.subr.mxu0 %v1348
        %1513 = vmatpush1.msra.mxu0 %v1347
        %1514 = vmatprep.subr.mxu0 %v1350
        %1515 = vmatpush1.msra.mxu0 %v1349
        %1516 = vmatprep.subr.mxu0 %v1352
        %1517 = vmatpush1.msra.mxu0 %v1351
        %1518 = vmatprep.subr.mxu0 %v1354
        %1519 = vmatpush1.msra.mxu0 %v1353
        %1520 = vmatprep.mubr.f32.mxu0 %v1455
        %1521 = vmatmul.mubr.f32.gmra.mrb[0].mxu0 %v1448
        %v1522 = vpop.f32.mrb[0].mxu0
        %v1523 = vadd.f32 1e-06, %v1522
        %v1524 = vpop.f32.mrb[0].mxu0
        %v1525 = vadd.f32 1e-06, %v1524
        %1526 = vdwg.mxu0
        %v1527 = vrsqrt.pop %v1523
        %v1528 = vrsqrt.pop %v1525
        %v1529 = vlaneseq
        %v1530 = vshrl.u32 %v1529, 7
        %v1531 = vsub.s32 0, %v1530
        %v1532 = vrot.slane %v1527, %v1531
        %v1533 = vlaneseq
        %v1534 = vshrl.u32 %v1533, 7
        %v1535 = vsub.s32 0, %v1534
        %v1536 = vrot.slane %v1528, %v1535
        %v1537 = vmul.f32 %v1434, %v1532
        %v1538 = vmul.f32 %v1435, %v1536
        %v1539 = vmul.f32 %v1436, %v1532
        %v1540 = vmul.f32 %v1437, %v1536
        %v1541 = vld [vmem:[%s7] sm:$0x3]
        %v1543 = vlaneseq
        %v1544 = vshrl.u32 %v1543, 7
        %v1545 = vsub.s32 0, %v1544
        %v1546 = vrot.slane %v1541, %v1545
        %v1547 = vlaneseq
        %v1548 = vshrl.u32 %v1547, 7
        %v1549 = vsub.s32 1, %v1548
        %v1550 = vrot.slane %v1541, %v1549
        %v1553 = vmul.f32 %v1537, %v1546
        %v1554 = vmul.f32 %v1538, %v1550
        %v1555 = vmul.f32 %v1539, %v1546
        %v1556 = vmul.f32 %v1540, %v1550
        %v1557 = vld [vmem:[%s8] sm:$0x3]
        %v1559 = vlaneseq
        %v1560 = vshrl.u32 %v1559, 7
        %v1561 = vsub.s32 0, %v1560
        %v1562 = vrot.slane %v1557, %v1561
        %v1563 = vlaneseq
        %v1564 = vshrl.u32 %v1563, 7
        %v1565 = vsub.s32 1, %v1564
        %v1566 = vrot.slane %v1557, %v1565
        %v1569 = vadd.f32 %v1553, %v1562
        %v1570 = vadd.f32 %v1554, %v1566
        %v1571 = vadd.f32 %v1555, %v1562
        %v1572 = vadd.f32 %v1556, %v1566
        %v1573 = vxor.u32 %v1569, 2147483648
        %v1574 = vxor.u32 %v1570, 2147483648
        %v1575 = vxor.u32 %v1571, 2147483648
        %v1576 = vxor.u32 %v1572, 2147483648
        %v1577 = vmul.f32 %v1573, 1.442695
        %v1578 = vpow.pop %v1577
        %v1579 = vmul.f32 %v1574, 1.442695
        %v1580 = vpow.pop %v1579
        %v1581 = vmul.f32 %v1575, 1.442695
        %v1582 = vpow.pop %v1581
        %v1583 = vmul.f32 %v1576, 1.442695
        %v1584 = vpow.pop %v1583
        %v1585 = vadd.f32 %v1578, 1.0
        %v1586 = vadd.f32 %v1580, 1.0
        %v1587 = vadd.f32 %v1582, 1.0
        %v1588 = vadd.f32 %v1584, 1.0
        %v1589 = vrcp.pop %v1585
        %v1590 = vmul.f32 1.0, %v1589
        %v1591 = vrcp.pop %v1586
        %v1592 = vmul.f32 1.0, %v1591
        %v1593 = vrcp.pop %v1587
        %v1594 = vmul.f32 1.0, %v1593
        %v1595 = vrcp.pop %v1588
        %v1596 = vmul.f32 1.0, %v1595
        %v1597 = vmul.f32 %v1569, %v1590
        %v1598 = vmul.f32 %v1570, %v1592
        %v1599 = vmul.f32 %v1571, %v1594
        %v1600 = vmul.f32 %v1572, %v1596
        %v1601 = vld [vmem:[%s10] sm:$0x3]
        %v1602 = vlaneseq
        %vm1603 = vcmp.ge.s32.totalorder %v1602, 0
        %vm1604 = vcmp.lt.s32.totalorder %v1602, 256
        %vm1605 = vmand %vm1603, %vm1604
        %1606 = vst.msk [vmem:[#allocation3] ss:$8 sm:$0x3] %vm1605, 0.0
        %1607 = vst.msk [vmem:[#allocation3] ss:$8 sm:$0x0] %vm1605, 0.0
        %s1608 = scalar_lea.vmem [#allocation3], 33
        %1609 = vst.msk [vmem:[%s1608] ss:$8 sm:$0x3] %vm1605, 0.0
        %1610 = vst.msk [vmem:[%s1608] ss:$8 sm:$0x0] %vm1605, 0.0
        %vm1615 = vcmask 1040384
        %v1616 = vrot.slane %v1597, 7
        %v1617 = vrot.slane %v1598, 7
        %v1618 = vrot.slane %v1599, 7
        %v1619 = vsel %vm1615, %v1616, %v1618
        %v1620 = vrot.slane %v1600, 7
        %v1621 = vsel %vm1615, %v1617, %v1620
        %1628 = vst [vmem:[#allocation3] sm:$0xfe] %v1616
        %1629 = vst [vmem:[#allocation3 + $0x8] sm:$0xfe] %v1617
        %1630 = vst [vmem:[#allocation3 + $0x10] sm:$0xff] %v1619
        %1631 = vst [vmem:[#allocation3 + $0x18] sm:$0xff] %v1621
        %1632 = vst [vmem:[#allocation3 + $0x20] sm:$0x1] %v1618
        %1633 = vst [vmem:[#allocation3 + $0x28] sm:$0x1] %v1620
        %v1634 = vld [vmem:[#allocation3] sm:$0xff]
        %v1635 = vld [vmem:[#allocation3 + $0x8] sm:$0xff]
        %v1636 = vld [vmem:[#allocation3 + $0x10] sm:$0xff]
        %v1637 = vld [vmem:[#allocation3 + $0x18] sm:$0xff]
        %v1638 = vld [vmem:[#allocation13] sm:$0xff]
        %v1639 = vld [vmem:[#allocation13 + $0x8] sm:$0xff]
        %v1640 = vld [vmem:[#allocation13 + $0x10] sm:$0xff]
        %v1641 = vld [vmem:[#allocation13 + $0x18] sm:$0xff]
        %v1642 = vld [vmem:[#allocation13 + $0x20] sm:$0xff]
        %v1643 = vld [vmem:[#allocation13 + $0x28] sm:$0xff]
        %v1644 = vld [vmem:[#allocation13 + $0x30] sm:$0xff]
        %v1645 = vld [vmem:[#allocation13 + $0x38] sm:$0xff]
        %v1646 = vld [vmem:[#allocation13 + $0x40] sm:$0xff]
        %v1647 = vld [vmem:[#allocation13 + $0x48] sm:$0xff]
        %v1648 = vld [vmem:[#allocation13 + $0x50] sm:$0xff]
        %v1649 = vld [vmem:[#allocation13 + $0x58] sm:$0xff]
        %v1650 = vld [vmem:[#allocation13 + $0x60] sm:$0xff]
        %v1651 = vld [vmem:[#allocation13 + $0x68] sm:$0xff]
        %v1652 = vld [vmem:[#allocation13 + $0x70] sm:$0xff]
        %v1653 = vld [vmem:[#allocation13 + $0x78] sm:$0xff]
        %v1654 = vld [vmem:[#allocation13 + $0x80] sm:$0xff]
        %v1655 = vld [vmem:[#allocation13 + $0x88] sm:$0xff]
        %v1656 = vld [vmem:[#allocation13 + $0x90] sm:$0xff]
        %v1657 = vld [vmem:[#allocation13 + $0x98] sm:$0xff]
        %v1658 = vld [vmem:[#allocation13 + $0xa0] sm:$0xff]
        %v1659 = vld [vmem:[#allocation13 + $0xa8] sm:$0xff]
        %v1660 = vld [vmem:[#allocation13 + $0xb0] sm:$0xff]
        %v1661 = vld [vmem:[#allocation13 + $0xb8] sm:$0xff]
        %v1662 = vld [vmem:[#allocation13 + $0xc0] sm:$0xff]
        %v1663 = vld [vmem:[#allocation13 + $0xc8] sm:$0xff]
        %v1664 = vld [vmem:[#allocation13 + $0xd0] sm:$0xff]
        %v1665 = vld [vmem:[#allocation13 + $0xd8] sm:$0xff]
        %v1666 = vld [vmem:[#allocation13 + $0xe0] sm:$0xff]
        %v1667 = vld [vmem:[#allocation13 + $0xe8] sm:$0xff]
        %v1668 = vld [vmem:[#allocation13 + $0xf0] sm:$0xff]
        %v1669 = vld [vmem:[#allocation13 + $0xf8] sm:$0xff]
        %v1670 = vld [vmem:[#allocation13 + $0x100] sm:$0xff]
        %v1671 = vld [vmem:[#allocation13 + $0x108] sm:$0xff]
        %v1672 = vld [vmem:[#allocation13 + $0x110] sm:$0xff]
        %v1673 = vld [vmem:[#allocation13 + $0x118] sm:$0xff]
        %v1674 = vld [vmem:[#allocation13 + $0x120] sm:$0xff]
        %v1675 = vld [vmem:[#allocation13 + $0x128] sm:$0xff]
        %v1676 = vld [vmem:[#allocation13 + $0x130] sm:$0xff]
        %v1677 = vld [vmem:[#allocation13 + $0x138] sm:$0xff]
        %v1678 = vld [vmem:[#allocation13 + $0x140] sm:$0xff]
        %v1679 = vld [vmem:[#allocation13 + $0x148] sm:$0xff]
        %v1680 = vld [vmem:[#allocation13 + $0x150] sm:$0xff]
        %v1681 = vld [vmem:[#allocation13 + $0x158] sm:$0xff]
        %v1682 = vld [vmem:[#allocation13 + $0x160] sm:$0xff]
        %v1683 = vld [vmem:[#allocation13 + $0x168] sm:$0xff]
        %v1684 = vld [vmem:[#allocation13 + $0x170] sm:$0xff]
        %v1685 = vld [vmem:[#allocation13 + $0x178] sm:$0xff]
        %v1686 = vld [vmem:[#allocation13 + $0x180] sm:$0xff]
        %v1687 = vld [vmem:[#allocation13 + $0x188] sm:$0xff]
        %v1688 = vld [vmem:[#allocation13 + $0x190] sm:$0xff]
        %v1689 = vld [vmem:[#allocation13 + $0x198] sm:$0xff]
        %v1690 = vld [vmem:[#allocation13 + $0x1a0] sm:$0xff]
        %v1691 = vld [vmem:[#allocation13 + $0x1a8] sm:$0xff]
        %v1692 = vld [vmem:[#allocation13 + $0x1b0] sm:$0xff]
        %v1693 = vld [vmem:[#allocation13 + $0x1b8] sm:$0xff]
        %v1694 = vld [vmem:[#allocation13 + $0x1c0] sm:$0xff]
        %v1695 = vld [vmem:[#allocation13 + $0x1c8] sm:$0xff]
        %v1696 = vld [vmem:[#allocation13 + $0x1d0] sm:$0xff]
        %v1697 = vld [vmem:[#allocation13 + $0x1d8] sm:$0xff]
        %v1698 = vld [vmem:[#allocation13 + $0x1e0] sm:$0xff]
        %v1699 = vld [vmem:[#allocation13 + $0x1e8] sm:$0xff]
        %v1700 = vld [vmem:[#allocation13 + $0x1f0] sm:$0xff]
        %v1701 = vld [vmem:[#allocation13 + $0x1f8] sm:$0xff]
        %1702 = vmatprep.subr.mxu0 %v1639
        %1703 = vmatpush1.msra.mxu0 %v1638
        %1704 = vmatprep.subr.mxu0 %v1641
        %1705 = vmatpush1.msra.mxu0 %v1640
        %1706 = vmatprep.subr.mxu0 %v1643
        %1707 = vmatpush1.msra.mxu0 %v1642
        %1708 = vmatprep.subr.mxu0 %v1645
        %1709 = vmatpush1.msra.mxu0 %v1644
        %1710 = vmatprep.subr.mxu0 %v1647
        %1711 = vmatpush1.msra.mxu0 %v1646
        %1712 = vmatprep.subr.mxu0 %v1649
        %1713 = vmatpush1.msra.mxu0 %v1648
        %1714 = vmatprep.subr.mxu0 %v1651
        %1715 = vmatpush1.msra.mxu0 %v1650
        %1716 = vmatprep.subr.mxu0 %v1653
        %1717 = vmatpush1.msra.mxu0 %v1652
        %1718 = vmatprep.subr.mxu0 %v1655
        %1719 = vmatpush1.msra.mxu0 %v1654
        %1720 = vmatprep.subr.mxu0 %v1657
        %1721 = vmatpush1.msra.mxu0 %v1656
        %1722 = vmatprep.subr.mxu0 %v1659
        %1723 = vmatpush1.msra.mxu0 %v1658
        %1724 = vmatprep.subr.mxu0 %v1661
        %1725 = vmatpush1.msra.mxu0 %v1660
        %1726 = vmatprep.subr.mxu0 %v1663
        %1727 = vmatpush1.msra.mxu0 %v1662
        %1728 = vmatprep.subr.mxu0 %v1665
        %1729 = vmatpush1.msra.mxu0 %v1664
        %1730 = vmatprep.subr.mxu0 %v1667
        %1731 = vmatpush1.msra.mxu0 %v1666
        %1732 = vmatprep.subr.mxu0 %v1669
        %1733 = vmatpush1.msra.mxu0 %v1668
        %1734 = vmatprep.subr.mxu0 %v1671
        %1735 = vmatpush1.msra.mxu0 %v1670
        %1736 = vmatprep.subr.mxu0 %v1673
        %1737 = vmatpush1.msra.mxu0 %v1672
        %1738 = vmatprep.subr.mxu0 %v1675
        %1739 = vmatpush1.msra.mxu0 %v1674
        %1740 = vmatprep.subr.mxu0 %v1677
        %1741 = vmatpush1.msra.mxu0 %v1676
        %1742 = vmatprep.subr.mxu0 %v1679
        %1743 = vmatpush1.msra.mxu0 %v1678
        %1744 = vmatprep.subr.mxu0 %v1681
        %1745 = vmatpush1.msra.mxu0 %v1680
        %1746 = vmatprep.subr.mxu0 %v1683
        %1747 = vmatpush1.msra.mxu0 %v1682
        %1748 = vmatprep.subr.mxu0 %v1685
        %1749 = vmatpush1.msra.mxu0 %v1684
        %1750 = vmatprep.subr.mxu0 %v1687
        %1751 = vmatpush1.msra.mxu0 %v1686
        %1752 = vmatprep.subr.mxu0 %v1689
        %1753 = vmatpush1.msra.mxu0 %v1688
        %1754 = vmatprep.subr.mxu0 %v1691
        %1755 = vmatpush1.msra.mxu0 %v1690
        %1756 = vmatprep.subr.mxu0 %v1693
        %1757 = vmatpush1.msra.mxu0 %v1692
        %1758 = vmatprep.subr.mxu0 %v1695
        %1759 = vmatpush1.msra.mxu0 %v1694
        %1760 = vmatprep.subr.mxu0 %v1697
        %1761 = vmatpush1.msra.mxu0 %v1696
        %1762 = vmatprep.subr.mxu0 %v1699
        %1763 = vmatpush1.msra.mxu0 %v1698
        %1764 = vmatprep.subr.mxu0 %v1701
        %1765 = vmatpush1.msra.mxu0 %v1700
        %1766 = vmatprep.mubr.f32.mxu0 %v1635
        %1767 = vmatmul.mubr.f32.gmra.mrb[0].mxu0 %v1634
        %v1768 = vpop.f32.mrb[0].mxu0
        %v1769 = vadd.f32 0.0, %v1768
        %v1770 = vpop.f32.mrb[0].mxu0
        %v1771 = vadd.f32 0.0, %v1770
        %1772 = vmatprep.mubr.f32.mxu0 %v1637
        %1773 = vmatmul.mubr.f32.gmra.mrb[0].mxu0 %v1636
        %v1774 = vpop.f32.mrb[0].mxu0
        %v1775 = vadd.f32 0.0, %v1774
        %v1776 = vpop.f32.mrb[0].mxu0
        %v1777 = vadd.f32 0.0, %v1776
        %1778 = vdwg.mxu0
        %v1780 = vlaneseq
        %v1781 = vshrl.u32 %v1780, 7
        %v1782 = vsub.s32 0, %v1781
        %v1783 = vrot.slane %v1601, %v1782
        %v1784 = vlaneseq
        %v1785 = vshrl.u32 %v1784, 7
        %v1786 = vsub.s32 1, %v1785
        %v1787 = vrot.slane %v1601, %v1786
        %v1790 = vadd.f32 %v1783, %v1769
        %v1791 = vadd.f32 %v1787, %v1771
        %v1792 = vadd.f32 %v1783, %v1775
        %v1793 = vadd.f32 %v1787, %v1777
        %v1794 = vld [vmem:[#allocation3] sm:$0xfe]
        %v1795 = vld [vmem:[#allocation3 + $0x8] sm:$0xfe]
        %v1796 = vld [vmem:[#allocation3 + $0x10] sm:$0xff]
        %v1797 = vld [vmem:[#allocation3 + $0x18] sm:$0xff]
        %v1798 = vld [vmem:[#allocation3 + $0x20] sm:$0x1]
        %v1799 = vld [vmem:[#allocation3 + $0x28] sm:$0x1]
        %s1800 = scalar_lea.vmem [#allocation13], 512
        %v1801 = vld [vmem:[%s1800] sm:$0xff]
        %v1802 = vld [vmem:[%s1800 + $0x8] sm:$0xff]
        %v1803 = vld [vmem:[%s1800 + $0x10] sm:$0xff]
        %v1804 = vld [vmem:[%s1800 + $0x18] sm:$0xff]
        %v1805 = vld [vmem:[%s1800 + $0x20] sm:$0xff]
        %v1806 = vld [vmem:[%s1800 + $0x28] sm:$0xff]
        %v1807 = vld [vmem:[%s1800 + $0x30] sm:$0xff]
        %v1808 = vld [vmem:[%s1800 + $0x38] sm:$0xff]
        %v1809 = vld [vmem:[%s1800 + $0x40] sm:$0xff]
        %v1810 = vld [vmem:[%s1800 + $0x48] sm:$0xff]
        %v1811 = vld [vmem:[%s1800 + $0x50] sm:$0xff]
        %v1812 = vld [vmem:[%s1800 + $0x58] sm:$0xff]
        %v1813 = vld [vmem:[%s1800 + $0x60] sm:$0xff]
        %v1814 = vld [vmem:[%s1800 + $0x68] sm:$0xff]
        %v1815 = vld [vmem:[%s1800 + $0x70] sm:$0xff]
        %v1816 = vld [vmem:[%s1800 + $0x78] sm:$0xff]
        %v1817 = vld [vmem:[%s1800 + $0x80] sm:$0xff]
        %v1818 = vld [vmem:[%s1800 + $0x88] sm:$0xff]
        %v1819 = vld [vmem:[%s1800 + $0x90] sm:$0xff]
        %v1820 = vld [vmem:[%s1800 + $0x98] sm:$0xff]
        %v1821 = vld [vmem:[%s1800 + $0xa0] sm:$0xff]
        %v1822 = vld [vmem:[%s1800 + $0xa8] sm:$0xff]
        %v1823 = vld [vmem:[%s1800 + $0xb0] sm:$0xff]
        %v1824 = vld [vmem:[%s1800 + $0xb8] sm:$0xff]
        %v1825 = vld [vmem:[%s1800 + $0xc0] sm:$0xff]
        %v1826 = vld [vmem:[%s1800 + $0xc8] sm:$0xff]
        %v1827 = vld [vmem:[%s1800 + $0xd0] sm:$0xff]
        %v1828 = vld [vmem:[%s1800 + $0xd8] sm:$0xff]
        %v1829 = vld [vmem:[%s1800 + $0xe0] sm:$0xff]
        %v1830 = vld [vmem:[%s1800 + $0xe8] sm:$0xff]
        %v1831 = vld [vmem:[%s1800 + $0xf0] sm:$0xff]
        %v1832 = vld [vmem:[%s1800 + $0xf8] sm:$0xff]
        %v1833 = vld [vmem:[%s1800 + $0x100] sm:$0xff]
        %v1834 = vld [vmem:[%s1800 + $0x108] sm:$0xff]
        %v1835 = vld [vmem:[%s1800 + $0x110] sm:$0xff]
        %v1836 = vld [vmem:[%s1800 + $0x118] sm:$0xff]
        %v1837 = vld [vmem:[%s1800 + $0x120] sm:$0xff]
        %v1838 = vld [vmem:[%s1800 + $0x128] sm:$0xff]
        %v1839 = vld [vmem:[%s1800 + $0x130] sm:$0xff]
        %v1840 = vld [vmem:[%s1800 + $0x138] sm:$0xff]
        %v1841 = vld [vmem:[%s1800 + $0x140] sm:$0xff]
        %v1842 = vld [vmem:[%s1800 + $0x148] sm:$0xff]
        %v1843 = vld [vmem:[%s1800 + $0x150] sm:$0xff]
        %v1844 = vld [vmem:[%s1800 + $0x158] sm:$0xff]
        %v1845 = vld [vmem:[%s1800 + $0x160] sm:$0xff]
        %v1846 = vld [vmem:[%s1800 + $0x168] sm:$0xff]
        %v1847 = vld [vmem:[%s1800 + $0x170] sm:$0xff]
        %v1848 = vld [vmem:[%s1800 + $0x178] sm:$0xff]
        %v1849 = vld [vmem:[%s1800 + $0x180] sm:$0xff]
        %v1850 = vld [vmem:[%s1800 + $0x188] sm:$0xff]
        %v1851 = vld [vmem:[%s1800 + $0x190] sm:$0xff]
        %v1852 = vld [vmem:[%s1800 + $0x198] sm:$0xff]
        %v1853 = vld [vmem:[%s1800 + $0x1a0] sm:$0xff]
        %v1854 = vld [vmem:[%s1800 + $0x1a8] sm:$0xff]
        %v1855 = vld [vmem:[%s1800 + $0x1b0] sm:$0xff]
        %v1856 = vld [vmem:[%s1800 + $0x1b8] sm:$0xff]
        %v1857 = vld [vmem:[%s1800 + $0x1c0] sm:$0xff]
        %v1858 = vld [vmem:[%s1800 + $0x1c8] sm:$0xff]
        %v1859 = vld [vmem:[%s1800 + $0x1d0] sm:$0xff]
        %v1860 = vld [vmem:[%s1800 + $0x1d8] sm:$0xff]
        %v1861 = vld [vmem:[%s1800 + $0x1e0] sm:$0xff]
        %v1862 = vld [vmem:[%s1800 + $0x1e8] sm:$0xff]
        %v1863 = vld [vmem:[%s1800 + $0x1f0] sm:$0xff]
        %v1864 = vld [vmem:[%s1800 + $0x1f8] sm:$0xff]
        %vm1871 = vcmask 1046528
        %v1872 = vrot.slane %v1794, 1
        %v1873 = vrot.slane %v1796, 1
        %v1874 = vsel %vm1871, %v1872, %v1873
        %v1875 = vrot.slane %v1795, 1
        %v1876 = vrot.slane %v1797, 1
        %v1877 = vsel %vm1871, %v1875, %v1876
        %v1878 = vrot.slane %v1798, 1
        %v1879 = vsel %vm1871, %v1873, %v1878
        %v1880 = vrot.slane %v1799, 1
        %v1881 = vsel %vm1871, %v1876, %v1880
        %1886 = vmatprep.subr.mxu0 %v1802
        %1887 = vmatpush1.msra.mxu0 %v1801
        %1888 = vmatprep.subr.mxu0 %v1804
        %1889 = vmatpush1.msra.mxu0 %v1803
        %1890 = vmatprep.subr.mxu0 %v1806
        %1891 = vmatpush1.msra.mxu0 %v1805
        %1892 = vmatprep.subr.mxu0 %v1808
        %1893 = vmatpush1.msra.mxu0 %v1807
        %1894 = vmatprep.subr.mxu0 %v1810
        %1895 = vmatpush1.msra.mxu0 %v1809
        %1896 = vmatprep.subr.mxu0 %v1812
        %1897 = vmatpush1.msra.mxu0 %v1811
        %1898 = vmatprep.subr.mxu0 %v1814
        %1899 = vmatpush1.msra.mxu0 %v1813
        %1900 = vmatprep.subr.mxu0 %v1816
        %1901 = vmatpush1.msra.mxu0 %v1815
        %1902 = vmatprep.subr.mxu0 %v1818
        %1903 = vmatpush1.msra.mxu0 %v1817
        %1904 = vmatprep.subr.mxu0 %v1820
        %1905 = vmatpush1.msra.mxu0 %v1819
        %1906 = vmatprep.subr.mxu0 %v1822
        %1907 = vmatpush1.msra.mxu0 %v1821
        %1908 = vmatprep.subr.mxu0 %v1824
        %1909 = vmatpush1.msra.mxu0 %v1823
        %1910 = vmatprep.subr.mxu0 %v1826
        %1911 = vmatpush1.msra.mxu0 %v1825
        %1912 = vmatprep.subr.mxu0 %v1828
        %1913 = vmatpush1.msra.mxu0 %v1827
        %1914 = vmatprep.subr.mxu0 %v1830
        %1915 = vmatpush1.msra.mxu0 %v1829
        %1916 = vmatprep.subr.mxu0 %v1832
        %1917 = vmatpush1.msra.mxu0 %v1831
        %1918 = vmatprep.subr.mxu0 %v1834
        %1919 = vmatpush1.msra.mxu0 %v1833
        %1920 = vmatprep.subr.mxu0 %v1836
        %1921 = vmatpush1.msra.mxu0 %v1835
        %1922 = vmatprep.subr.mxu0 %v1838
        %1923 = vmatpush1.msra.mxu0 %v1837
        %1924 = vmatprep.subr.mxu0 %v1840
        %1925 = vmatpush1.msra.mxu0 %v1839
        %1926 = vmatprep.subr.mxu0 %v1842
        %1927 = vmatpush1.msra.mxu0 %v1841
        %1928 = vmatprep.subr.mxu0 %v1844
        %1929 = vmatpush1.msra.mxu0 %v1843
        %1930 = vmatprep.subr.mxu0 %v1846
        %1931 = vmatpush1.msra.mxu0 %v1845
        %1932 = vmatprep.subr.mxu0 %v1848
        %1933 = vmatpush1.msra.mxu0 %v1847
        %1934 = vmatprep.subr.mxu0 %v1850
        %1935 = vmatpush1.msra.mxu0 %v1849
        %1936 = vmatprep.subr.mxu0 %v1852
        %1937 = vmatpush1.msra.mxu0 %v1851
        %1938 = vmatprep.subr.mxu0 %v1854
        %1939 = vmatpush1.msra.mxu0 %v1853
        %1940 = vmatprep.subr.mxu0 %v1856
        %1941 = vmatpush1.msra.mxu0 %v1855
        %1942 = vmatprep.subr.mxu0 %v1858
        %1943 = vmatpush1.msra.mxu0 %v1857
        %1944 = vmatprep.subr.mxu0 %v1860
        %1945 = vmatpush1.msra.mxu0 %v1859
        %1946 = vmatprep.subr.mxu0 %v1862
        %1947 = vmatpush1.msra.mxu0 %v1861
        %1948 = vmatprep.subr.mxu0 %v1864
        %1949 = vmatpush1.msra.mxu0 %v1863
        %1950 = vmatprep.mubr.f32.mxu0 %v1877
        %1951 = vmatmul.mubr.f32.gmra.mrb[0].mxu0 %v1874
        %v1952 = vpop.f32.mrb[0].mxu0
        %v1953 = vadd.f32 0.0, %v1952
        %v1954 = vpop.f32.mrb[0].mxu0
        %v1955 = vadd.f32 0.0, %v1954
        %1956 = vmatprep.mubr.f32.mxu0 %v1881
        %1957 = vmatmul.mubr.f32.gmra.mrb[0].mxu0 %v1879
        %v1958 = vpop.f32.mrb[0].mxu0
        %v1959 = vadd.f32 0.0, %v1958
        %v1960 = vpop.f32.mrb[0].mxu0
        %v1961 = vadd.f32 0.0, %v1960
        %1962 = vdwg.mxu0
        %v1963 = vadd.f32 %v1790, %v1953
        %v1964 = vadd.f32 %v1791, %v1955
        %v1965 = vadd.f32 %v1792, %v1959
        %v1966 = vadd.f32 %v1793, %v1961
        %v1967 = vld [vmem:[#allocation3] sm:$0xfc]
        %v1968 = vld [vmem:[#allocation3 + $0x8] sm:$0xfc]
        %v1969 = vld [vmem:[#allocation3 + $0x20] sm:$0x3]
        %v1970 = vld [vmem:[#allocation3 + $0x28] sm:$0x3]
        %s1971 = scalar_lea.vmem [#allocation13], 1024
        %v1972 = vld [vmem:[%s1971] sm:$0xff]
        %v1973 = vld [vmem:[%s1971 + $0x8] sm:$0xff]
        %v1974 = vld [vmem:[%s1971 + $0x10] sm:$0xff]
        %v1975 = vld [vmem:[%s1971 + $0x18] sm:$0xff]
        %v1976 = vld [vmem:[%s1971 + $0x20] sm:$0xff]
        %v1977 = vld [vmem:[%s1971 + $0x28] sm:$0xff]
        %v1978 = vld [vmem:[%s1971 + $0x30] sm:$0xff]
        %v1979 = vld [vmem:[%s1971 + $0x38] sm:$0xff]
        %v1980 = vld [vmem:[%s1971 + $0x40] sm:$0xff]
        %v1981 = vld [vmem:[%s1971 + $0x48] sm:$0xff]
        %v1982 = vld [vmem:[%s1971 + $0x50] sm:$0xff]
        %v1983 = vld [vmem:[%s1971 + $0x58] sm:$0xff]
        %v1984 = vld [vmem:[%s1971 + $0x60] sm:$0xff]
        %v1985 = vld [vmem:[%s1971 + $0x68] sm:$0xff]
        %v1986 = vld [vmem:[%s1971 + $0x70] sm:$0xff]
        %v1987 = vld [vmem:[%s1971 + $0x78] sm:$0xff]
        %v1988 = vld [vmem:[%s1971 + $0x80] sm:$0xff]
        %v1989 = vld [vmem:[%s1971 + $0x88] sm:$0xff]
        %v1990 = vld [vmem:[%s1971 + $0x90] sm:$0xff]
        %v1991 = vld [vmem:[%s1971 + $0x98] sm:$0xff]
        %v1992 = vld [vmem:[%s1971 + $0xa0] sm:$0xff]
        %v1993 = vld [vmem:[%s1971 + $0xa8] sm:$0xff]
        %v1994 = vld [vmem:[%s1971 + $0xb0] sm:$0xff]
        %v1995 = vld [vmem:[%s1971 + $0xb8] sm:$0xff]
        %v1996 = vld [vmem:[%s1971 + $0xc0] sm:$0xff]
        %v1997 = vld [vmem:[%s1971 + $0xc8] sm:$0xff]
        %v1998 = vld [vmem:[%s1971 + $0xd0] sm:$0xff]
        %v1999 = vld [vmem:[%s1971 + $0xd8] sm:$0xff]
        %v2000 = vld [vmem:[%s1971 + $0xe0] sm:$0xff]
        %v2001 = vld [vmem:[%s1971 + $0xe8] sm:$0xff]
        %v2002 = vld [vmem:[%s1971 + $0xf0] sm:$0xff]
        %v2003 = vld [vmem:[%s1971 + $0xf8] sm:$0xff]
        %v2004 = vld [vmem:[%s1971 + $0x100] sm:$0xff]
        %v2005 = vld [vmem:[%s1971 + $0x108] sm:$0xff]
        %v2006 = vld [vmem:[%s1971 + $0x110] sm:$0xff]
        %v2007 = vld [vmem:[%s1971 + $0x118] sm:$0xff]
        %v2008 = vld [vmem:[%s1971 + $0x120] sm:$0xff]
        %v2009 = vld [vmem:[%s1971 + $0x128] sm:$0xff]
        %v2010 = vld [vmem:[%s1971 + $0x130] sm:$0xff]
        %v2011 = vld [vmem:[%s1971 + $0x138] sm:$0xff]
        %v2012 = vld [vmem:[%s1971 + $0x140] sm:$0xff]
        %v2013 = vld [vmem:[%s1971 + $0x148] sm:$0xff]
        %v2014 = vld [vmem:[%s1971 + $0x150] sm:$0xff]
        %v2015 = vld [vmem:[%s1971 + $0x158] sm:$0xff]
        %v2016 = vld [vmem:[%s1971 + $0x160] sm:$0xff]
        %v2017 = vld [vmem:[%s1971 + $0x168] sm:$0xff]
        %v2018 = vld [vmem:[%s1971 + $0x170] sm:$0xff]
        %v2019 = vld [vmem:[%s1971 + $0x178] sm:$0xff]
        %v2020 = vld [vmem:[%s1971 + $0x180] sm:$0xff]
        %v2021 = vld [vmem:[%s1971 + $0x188] sm:$0xff]
        %v2022 = vld [vmem:[%s1971 + $0x190] sm:$0xff]
        %v2023 = vld [vmem:[%s1971 + $0x198] sm:$0xff]
        %v2024 = vld [vmem:[%s1971 + $0x1a0] sm:$0xff]
        %v2025 = vld [vmem:[%s1971 + $0x1a8] sm:$0xff]
        %v2026 = vld [vmem:[%s1971 + $0x1b0] sm:$0xff]
        %v2027 = vld [vmem:[%s1971 + $0x1b8] sm:$0xff]
        %v2028 = vld [vmem:[%s1971 + $0x1c0] sm:$0xff]
        %v2029 = vld [vmem:[%s1971 + $0x1c8] sm:$0xff]
        %v2030 = vld [vmem:[%s1971 + $0x1d0] sm:$0xff]
        %v2031 = vld [vmem:[%s1971 + $0x1d8] sm:$0xff]
        %v2032 = vld [vmem:[%s1971 + $0x1e0] sm:$0xff]
        %v2033 = vld [vmem:[%s1971 + $0x1e8] sm:$0xff]
        %v2034 = vld [vmem:[%s1971 + $0x1f0] sm:$0xff]
        %v2035 = vld [vmem:[%s1971 + $0x1f8] sm:$0xff]
        %vm2040 = vcmask 1045504
        %v2041 = vrot.slane %v1967, 2
        %v2042 = vrot.slane %v1796, 2
        %v2043 = vsel %vm2040, %v2041, %v2042
        %v2044 = vrot.slane %v1968, 2
        %v2045 = vrot.slane %v1797, 2
        %v2046 = vsel %vm2040, %v2044, %v2045
        %v2047 = vrot.slane %v1969, 2
        %v2048 = vsel %vm2040, %v2042, %v2047
        %v2049 = vrot.slane %v1970, 2
        %v2050 = vsel %vm2040, %v2045, %v2049
        %2055 = vmatprep.subr.mxu0 %v1973
        %2056 = vmatpush1.msra.mxu0 %v1972
        %2057 = vmatprep.subr.mxu0 %v1975
        %2058 = vmatpush1.msra.mxu0 %v1974
        %2059 = vmatprep.subr.mxu0 %v1977
        %2060 = vmatpush1.msra.mxu0 %v1976
        %2061 = vmatprep.subr.mxu0 %v1979
        %2062 = vmatpush1.msra.mxu0 %v1978
        %2063 = vmatprep.subr.mxu0 %v1981
        %2064 = vmatpush1.msra.mxu0 %v1980
        %2065 = vmatprep.subr.mxu0 %v1983
        %2066 = vmatpush1.msra.mxu0 %v1982
        %2067 = vmatprep.subr.mxu0 %v1985
        %2068 = vmatpush1.msra.mxu0 %v1984
        %2069 = vmatprep.subr.mxu0 %v1987
        %2070 = vmatpush1.msra.mxu0 %v1986
        %2071 = vmatprep.subr.mxu0 %v1989
        %2072 = vmatpush1.msra.mxu0 %v1988
        %2073 = vmatprep.subr.mxu0 %v1991
        %2074 = vmatpush1.msra.mxu0 %v1990
        %2075 = vmatprep.subr.mxu0 %v1993
        %2076 = vmatpush1.msra.mxu0 %v1992
        %2077 = vmatprep.subr.mxu0 %v1995
        %2078 = vmatpush1.msra.mxu0 %v1994
        %2079 = vmatprep.subr.mxu0 %v1997
        %2080 = vmatpush1.msra.mxu0 %v1996
        %2081 = vmatprep.subr.mxu0 %v1999
        %2082 = vmatpush1.msra.mxu0 %v1998
        %2083 = vmatprep.subr.mxu0 %v2001
        %2084 = vmatpush1.msra.mxu0 %v2000
        %2085 = vmatprep.subr.mxu0 %v2003
        %2086 = vmatpush1.msra.mxu0 %v2002
        %2087 = vmatprep.subr.mxu0 %v2005
        %2088 = vmatpush1.msra.mxu0 %v2004
        %2089 = vmatprep.subr.mxu0 %v2007
        %2090 = vmatpush1.msra.mxu0 %v2006
        %2091 = vmatprep.subr.mxu0 %v2009
        %2092 = vmatpush1.msra.mxu0 %v2008
        %2093 = vmatprep.subr.mxu0 %v2011
        %2094 = vmatpush1.msra.mxu0 %v2010
        %2095 = vmatprep.subr.mxu0 %v2013
        %2096 = vmatpush1.msra.mxu0 %v2012
        %2097 = vmatprep.subr.mxu0 %v2015
        %2098 = vmatpush1.msra.mxu0 %v2014
        %2099 = vmatprep.subr.mxu0 %v2017
        %2100 = vmatpush1.msra.mxu0 %v2016
        %2101 = vmatprep.subr.mxu0 %v2019
        %2102 = vmatpush1.msra.mxu0 %v2018
        %2103 = vmatprep.subr.mxu0 %v2021
        %2104 = vmatpush1.msra.mxu0 %v2020
        %2105 = vmatprep.subr.mxu0 %v2023
        %2106 = vmatpush1.msra.mxu0 %v2022
        %2107 = vmatprep.subr.mxu0 %v2025
        %2108 = vmatpush1.msra.mxu0 %v2024
        %2109 = vmatprep.subr.mxu0 %v2027
        %2110 = vmatpush1.msra.mxu0 %v2026
        %2111 = vmatprep.subr.mxu0 %v2029
        %2112 = vmatpush1.msra.mxu0 %v2028
        %2113 = vmatprep.subr.mxu0 %v2031
        %2114 = vmatpush1.msra.mxu0 %v2030
        %2115 = vmatprep.subr.mxu0 %v2033
        %2116 = vmatpush1.msra.mxu0 %v2032
        %2117 = vmatprep.subr.mxu0 %v2035
        %2118 = vmatpush1.msra.mxu0 %v2034
        %2119 = vmatprep.mubr.f32.mxu0 %v2046
        %2120 = vmatmul.mubr.f32.gmra.mrb[0].mxu0 %v2043
        %v2121 = vpop.f32.mrb[0].mxu0
        %v2122 = vadd.f32 0.0, %v2121
        %v2123 = vpop.f32.mrb[0].mxu0
        %v2124 = vadd.f32 0.0, %v2123
        %2125 = vmatprep.mubr.f32.mxu0 %v2050
        %2126 = vmatmul.mubr.f32.gmra.mrb[0].mxu0 %v2048
        %v2127 = vpop.f32.mrb[0].mxu0
        %v2128 = vadd.f32 0.0, %v2127
        %v2129 = vpop.f32.mrb[0].mxu0
        %v2130 = vadd.f32 0.0, %v2129
        %2131 = vdwg.mxu0
        %v2132 = vadd.f32 %v1963, %v2122
        %v2133 = vadd.f32 %v1964, %v2124
        %v2134 = vadd.f32 %v1965, %v2128
        %v2135 = vadd.f32 %v1966, %v2130
        %v2136 = vld [vmem:[#allocation15] sm:$0xff]
        %v2137 = vld [vmem:[#allocation15 + $0x8] sm:$0xff]
        %v2138 = vld [vmem:[#allocation15 + $0x10] sm:$0xff]
        %v2139 = vld [vmem:[#allocation15 + $0x18] sm:$0xff]
        %v2140 = vld [vmem:[#allocation15 + $0x20] sm:$0xff]
        %v2141 = vld [vmem:[#allocation15 + $0x28] sm:$0xff]
        %v2142 = vld [vmem:[#allocation15 + $0x30] sm:$0xff]
        %v2143 = vld [vmem:[#allocation15 + $0x38] sm:$0xff]
        %v2144 = vld [vmem:[#allocation15 + $0x40] sm:$0xff]
        %v2145 = vld [vmem:[#allocation15 + $0x48] sm:$0xff]
        %v2146 = vld [vmem:[#allocation15 + $0x50] sm:$0xff]
        %v2147 = vld [vmem:[#allocation15 + $0x58] sm:$0xff]
        %v2148 = vld [vmem:[#allocation15 + $0x60] sm:$0xff]
        %v2149 = vld [vmem:[#allocation15 + $0x68] sm:$0xff]
        %v2150 = vld [vmem:[#allocation15 + $0x70] sm:$0xff]
        %v2151 = vld [vmem:[#allocation15 + $0x78] sm:$0xff]
        %v2152 = vld [vmem:[#allocation15 + $0x80] sm:$0xff]
        %v2153 = vld [vmem:[#allocation15 + $0x88] sm:$0xff]
        %v2154 = vld [vmem:[#allocation15 + $0x90] sm:$0xff]
        %v2155 = vld [vmem:[#allocation15 + $0x98] sm:$0xff]
        %v2156 = vld [vmem:[#allocation15 + $0xa0] sm:$0xff]
        %v2157 = vld [vmem:[#allocation15 + $0xa8] sm:$0xff]
        %v2158 = vld [vmem:[#allocation15 + $0xb0] sm:$0xff]
        %v2159 = vld [vmem:[#allocation15 + $0xb8] sm:$0xff]
        %v2160 = vld [vmem:[#allocation15 + $0xc0] sm:$0xff]
        %v2161 = vld [vmem:[#allocation15 + $0xc8] sm:$0xff]
        %v2162 = vld [vmem:[#allocation15 + $0xd0] sm:$0xff]
        %v2163 = vld [vmem:[#allocation15 + $0xd8] sm:$0xff]
        %v2164 = vld [vmem:[#allocation15 + $0xe0] sm:$0xff]
        %v2165 = vld [vmem:[#allocation15 + $0xe8] sm:$0xff]
        %v2166 = vld [vmem:[#allocation15 + $0xf0] sm:$0xff]
        %v2167 = vld [vmem:[#allocation15 + $0xf8] sm:$0xff]
        %v2168 = vld [vmem:[%s12] sm:$0x3]
        %v2170 = vlaneseq
        %v2171 = vshrl.u32 %v2170, 7
        %v2172 = vsub.s32 0, %v2171
        %v2173 = vrot.slane %v2168, %v2172
        %v2174 = vlaneseq
        %v2175 = vshrl.u32 %v2174, 7
        %v2176 = vsub.s32 1, %v2175
        %v2177 = vrot.slane %v2168, %v2176
        %2180 = vmatprep.subr.mxu0 %v2137
        %2181 = vmatpush1.msra.mxu0 %v2136
        %2182 = vmatprep.subr.mxu0 %v2139
        %2183 = vmatpush1.msra.mxu0 %v2138
        %2184 = vmatprep.subr.mxu0 %v2141
        %2185 = vmatpush1.msra.mxu0 %v2140
        %2186 = vmatprep.subr.mxu0 %v2143
        %2187 = vmatpush1.msra.mxu0 %v2142
        %2188 = vmatprep.subr.mxu0 %v2145
        %2189 = vmatpush1.msra.mxu0 %v2144
        %2190 = vmatprep.subr.mxu0 %v2147
        %2191 = vmatpush1.msra.mxu0 %v2146
        %2192 = vmatprep.subr.mxu0 %v2149
        %2193 = vmatpush1.msra.mxu0 %v2148
        %2194 = vmatprep.subr.mxu0 %v2151
        %2195 = vmatpush1.msra.mxu0 %v2150
        %2196 = vmatprep.subr.mxu0 %v2153
        %2197 = vmatpush1.msra.mxu0 %v2152
        %2198 = vmatprep.subr.mxu0 %v2155
        %2199 = vmatpush1.msra.mxu0 %v2154
        %2200 = vmatprep.subr.mxu0 %v2157
        %2201 = vmatpush1.msra.mxu0 %v2156
        %2202 = vmatprep.subr.mxu0 %v2159
        %2203 = vmatpush1.msra.mxu0 %v2158
        %2204 = vmatprep.subr.mxu0 %v2161
        %2205 = vmatpush1.msra.mxu0 %v2160
        %2206 = vmatprep.subr.mxu0 %v2163
        %2207 = vmatpush1.msra.mxu0 %v2162
        %2208 = vmatprep.subr.mxu0 %v2165
        %2209 = vmatpush1.msra.mxu0 %v2164
        %2210 = vmatprep.subr.mxu0 %v2167
        %2211 = vmatpush1.msra.mxu0 %v2166
        %2212 = vmatprep.subr.mxu0 0.0
        %2213 = vmatpush1.msra.mxu0 0.0
        %2214 = vmatprep.subr.mxu0 0.0
        %2215 = vmatpush1.msra.mxu0 0.0
        %2216 = vmatprep.subr.mxu0 0.0
        %2217 = vmatpush1.msra.mxu0 0.0
        %2218 = vmatprep.subr.mxu0 0.0
        %2219 = vmatpush1.msra.mxu0 0.0
        %2220 = vmatprep.subr.mxu0 0.0
        %2221 = vmatpush1.msra.mxu0 0.0
        %2222 = vmatprep.subr.mxu0 0.0
        %2223 = vmatpush1.msra.mxu0 0.0
        %2224 = vmatprep.subr.mxu0 0.0
        %2225 = vmatpush1.msra.mxu0 0.0
        %2226 = vmatprep.subr.mxu0 0.0
        %2227 = vmatpush1.msra.mxu0 0.0
        %2228 = vmatprep.subr.mxu0 0.0
        %2229 = vmatpush1.msra.mxu0 0.0
        %2230 = vmatprep.subr.mxu0 0.0
        %2231 = vmatpush1.msra.mxu0 0.0
        %2232 = vmatprep.subr.mxu0 0.0
        %2233 = vmatpush1.msra.mxu0 0.0
        %2234 = vmatprep.subr.mxu0 0.0
        %2235 = vmatpush1.msra.mxu0 0.0
        %2236 = vmatprep.subr.mxu0 0.0
        %2237 = vmatpush1.msra.mxu0 0.0
        %2238 = vmatprep.subr.mxu0 0.0
        %2239 = vmatpush1.msra.mxu0 0.0
        %2240 = vmatprep.subr.mxu0 0.0
        %2241 = vmatpush1.msra.mxu0 0.0
        %2242 = vmatprep.subr.mxu0 0.0
        %2243 = vmatpush1.msra.mxu0 0.0
        %2244 = vmatprep.mubr.f32.mxu0 0.0
        %2245 = vmatmul.mubr.f32.gmra.mrb[0].mxu0 %v695
        %v2246 = vpop.f32.mrb[0].mxu0
        %v2247 = vadd.f32 %v2173, %v2246
        %v2248 = vpop.f32.mrb[0].mxu0
        %v2249 = vadd.f32 %v2177, %v2248
        %2250 = vmatprep.mubr.f32.mxu0 0.0
        %2251 = vmatmul.mubr.f32.gmra.mrb[0].mxu0 %v696
        %v2252 = vpop.f32.mrb[0].mxu0
        %v2253 = vadd.f32 %v2173, %v2252
        %v2254 = vpop.f32.mrb[0].mxu0
        %v2255 = vadd.f32 %v2177, %v2254
        %2256 = vdwg.mxu0
        %v2257 = vadd.f32 %v2132, %v2247
        %v2258 = vadd.f32 %v2133, %v2249
        %v2259 = vadd.f32 %v2134, %v2253
        %v2260 = vadd.f32 %v2135, %v2255
        %2261 = vst [vmem:[%s683] sm:$0xff] %v2257
        %2262 = vst [vmem:[%s683 + $0x8] sm:$0xff] %v2258
        %2263 = vst [vmem:[%s683 + $0x10] sm:$0xff] %v2259
        %2264 = vst [vmem:[%s683 + $0x18] sm:$0xff] %v2260
        %v2265 = vld [vmem:[%s15] sm:$0x1]
        %v2266 = vld [vmem:[%s13] sm:$0xff]
        %vm2267 = vcmask 130048
        %v2269 = vsel %vm2267, %v2266, 0
        %2271 = vmatprep.subr.mxu0 %v2258
        %2272 = vmatpush1.msra.mxu0 %v2257
        %2273 = vmatprep.subr.mxu0 %v2260
        %2274 = vmatpush1.msra.mxu0 %v2259
        %2275 = vmatprep.subr.mxu0 0.0
        %2276 = vmatpush1.msra.mxu0 0.0
        %2277 = vmatprep.subr.mxu0 0.0
        %2278 = vmatpush1.msra.mxu0 0.0
        %2279 = vmatprep.subr.mxu0 0.0
        %2280 = vmatpush1.msra.mxu0 0.0
        %2281 = vmatprep.subr.mxu0 0.0
        %2282 = vmatpush1.msra.mxu0 0.0
        %2283 = vmatprep.subr.mxu0 0.0
        %2284 = vmatpush1.msra.mxu0 0.0
        %2285 = vmatprep.subr.mxu0 0.0
        %2286 = vmatpush1.msra.mxu0 0.0
        %2287 = vmatprep.subr.mxu0 0.0
        %2288 = vmatpush1.msra.mxu0 0.0
        %2289 = vmatprep.subr.mxu0 0.0
        %2290 = vmatpush1.msra.mxu0 0.0
        %2291 = vmatprep.subr.mxu0 0.0
        %2292 = vmatpush1.msra.mxu0 0.0
        %2293 = vmatprep.subr.mxu0 0.0
        %2294 = vmatpush1.msra.mxu0 0.0
        %2295 = vmatprep.subr.mxu0 0.0
        %2296 = vmatpush1.msra.mxu0 0.0
        %2297 = vmatprep.subr.mxu0 0.0
        %2298 = vmatpush1.msra.mxu0 0.0
        %2299 = vmatprep.subr.mxu0 0.0
        %2300 = vmatpush1.msra.mxu0 0.0
        %2301 = vmatprep.subr.mxu0 0.0
        %2302 = vmatpush1.msra.mxu0 0.0
        %2303 = vmatprep.subr.mxu0 0.0
        %2304 = vmatpush1.msra.mxu0 0.0
        %2305 = vmatprep.subr.mxu0 0.0
        %2306 = vmatpush1.msra.mxu0 0.0
        %2307 = vmatprep.subr.mxu0 0.0
        %2308 = vmatpush1.msra.mxu0 0.0
        %2309 = vmatprep.subr.mxu0 0.0
        %2310 = vmatpush1.msra.mxu0 0.0
        %2311 = vmatprep.subr.mxu0 0.0
        %2312 = vmatpush1.msra.mxu0 0.0
        %2313 = vmatprep.subr.mxu0 0.0
        %2314 = vmatpush1.msra.mxu0 0.0
        %2315 = vmatprep.subr.mxu0 0.0
        %2316 = vmatpush1.msra.mxu0 0.0
        %2317 = vmatprep.subr.mxu0 0.0
        %2318 = vmatpush1.msra.mxu0 0.0
        %2319 = vmatprep.subr.mxu0 0.0
        %2320 = vmatpush1.msra.mxu0 0.0
        %2321 = vmatprep.subr.mxu0 0.0
        %2322 = vmatpush1.msra.mxu0 0.0
        %2323 = vmatprep.subr.mxu0 0.0
        %2324 = vmatpush1.msra.mxu0 0.0
        %2325 = vmatprep.subr.mxu0 0.0
        %2326 = vmatpush1.msra.mxu0 0.0
        %2327 = vmatprep.subr.mxu0 0.0
        %2328 = vmatpush1.msra.mxu0 0.0
        %2329 = vmatprep.subr.mxu0 0.0
        %2330 = vmatpush1.msra.mxu0 0.0
        %2331 = vmatprep.subr.mxu0 0.0
        %2332 = vmatpush1.msra.mxu0 0.0
        %2333 = vmatprep.subr.mxu0 0.0
        %2334 = vmatpush1.msra.mxu0 0.0
        %2335 = vmatprep.mubr.f32.mxu0 0.0
        %2336 = vmatmul.mubr.f32.gmra.mrb[0].mxu0 %v2269
        %v2337 = vpop.f32.mrb[0].mxu0
        %v2338 = vadd.f32 0.0, %v2337
        %v2339 = vpop.f32.mrb[0].mxu0
        %v2340 = vadd.f32 0.0, %v2339
        %2341 = vdwg.mxu0
        %v2342 = vld [vmem:[#allocation16] sm:$0xff]
        %v2343 = vld [vmem:[#allocation16 + $0x8] sm:$0xff]
        %v2344 = vld [vmem:[#allocation16 + $0x10] sm:$0xff]
        %v2345 = vld [vmem:[#allocation16 + $0x18] sm:$0xff]
        %v2346 = vld [vmem:[#allocation16 + $0x20] sm:$0xff]
        %v2347 = vld [vmem:[#allocation16 + $0x28] sm:$0xff]
        %v2348 = vld [vmem:[#allocation16 + $0x30] sm:$0xff]
        %v2349 = vld [vmem:[#allocation16 + $0x38] sm:$0xff]
        %v2350 = vld [vmem:[#allocation16 + $0x40] sm:$0xff]
        %v2351 = vld [vmem:[#allocation16 + $0x48] sm:$0xff]
        %v2352 = vld [vmem:[#allocation16 + $0x50] sm:$0xff]
        %v2353 = vld [vmem:[#allocation16 + $0x58] sm:$0xff]
        %v2354 = vld [vmem:[#allocation16 + $0x60] sm:$0xff]
        %v2355 = vld [vmem:[#allocation16 + $0x68] sm:$0xff]
        %v2356 = vld [vmem:[#allocation16 + $0x70] sm:$0xff]
        %v2357 = vld [vmem:[#allocation16 + $0x78] sm:$0xff]
        %v2358 = vld [vmem:[#allocation16 + $0x80] sm:$0xff]
        %v2359 = vld [vmem:[#allocation16 + $0x88] sm:$0xff]
        %v2360 = vld [vmem:[#allocation16 + $0x90] sm:$0xff]
        %v2361 = vld [vmem:[#allocation16 + $0x98] sm:$0xff]
        %v2362 = vld [vmem:[#allocation16 + $0xa0] sm:$0xff]
        %v2363 = vld [vmem:[#allocation16 + $0xa8] sm:$0xff]
        %v2364 = vld [vmem:[#allocation16 + $0xb0] sm:$0xff]
        %v2365 = vld [vmem:[#allocation16 + $0xb8] sm:$0xff]
        %v2366 = vld [vmem:[#allocation16 + $0xc0] sm:$0xff]
        %v2367 = vld [vmem:[#allocation16 + $0xc8] sm:$0xff]
        %v2368 = vld [vmem:[#allocation16 + $0xd0] sm:$0xff]
        %v2369 = vld [vmem:[#allocation16 + $0xd8] sm:$0xff]
        %v2370 = vld [vmem:[#allocation16 + $0xe0] sm:$0xff]
        %v2371 = vld [vmem:[#allocation16 + $0xe8] sm:$0xff]
        %v2372 = vld [vmem:[#allocation16 + $0xf0] sm:$0xff]
        %v2373 = vld [vmem:[#allocation16 + $0xf8] sm:$0xff]
        %2374 = vmatprep.subr.mxu0 0.0
        %2375 = vmatpush1.msra.mxu0 %v2342
        %2376 = vmatprep.subr.mxu0 0.0
        %2377 = vmatpush1.msra.mxu0 %v2343
        %2378 = vmatprep.subr.mxu0 0.0
        %2379 = vmatpush1.msra.mxu0 %v2344
        %2380 = vmatprep.subr.mxu0 0.0
        %2381 = vmatpush1.msra.mxu0 %v2345
        %2382 = vmatprep.subr.mxu0 0.0
        %2383 = vmatpush1.msra.mxu0 %v2346
        %2384 = vmatprep.subr.mxu0 0.0
        %2385 = vmatpush1.msra.mxu0 %v2347
        %2386 = vmatprep.subr.mxu0 0.0
        %2387 = vmatpush1.msra.mxu0 %v2348
        %2388 = vmatprep.subr.mxu0 0.0
        %2389 = vmatpush1.msra.mxu0 %v2349
        %2390 = vmatprep.subr.mxu0 0.0
        %2391 = vmatpush1.msra.mxu0 %v2350
        %2392 = vmatprep.subr.mxu0 0.0
        %2393 = vmatpush1.msra.mxu0 %v2351
        %2394 = vmatprep.subr.mxu0 0.0
        %2395 = vmatpush1.msra.mxu0 %v2352
        %2396 = vmatprep.subr.mxu0 0.0
        %2397 = vmatpush1.msra.mxu0 %v2353
        %2398 = vmatprep.subr.mxu0 0.0
        %2399 = vmatpush1.msra.mxu0 %v2354
        %2400 = vmatprep.subr.mxu0 0.0
        %2401 = vmatpush1.msra.mxu0 %v2355
        %2402 = vmatprep.subr.mxu0 0.0
        %2403 = vmatpush1.msra.mxu0 %v2356
        %2404 = vmatprep.subr.mxu0 0.0
        %2405 = vmatpush1.msra.mxu0 %v2357
        %2406 = vmatprep.subr.mxu0 0.0
        %2407 = vmatpush1.msra.mxu0 %v2358
        %2408 = vmatprep.subr.mxu0 0.0
        %2409 = vmatpush1.msra.mxu0 %v2359
        %2410 = vmatprep.subr.mxu0 0.0
        %2411 = vmatpush1.msra.mxu0 %v2360
        %2412 = vmatprep.subr.mxu0 0.0
        %2413 = vmatpush1.msra.mxu0 %v2361
        %2414 = vmatprep.subr.mxu0 0.0
        %2415 = vmatpush1.msra.mxu0 %v2362
        %2416 = vmatprep.subr.mxu0 0.0
        %2417 = vmatpush1.msra.mxu0 %v2363
        %2418 = vmatprep.subr.mxu0 0.0
        %2419 = vmatpush1.msra.mxu0 %v2364
        %2420 = vmatprep.subr.mxu0 0.0
        %2421 = vmatpush1.msra.mxu0 %v2365
        %2422 = vmatprep.subr.mxu0 0.0
        %2423 = vmatpush1.msra.mxu0 %v2366
        %2424 = vmatprep.subr.mxu0 0.0
        %2425 = vmatpush1.msra.mxu0 %v2367
        %2426 = vmatprep.subr.mxu0 0.0
        %2427 = vmatpush1.msra.mxu0 %v2368
        %2428 = vmatprep.subr.mxu0 0.0
        %2429 = vmatpush1.msra.mxu0 %v2369
        %2430 = vmatprep.subr.mxu0 0.0
        %2431 = vmatpush1.msra.mxu0 %v2370
        %2432 = vmatprep.subr.mxu0 0.0
        %2433 = vmatpush1.msra.mxu0 %v2371
        %2434 = vmatprep.subr.mxu0 0.0
        %2435 = vmatpush1.msra.mxu0 %v2372
        %2436 = vmatprep.subr.mxu0 0.0
        %2437 = vmatpush1.msra.mxu0 %v2373
        %2438 = vmatprep.mubr.f32.mxu0 %v2340
        %2439 = vmatmul.mubr.f32.gmra.mrb[0].mxu0 %v2338
        %v2440 = vpop.f32.mrb[0].mxu0
        %v2441 = vadd.f32 0.0, %v2440
        %v2442 = vpop.f32.mrb[0].mxu0
        %2443 = vdwg.mxu0
        %v2445 = vlaneseq
        %v2446 = vshrl.u32 %v2445, 7
        %v2447 = vsub.s32 0, %v2446
        %v2448 = vrot.slane %v2265, %v2447
        %v2450 = vadd.f32 %v2448, %v2441
        %s2451 = scalar_lea.vmem %s13, 8
        %v2452 = vld [vmem:[%s2451] sm:$0xff]
        %v2454 = vsel %vm2267, %v2452, 0
        %2456 = vmatprep.subr.mxu0 %v2258
        %2457 = vmatpush1.msra.mxu0 %v2257
        %2458 = vmatprep.subr.mxu0 %v2260
        %2459 = vmatpush1.msra.mxu0 %v2259
        %2460 = vmatprep.subr.mxu0 0.0
        %2461 = vmatpush1.msra.mxu0 0.0
        %2462 = vmatprep.subr.mxu0 0.0
        %2463 = vmatpush1.msra.mxu0 0.0
        %2464 = vmatprep.subr.mxu0 0.0
        %2465 = vmatpush1.msra.mxu0 0.0
        %2466 = vmatprep.subr.mxu0 0.0
        %2467 = vmatpush1.msra.mxu0 0.0
        %2468 = vmatprep.subr.mxu0 0.0
        %2469 = vmatpush1.msra.mxu0 0.0
        %2470 = vmatprep.subr.mxu0 0.0
        %2471 = vmatpush1.msra.mxu0 0.0
        %2472 = vmatprep.subr.mxu0 0.0
        %2473 = vmatpush1.msra.mxu0 0.0
        %2474 = vmatprep.subr.mxu0 0.0
        %2475 = vmatpush1.msra.mxu0 0.0
        %2476 = vmatprep.subr.mxu0 0.0
        %2477 = vmatpush1.msra.mxu0 0.0
        %2478 = vmatprep.subr.mxu0 0.0
        %2479 = vmatpush1.msra.mxu0 0.0
        %2480 = vmatprep.subr.mxu0 0.0
        %2481 = vmatpush1.msra.mxu0 0.0
        %2482 = vmatprep.subr.mxu0 0.0
        %2483 = vmatpush1.msra.mxu0 0.0
        %2484 = vmatprep.subr.mxu0 0.0
        %2485 = vmatpush1.msra.mxu0 0.0
        %2486 = vmatprep.subr.mxu0 0.0
        %2487 = vmatpush1.msra.mxu0 0.0
        %2488 = vmatprep.subr.mxu0 0.0
        %2489 = vmatpush1.msra.mxu0 0.0
        %2490 = vmatprep.subr.mxu0 0.0
        %2491 = vmatpush1.msra.mxu0 0.0
        %2492 = vmatprep.subr.mxu0 0.0
        %2493 = vmatpush1.msra.mxu0 0.0
        %2494 = vmatprep.subr.mxu0 0.0
        %2495 = vmatpush1.msra.mxu0 0.0
        %2496 = vmatprep.subr.mxu0 0.0
        %2497 = vmatpush1.msra.mxu0 0.0
        %2498 = vmatprep.subr.mxu0 0.0
        %2499 = vmatpush1.msra.mxu0 0.0
        %2500 = vmatprep.subr.mxu0 0.0
        %2501 = vmatpush1.msra.mxu0 0.0
        %2502 = vmatprep.subr.mxu0 0.0
        %2503 = vmatpush1.msra.mxu0 0.0
        %2504 = vmatprep.subr.mxu0 0.0
        %2505 = vmatpush1.msra.mxu0 0.0
        %2506 = vmatprep.subr.mxu0 0.0
        %2507 = vmatpush1.msra.mxu0 0.0
        %2508 = vmatprep.subr.mxu0 0.0
        %2509 = vmatpush1.msra.mxu0 0.0
        %2510 = vmatprep.subr.mxu0 0.0
        %2511 = vmatpush1.msra.mxu0 0.0
        %2512 = vmatprep.subr.mxu0 0.0
        %2513 = vmatpush1.msra.mxu0 0.0
        %2514 = vmatprep.subr.mxu0 0.0
        %2515 = vmatpush1.msra.mxu0 0.0
        %2516 = vmatprep.subr.mxu0 0.0
        %2517 = vmatpush1.msra.mxu0 0.0
        %2518 = vmatprep.subr.mxu0 0.0
        %2519 = vmatpush1.msra.mxu0 0.0
        %2520 = vmatprep.mubr.f32.mxu0 0.0
        %2521 = vmatmul.mubr.f32.gmra.mrb[0].mxu0 %v2454
        %v2522 = vpop.f32.mrb[0].mxu0
        %v2523 = vadd.f32 0.0, %v2522
        %v2524 = vpop.f32.mrb[0].mxu0
        %v2525 = vadd.f32 0.0, %v2524
        %2526 = vdwg.mxu0
        %s2527 = scalar_lea.vmem [#allocation16], 256
        %v2528 = vld [vmem:[%s2527] sm:$0xff]
        %v2529 = vld [vmem:[%s2527 + $0x8] sm:$0xff]
        %v2530 = vld [vmem:[%s2527 + $0x10] sm:$0xff]
        %v2531 = vld [vmem:[%s2527 + $0x18] sm:$0xff]
        %v2532 = vld [vmem:[%s2527 + $0x20] sm:$0xff]
        %v2533 = vld [vmem:[%s2527 + $0x28] sm:$0xff]
        %v2534 = vld [vmem:[%s2527 + $0x30] sm:$0xff]
        %v2535 = vld [vmem:[%s2527 + $0x38] sm:$0xff]
        %v2536 = vld [vmem:[%s2527 + $0x40] sm:$0xff]
        %v2537 = vld [vmem:[%s2527 + $0x48] sm:$0xff]
        %v2538 = vld [vmem:[%s2527 + $0x50] sm:$0xff]
        %v2539 = vld [vmem:[%s2527 + $0x58] sm:$0xff]
        %v2540 = vld [vmem:[%s2527 + $0x60] sm:$0xff]
        %v2541 = vld [vmem:[%s2527 + $0x68] sm:$0xff]
        %v2542 = vld [vmem:[%s2527 + $0x70] sm:$0xff]
        %v2543 = vld [vmem:[%s2527 + $0x78] sm:$0xff]
        %v2544 = vld [vmem:[%s2527 + $0x80] sm:$0xff]
        %v2545 = vld [vmem:[%s2527 + $0x88] sm:$0xff]
        %v2546 = vld [vmem:[%s2527 + $0x90] sm:$0xff]
        %v2547 = vld [vmem:[%s2527 + $0x98] sm:$0xff]
        %v2548 = vld [vmem:[%s2527 + $0xa0] sm:$0xff]
        %v2549 = vld [vmem:[%s2527 + $0xa8] sm:$0xff]
        %v2550 = vld [vmem:[%s2527 + $0xb0] sm:$0xff]
        %v2551 = vld [vmem:[%s2527 + $0xb8] sm:$0xff]
        %v2552 = vld [vmem:[%s2527 + $0xc0] sm:$0xff]
        %v2553 = vld [vmem:[%s2527 + $0xc8] sm:$0xff]
        %v2554 = vld [vmem:[%s2527 + $0xd0] sm:$0xff]
        %v2555 = vld [vmem:[%s2527 + $0xd8] sm:$0xff]
        %v2556 = vld [vmem:[%s2527 + $0xe0] sm:$0xff]
        %v2557 = vld [vmem:[%s2527 + $0xe8] sm:$0xff]
        %v2558 = vld [vmem:[%s2527 + $0xf0] sm:$0xff]
        %v2559 = vld [vmem:[%s2527 + $0xf8] sm:$0xff]
        %2560 = vmatprep.subr.mxu0 0.0
        %2561 = vmatpush1.msra.mxu0 %v2528
        %2562 = vmatprep.subr.mxu0 0.0
        %2563 = vmatpush1.msra.mxu0 %v2529
        %2564 = vmatprep.subr.mxu0 0.0
        %2565 = vmatpush1.msra.mxu0 %v2530
        %2566 = vmatprep.subr.mxu0 0.0
        %2567 = vmatpush1.msra.mxu0 %v2531
        %2568 = vmatprep.subr.mxu0 0.0
        %2569 = vmatpush1.msra.mxu0 %v2532
        %2570 = vmatprep.subr.mxu0 0.0
        %2571 = vmatpush1.msra.mxu0 %v2533
        %2572 = vmatprep.subr.mxu0 0.0
        %2573 = vmatpush1.msra.mxu0 %v2534
        %2574 = vmatprep.subr.mxu0 0.0
        %2575 = vmatpush1.msra.mxu0 %v2535
        %2576 = vmatprep.subr.mxu0 0.0
        %2577 = vmatpush1.msra.mxu0 %v2536
        %2578 = vmatprep.subr.mxu0 0.0
        %2579 = vmatpush1.msra.mxu0 %v2537
        %2580 = vmatprep.subr.mxu0 0.0
        %2581 = vmatpush1.msra.mxu0 %v2538
        %2582 = vmatprep.subr.mxu0 0.0
        %2583 = vmatpush1.msra.mxu0 %v2539
        %2584 = vmatprep.subr.mxu0 0.0
        %2585 = vmatpush1.msra.mxu0 %v2540
        %2586 = vmatprep.subr.mxu0 0.0
        %2587 = vmatpush1.msra.mxu0 %v2541
        %2588 = vmatprep.subr.mxu0 0.0
        %2589 = vmatpush1.msra.mxu0 %v2542
        %2590 = vmatprep.subr.mxu0 0.0
        %2591 = vmatpush1.msra.mxu0 %v2543
        %2592 = vmatprep.subr.mxu0 0.0
        %2593 = vmatpush1.msra.mxu0 %v2544
        %2594 = vmatprep.subr.mxu0 0.0
        %2595 = vmatpush1.msra.mxu0 %v2545
        %2596 = vmatprep.subr.mxu0 0.0
        %2597 = vmatpush1.msra.mxu0 %v2546
        %2598 = vmatprep.subr.mxu0 0.0
        %2599 = vmatpush1.msra.mxu0 %v2547
        %2600 = vmatprep.subr.mxu0 0.0
        %2601 = vmatpush1.msra.mxu0 %v2548
        %2602 = vmatprep.subr.mxu0 0.0
        %2603 = vmatpush1.msra.mxu0 %v2549
        %2604 = vmatprep.subr.mxu0 0.0
        %2605 = vmatpush1.msra.mxu0 %v2550
        %2606 = vmatprep.subr.mxu0 0.0
        %2607 = vmatpush1.msra.mxu0 %v2551
        %2608 = vmatprep.subr.mxu0 0.0
        %2609 = vmatpush1.msra.mxu0 %v2552
        %2610 = vmatprep.subr.mxu0 0.0
        %2611 = vmatpush1.msra.mxu0 %v2553
        %2612 = vmatprep.subr.mxu0 0.0
        %2613 = vmatpush1.msra.mxu0 %v2554
        %2614 = vmatprep.subr.mxu0 0.0
        %2615 = vmatpush1.msra.mxu0 %v2555
        %2616 = vmatprep.subr.mxu0 0.0
        %2617 = vmatpush1.msra.mxu0 %v2556
        %2618 = vmatprep.subr.mxu0 0.0
        %2619 = vmatpush1.msra.mxu0 %v2557
        %2620 = vmatprep.subr.mxu0 0.0
        %2621 = vmatpush1.msra.mxu0 %v2558
        %2622 = vmatprep.subr.mxu0 0.0
        %2623 = vmatpush1.msra.mxu0 %v2559
        %2624 = vmatprep.mubr.f32.mxu0 %v2525
        %2625 = vmatmul.mubr.f32.gmra.mrb[0].mxu0 %v2523
        %v2626 = vpop.f32.mrb[0].mxu0
        %v2627 = vadd.f32 0.0, %v2626
        %v2628 = vpop.f32.mrb[0].mxu0
        %2629 = vdwg.mxu0
        %v2630 = vadd.f32 %v2450, %v2627
        %s2631 = scalar_lea.vmem %s13, 16
        %v2632 = vld [vmem:[%s2631] sm:$0xff]
        %v2634 = vsel %vm2267, %v2632, 0
        %2636 = vmatprep.subr.mxu0 %v2258
        %2637 = vmatpush1.msra.mxu0 %v2257
        %2638 = vmatprep.subr.mxu0 %v2260
        %2639 = vmatpush1.msra.mxu0 %v2259
        %2640 = vmatprep.subr.mxu0 0.0
        %2641 = vmatpush1.msra.mxu0 0.0
        %2642 = vmatprep.subr.mxu0 0.0
        %2643 = vmatpush1.msra.mxu0 0.0
        %2644 = vmatprep.subr.mxu0 0.0
        %2645 = vmatpush1.msra.mxu0 0.0
        %2646 = vmatprep.subr.mxu0 0.0
        %2647 = vmatpush1.msra.mxu0 0.0
        %2648 = vmatprep.subr.mxu0 0.0
        %2649 = vmatpush1.msra.mxu0 0.0
        %2650 = vmatprep.subr.mxu0 0.0
        %2651 = vmatpush1.msra.mxu0 0.0
        %2652 = vmatprep.subr.mxu0 0.0
        %2653 = vmatpush1.msra.mxu0 0.0
        %2654 = vmatprep.subr.mxu0 0.0
        %2655 = vmatpush1.msra.mxu0 0.0
        %2656 = vmatprep.subr.mxu0 0.0
        %2657 = vmatpush1.msra.mxu0 0.0
        %2658 = vmatprep.subr.mxu0 0.0
        %2659 = vmatpush1.msra.mxu0 0.0
        %2660 = vmatprep.subr.mxu0 0.0
        %2661 = vmatpush1.msra.mxu0 0.0
        %2662 = vmatprep.subr.mxu0 0.0
        %2663 = vmatpush1.msra.mxu0 0.0
        %2664 = vmatprep.subr.mxu0 0.0
        %2665 = vmatpush1.msra.mxu0 0.0
        %2666 = vmatprep.subr.mxu0 0.0
        %2667 = vmatpush1.msra.mxu0 0.0
        %2668 = vmatprep.subr.mxu0 0.0
        %2669 = vmatpush1.msra.mxu0 0.0
        %2670 = vmatprep.subr.mxu0 0.0
        %2671 = vmatpush1.msra.mxu0 0.0
        %2672 = vmatprep.subr.mxu0 0.0
        %2673 = vmatpush1.msra.mxu0 0.0
        %2674 = vmatprep.subr.mxu0 0.0
        %2675 = vmatpush1.msra.mxu0 0.0
        %2676 = vmatprep.subr.mxu0 0.0
        %2677 = vmatpush1.msra.mxu0 0.0
        %2678 = vmatprep.subr.mxu0 0.0
        %2679 = vmatpush1.msra.mxu0 0.0
        %2680 = vmatprep.subr.mxu0 0.0
        %2681 = vmatpush1.msra.mxu0 0.0
        %2682 = vmatprep.subr.mxu0 0.0
        %2683 = vmatpush1.msra.mxu0 0.0
        %2684 = vmatprep.subr.mxu0 0.0
        %2685 = vmatpush1.msra.mxu0 0.0
        %2686 = vmatprep.subr.mxu0 0.0
        %2687 = vmatpush1.msra.mxu0 0.0
        %2688 = vmatprep.subr.mxu0 0.0
        %2689 = vmatpush1.msra.mxu0 0.0
        %2690 = vmatprep.subr.mxu0 0.0
        %2691 = vmatpush1.msra.mxu0 0.0
        %2692 = vmatprep.subr.mxu0 0.0
        %2693 = vmatpush1.msra.mxu0 0.0
        %2694 = vmatprep.subr.mxu0 0.0
        %2695 = vmatpush1.msra.mxu0 0.0
        %2696 = vmatprep.subr.mxu0 0.0
        %2697 = vmatpush1.msra.mxu0 0.0
        %2698 = vmatprep.subr.mxu0 0.0
        %2699 = vmatpush1.msra.mxu0 0.0
        %2700 = vmatprep.mubr.f32.mxu0 0.0
        %2701 = vmatmul.mubr.f32.gmra.mrb[0].mxu0 %v2634
        %v2702 = vpop.f32.mrb[0].mxu0
        %v2703 = vadd.f32 0.0, %v2702
        %v2704 = vpop.f32.mrb[0].mxu0
        %v2705 = vadd.f32 0.0, %v2704
        %2706 = vdwg.mxu0
        %s2707 = scalar_lea.vmem [#allocation16], 512
        %v2708 = vld [vmem:[%s2707] sm:$0xff]
        %v2709 = vld [vmem:[%s2707 + $0x8] sm:$0xff]
        %v2710 = vld [vmem:[%s2707 + $0x10] sm:$0xff]
        %v2711 = vld [vmem:[%s2707 + $0x18] sm:$0xff]
        %v2712 = vld [vmem:[%s2707 + $0x20] sm:$0xff]
        %v2713 = vld [vmem:[%s2707 + $0x28] sm:$0xff]
        %v2714 = vld [vmem:[%s2707 + $0x30] sm:$0xff]
        %v2715 = vld [vmem:[%s2707 + $0x38] sm:$0xff]
        %v2716 = vld [vmem:[%s2707 + $0x40] sm:$0xff]
        %v2717 = vld [vmem:[%s2707 + $0x48] sm:$0xff]
        %v2718 = vld [vmem:[%s2707 + $0x50] sm:$0xff]
        %v2719 = vld [vmem:[%s2707 + $0x58] sm:$0xff]
        %v2720 = vld [vmem:[%s2707 + $0x60] sm:$0xff]
        %v2721 = vld [vmem:[%s2707 + $0x68] sm:$0xff]
        %v2722 = vld [vmem:[%s2707 + $0x70] sm:$0xff]
        %v2723 = vld [vmem:[%s2707 + $0x78] sm:$0xff]
        %v2724 = vld [vmem:[%s2707 + $0x80] sm:$0xff]
        %v2725 = vld [vmem:[%s2707 + $0x88] sm:$0xff]
        %v2726 = vld [vmem:[%s2707 + $0x90] sm:$0xff]
        %v2727 = vld [vmem:[%s2707 + $0x98] sm:$0xff]
        %v2728 = vld [vmem:[%s2707 + $0xa0] sm:$0xff]
        %v2729 = vld [vmem:[%s2707 + $0xa8] sm:$0xff]
        %v2730 = vld [vmem:[%s2707 + $0xb0] sm:$0xff]
        %v2731 = vld [vmem:[%s2707 + $0xb8] sm:$0xff]
        %v2732 = vld [vmem:[%s2707 + $0xc0] sm:$0xff]
        %v2733 = vld [vmem:[%s2707 + $0xc8] sm:$0xff]
        %v2734 = vld [vmem:[%s2707 + $0xd0] sm:$0xff]
        %v2735 = vld [vmem:[%s2707 + $0xd8] sm:$0xff]
        %v2736 = vld [vmem:[%s2707 + $0xe0] sm:$0xff]
        %v2737 = vld [vmem:[%s2707 + $0xe8] sm:$0xff]
        %v2738 = vld [vmem:[%s2707 + $0xf0] sm:$0xff]
        %v2739 = vld [vmem:[%s2707 + $0xf8] sm:$0xff]
        %2740 = vmatprep.subr.mxu0 0.0
        %2741 = vmatpush1.msra.mxu0 %v2708
        %2742 = vmatprep.subr.mxu0 0.0
        %2743 = vmatpush1.msra.mxu0 %v2709
        %2744 = vmatprep.subr.mxu0 0.0
        %2745 = vmatpush1.msra.mxu0 %v2710
        %2746 = vmatprep.subr.mxu0 0.0
        %2747 = vmatpush1.msra.mxu0 %v2711
        %2748 = vmatprep.subr.mxu0 0.0
        %2749 = vmatpush1.msra.mxu0 %v2712
        %2750 = vmatprep.subr.mxu0 0.0
        %2751 = vmatpush1.msra.mxu0 %v2713
        %2752 = vmatprep.subr.mxu0 0.0
        %2753 = vmatpush1.msra.mxu0 %v2714
        %2754 = vmatprep.subr.mxu0 0.0
        %2755 = vmatpush1.msra.mxu0 %v2715
        %2756 = vmatprep.subr.mxu0 0.0
        %2757 = vmatpush1.msra.mxu0 %v2716
        %2758 = vmatprep.subr.mxu0 0.0
        %2759 = vmatpush1.msra.mxu0 %v2717
        %2760 = vmatprep.subr.mxu0 0.0
        %2761 = vmatpush1.msra.mxu0 %v2718
        %2762 = vmatprep.subr.mxu0 0.0
        %2763 = vmatpush1.msra.mxu0 %v2719
        %2764 = vmatprep.subr.mxu0 0.0
        %2765 = vmatpush1.msra.mxu0 %v2720
        %2766 = vmatprep.subr.mxu0 0.0
        %2767 = vmatpush1.msra.mxu0 %v2721
        %2768 = vmatprep.subr.mxu0 0.0
        %2769 = vmatpush1.msra.mxu0 %v2722
        %2770 = vmatprep.subr.mxu0 0.0
        %2771 = vmatpush1.msra.mxu0 %v2723
        %2772 = vmatprep.subr.mxu0 0.0
        %2773 = vmatpush1.msra.mxu0 %v2724
        %2774 = vmatprep.subr.mxu0 0.0
        %2775 = vmatpush1.msra.mxu0 %v2725
        %2776 = vmatprep.subr.mxu0 0.0
        %2777 = vmatpush1.msra.mxu0 %v2726
        %2778 = vmatprep.subr.mxu0 0.0
        %2779 = vmatpush1.msra.mxu0 %v2727
        %2780 = vmatprep.subr.mxu0 0.0
        %2781 = vmatpush1.msra.mxu0 %v2728
        %2782 = vmatprep.subr.mxu0 0.0
        %2783 = vmatpush1.msra.mxu0 %v2729
        %2784 = vmatprep.subr.mxu0 0.0
        %2785 = vmatpush1.msra.mxu0 %v2730
        %2786 = vmatprep.subr.mxu0 0.0
        %2787 = vmatpush1.msra.mxu0 %v2731
        %2788 = vmatprep.subr.mxu0 0.0
        %2789 = vmatpush1.msra.mxu0 %v2732
        %2790 = vmatprep.subr.mxu0 0.0
        %2791 = vmatpush1.msra.mxu0 %v2733
        %2792 = vmatprep.subr.mxu0 0.0
        %2793 = vmatpush1.msra.mxu0 %v2734
        %2794 = vmatprep.subr.mxu0 0.0
        %2795 = vmatpush1.msra.mxu0 %v2735
        %2796 = vmatprep.subr.mxu0 0.0
        %2797 = vmatpush1.msra.mxu0 %v2736
        %2798 = vmatprep.subr.mxu0 0.0
        %2799 = vmatpush1.msra.mxu0 %v2737
        %2800 = vmatprep.subr.mxu0 0.0
        %2801 = vmatpush1.msra.mxu0 %v2738
        %2802 = vmatprep.subr.mxu0 0.0
        %2803 = vmatpush1.msra.mxu0 %v2739
        %2804 = vmatprep.mubr.f32.mxu0 %v2705
        %2805 = vmatmul.mubr.f32.gmra.mrb[0].mxu0 %v2703
        %v2806 = vpop.f32.mrb[0].mxu0
        %v2807 = vadd.f32 0.0, %v2806
        %v2808 = vpop.f32.mrb[0].mxu0
        %2809 = vdwg.mxu0
        %v2810 = vadd.f32 %v2630, %v2807
        %2811 = vst [vmem:[%s690] sm:$0xff] %v2810
        %s2812 = sand.u32 %s396, 1
        %s2813 = scalar_lea.sflag [#allocation6], %s2812
        %s2814 = sand.u32 %s396, 1
        %s2815 = smul.addr %s2814, 32
        %s2816 = scalar_lea.vmem [#allocation18], %s2815
        %s2817 = sand.u32 %s422, 1
        %s2818 = scalar_lea.sflag [#allocation20], %s2817
        %s2819 = sand.u32 %s422, 1
        %s2820 = smul.addr %s2819, 8
        %s2821 = scalar_lea.vmem [#allocation19], %s2820
        // Predicated region
        $region117: #{tpu_custom_call.1} parent=83 // pred_check
          %p2822 = pneg %p406
        $region118: #{tpu_custom_call.1} parent=83 // pred_check_branch
          %2824 = sbr.rel (%p2822) target = $region120
        $region119: #{tpu_custom_call.1} parent=83 // pred_region
          %s2826 = ssub.s32 512, 512
          %2827 = vsyncadd %s2813, %s2826
          %s2828 = smul.addr %s42, 4
          %s2829 = smul.addr %s2828, 128
          %s2830 = scalar_lea.hbm %s16, %s2829
          %s2831 = sshll.u32 %s2816, 4
          %s2832 = int_to_ptr.vmem [resolvable:$true] %s2831
          %2837 = dma.vmem_to_hbm [thread:$0]  %s2832, 512, %s2830, %s2813, 256, 256, 16
        $region120: #{tpu_custom_call.1} parent=83 // pred_fallthru
          _
        // Predicated region
        $region121: #{tpu_custom_call.1} parent=83 // pred_check
          %p2838 = pneg %p432
        $region122: #{tpu_custom_call.1} parent=83 // pred_check_branch
          %2840 = sbr.rel (%p2838) target = $region124
        $region123: #{tpu_custom_call.1} parent=83 // pred_region
          %s2842 = ssub.s32 128, 128
          %2843 = vsyncadd %s2818, %s2842
          %s2844 = smul.addr %s42, 128
          %s2845 = scalar_lea.hbm %s17, %s2844
          %s2847 = sshll.u32 %s2821, 4
          %s2848 = int_to_ptr.vmem [resolvable:$true] %s2847
          %2850 = dma.vmem_to_hbm [thread:$0]  %s2848, 128, %s2845, %s2818
        $region124: #{tpu_custom_call.1} parent=83 // pred_fallthru
          _
      $region84: #{tpu_custom_call.1} parent=5 // pred_fallthru
        _
      %p2851 = scmp.le.s32.totalorder 2, %s37
      // Predicated region
      $region125: #{tpu_custom_call.1} parent=5 // pred_check
        %p2852 = pneg %p2851
      $region126: #{tpu_custom_call.1} parent=5 // pred_check_branch
        %2854 = sbr.rel (%p2852) target = $region128
      $region127: #{tpu_custom_call.1} parent=5 // pred_region
        %s2855 = ssub.s32 %s37, 2
        // Predicated region
        $region129: #{tpu_custom_call.1} parent=127 // pred_check
          %p2856 = pneg %p412
        $region130: #{tpu_custom_call.1} parent=127 // pred_check_branch
          %2858 = sbr.rel (%p2856) target = $region132
        $region131: #{tpu_custom_call.1} parent=127 // pred_region
          %s2859 = sand.u32 %s397, 1
          %s2860 = scalar_lea.sflag [#allocation6], %s2859
          %s2861 = sand.u32 %s397, 1
          %s2862 = smul.addr %s2861, 32
          %s2863 = scalar_lea.vmem [#allocation18], %s2862
          %2864 = dma.done %s2860, 512
        $region132: #{tpu_custom_call.1} parent=127 // pred_fallthru
          _
        // Predicated region
        $region133: #{tpu_custom_call.1} parent=127 // pred_check
          %p2865 = pneg %p438
        $region134: #{tpu_custom_call.1} parent=127 // pred_check_branch
          %2867 = sbr.rel (%p2865) target = $region136
        $region135: #{tpu_custom_call.1} parent=127 // pred_region
          %s2868 = sand.u32 %s423, 1
          %s2869 = scalar_lea.sflag [#allocation20], %s2868
          %s2870 = sand.u32 %s423, 1
          %s2871 = smul.addr %s2870, 8
          %s2872 = scalar_lea.vmem [#allocation19], %s2871
          %2873 = dma.done %s2869, 128
        $region136: #{tpu_custom_call.1} parent=127 // pred_fallthru
          _
      $region128: #{tpu_custom_call.1} parent=5 // pred_fallthru
        _
    $region6: #{tpu_custom_call.1} parent=1 // loop_footer
      %s41 = sadd.s32 1, %s37
    $region7: #{tpu_custom_call.1} parent=1 // loop_footer_branch
      %36 = sbr.rel target = $region3
    $region8: #{tpu_custom_call.1} parent=1 // loop_exit
      _
    %2874 = vsyncpa [#allocation5], 1
    %s2875 = scalar_lea.sflag [#allocation5], 1
    %2876 = vsyncpa %s2875, 1
    %2877 = vsyncpa [#allocation8], 1
    %2878 = vsyncpa [#allocation11], 1
    %2879 = vsyncpa [#allocation14], 1
    %2880 = vsyncpa [#allocation17], 1
    %2881 = vsyncpa [#allocation6], 1
    %s2882 = scalar_lea.sflag [#allocation6], 1
    %2883 = vsyncpa %s2882, 1
    %2884 = vsyncpa [#allocation20], 1
    %s2885 = scalar_lea.sflag [#allocation20], 1
    %2886 = vsyncpa %s2885, 1

</llo_original>
